<compile_context>
chip_gen: v5e
topology: v5e:2x2
jax: 0.10.0
libtpu: 0.0.40
codegen_flags: <defaults>
</compile_context>

<pallas_src>
import functools

import jax
import jax.numpy as jnp
from jax import lax
from jax.experimental import pallas as pl
from jax.experimental.pallas import tpu as pltpu


def _round_up(x, m):
    return (x + m - 1) // m * m


# ----------------------------------------------------------------------------
# Pallas kernel: whole PSA_s forward for Bt batch elements per grid step.
# ----------------------------------------------------------------------------
def psa_kernel(x_ref,       # (Bt, HW, C_pad)  bf16
               wr_ref,      # (C_pad, Rw)      bf16  [conv_v_right | conv_q_right]
               wvl_ref,     # (C_pad, Cpk)     bf16  conv_v_left  (theta)
               wql_ref,     # (C_pad, Cpk)     f32   conv_q_left  (avg via mean-first)
               wu1_ref,     # (Rw, Cr_pad)     f32   conv_up[0] weight
               wu2_ref,     # (Cr_pad, C_pad)  f32   conv_up[3] weight
               small_ref,   # (4, C_pad)       f32   [b_up1; ln_g; ln_b; b_up2]
               o_ref,       # (Bt, HW, C_pad)  bf16
               *, cr, q_col):
    bt, hw, c_pad = x_ref.shape
    cr_pad = wu1_ref.shape[1]

    xb = x_ref[...]                                                 # (Bt,HW,C_pad) bf16
    flat = xb.reshape(bt * hw, c_pad)                               # free (HW % 8 == 0)

    # ------------------------- right branch: spatial pool -------------------
    # One fused MXU pass: columns [:Cp] = conv_v_right, column q_col = conv_q_right.
    right = jnp.dot(flat, wr_ref[...],
                    preferred_element_type=jnp.float32)             # (Bt*HW, Rw)
    rw = right.shape[1]
    right = right.reshape(bt, hw, rw)

    cm = right[:, :, q_col:q_col + 1]                               # (Bt, HW, 1)
    cm = cm - jnp.max(cm, axis=1, keepdims=True)
    cm_e = jnp.exp(cm)
    inv_sum = pl.reciprocal(jnp.sum(cm_e, axis=1, keepdims=True), approx=True)
    # context = softmax(cm)^T @ input_x folded into one contraction over the
    # full fused block; the q_right column and padded columns hit zero rows of
    # w_up1, so their finite garbage never propagates.
    context = lax.dot_general(cm_e, right, (((1,), (1,)), ((0,), (0,))),
                              preferred_element_type=jnp.float32)   # (Bt, 1, Rw)
    context = (context * inv_sum).reshape(bt, rw)

    small = small_ref[...]
    b_up1 = small[0:1, :cr_pad]
    ln_g = small[1:2, :cr_pad]
    ln_b = small[2:3, :cr_pad]
    b_up2 = small[3:4, :]                                           # (1, C_pad)

    # conv_up: 1x1 conv -> LayerNorm([Cr,1,1]) -> ReLU -> 1x1 conv (tiny, f32).
    z1 = jnp.dot(context, wu1_ref[...],
                 preferred_element_type=jnp.float32) + b_up1        # (Bt, Cr_pad)
    # masked LayerNorm over the `cr` real channels (padding columns are zero)
    mu = jnp.sum(z1, axis=1, keepdims=True) * (1.0 / cr)
    col = lax.broadcasted_iota(jnp.int32, (1, cr_pad), 1)
    centered = jnp.where(col < cr, z1 - mu, 0.0)
    var = jnp.sum(centered * centered, axis=1, keepdims=True) * (1.0 / cr)
    z1n = jnp.maximum(centered * lax.rsqrt(var + 1e-5) * ln_g + ln_b, 0.0)
    z2 = jnp.dot(z1n, wu2_ref[...],
                 preferred_element_type=jnp.float32) + b_up2        # (Bt, C_pad)
    mask_ch = jax.nn.sigmoid(z2).reshape(bt, 1, c_pad)

    out1 = xb.astype(jnp.float32) * mask_ch                         # (Bt,HW,C_pad) f32

    # ------------------------- left branch: channel pool --------------------
    # theta = conv_v_left(out1): the only big left-branch matmul (128 lanes).
    theta = jnp.dot(out1.astype(jnp.bfloat16).reshape(bt * hw, c_pad), wvl_ref[...],
                    preferred_element_type=jnp.float32)             # (Bt*HW, Cpk)
    cpk = theta.shape[1]
    theta = theta.reshape(bt, hw, cpk)

    # avg_pool(conv_q_left(out1)) == conv_q_left(mean(out1)) by linearity, so
    # the big g_x matmul is replaced by a row-mean + a tiny (Bt,C)@(C,Cpk) matmul.
    out1_mean = jnp.sum(out1, axis=1) * (1.0 / hw)                  # (Bt, C_pad)
    avg = jnp.dot(out1_mean, wql_ref[...],
                  preferred_element_type=jnp.float32)               # (Bt, Cpk)

    colmax = jnp.max(theta, axis=1, keepdims=True)                  # (Bt, 1, Cpk)
    pe = jnp.exp(theta - colmax)                                    # (Bt, HW, Cpk)
    colsum = jnp.sum(pe, axis=1, keepdims=True)                     # (Bt, 1, Cpk)
    # Padded columns carry theta == 0 and avg == 0 exactly, so v is 0 there and
    # they contribute nothing; softmax normalization folded into v.
    v = avg.reshape(bt, 1, cpk) * pl.reciprocal(colsum, approx=True)
    ctx_sp = lax.dot_general(pe, v, (((2,), (2,)), ((0,), (0,))),
                             preferred_element_type=jnp.float32)    # (Bt, HW, 1)
    mask_sp = jax.nn.sigmoid(ctx_sp)

    # Single fused final store (no early store + readback of the big block).
    o_ref[...] = (out1 * mask_sp).astype(o_ref.dtype)


# ----------------------------------------------------------------------------
# Wrapper
# ----------------------------------------------------------------------------
def psa_s_pallas(x_nchw, params):
    B, C, H, W = x_nchw.shape
    HW = H * W
    Cp = params["w_v_right"].shape[1]
    Cr = params["w_up1"].shape[1]
    P = params["w_up2"].shape[1]
    assert P == C, "PSA_s broadcast requires planes == inplanes"

    C_pad = _round_up(C, 128)
    Cp_pack = _round_up(Cp, 128)
    Cr_pad = _round_up(Cr, 128)
    Rw = _round_up(Cp + 1, 128)         # fused right-branch width
    q_col = Cp                          # conv_q_right column inside the padding

    f32, bf16 = jnp.float32, jnp.bfloat16

    # NCHW -> (B, HW, C_pad) bf16: channels lane-dense, zero-padded to 128.
    # bf16 streaming halves the HBM read/write of the big tensor.
    # TODO(synk): keep the surrounding model channels-last so this transpose/pad
    # glue (3-4 extra HBM passes on a memory-bound op) disappears entirely.
    x_bpc = jnp.transpose(x_nchw, (0, 2, 3, 1)).reshape(B, HW, C).astype(bf16)
    if C_pad != C:
        x_bpc = jnp.pad(x_bpc, ((0, 0), (0, 0), (0, C_pad - C)))

    # Fused / padded 1x1-conv weights (built once, outside the kernel).
    w_right = jnp.zeros((C_pad, Rw), f32)
    w_right = w_right.at[:C, :Cp].set(params["w_v_right"])
    w_right = w_right.at[:C, q_col].set(params["w_q_right"][:, 0])
    w_right = w_right.astype(bf16)

    w_v_left = jnp.zeros((C_pad, Cp_pack), f32).at[:C, :Cp].set(params["w_v_left"]).astype(bf16)
    w_q_left = jnp.zeros((C_pad, Cp_pack), f32).at[:C, :Cp].set(params["w_q_left"])

    w_up1 = jnp.zeros((Rw, Cr_pad), f32).at[:Cp, :Cr].set(params["w_up1"])
    w_up2 = jnp.zeros((Cr_pad, C_pad), f32).at[:Cr, :C].set(params["w_up2"])

    small = jnp.zeros((4, C_pad), f32)
    small = small.at[0, :Cr].set(params["b_up1"][0])
    small = small.at[1, :Cr].set(params["ln_g"][0])
    small = small.at[2, :Cr].set(params["ln_b"][0])
    small = small.at[3, :C].set(params["b_up2"][0])

    weights = (w_right, w_v_left, w_q_left, w_up1, w_up2, small)
    w_bytes = sum(int(a.size) * a.dtype.itemsize for a in weights)

    # -------------------- per-generation VMEM budget & batch tile -----------
    try:
        vmem_cap = int(pltpu.get_tpu_info().vmem_capacity_bytes)
    except Exception:
        vmem_cap = 64 << 20                      # conservative: v7x physical VMEM
    budget = int(vmem_cap * 0.9)

    def io_bytes(bt):                            # one in + one out buffer (bf16)
        return 2 * bt * HW * C_pad * 2

    def inter_bytes(bt):                         # right/out1/theta/pe f32 + out1 bf16
        per_px = 4 * (Rw + C_pad + 2 * Cp_pack) + 2 * C_pad
        return int(1.25 * bt * HW * per_px)      # +25% slack

    def footprint(bt, nbuf):
        return nbuf * io_bytes(bt) + 2 * w_bytes + inter_bytes(bt) + (2 << 20)

    Bt = 1
    for cand in range(min(B, 8), 0, -1):
        if B % cand != 0:
            continue
        if cand > 1 and HW % 8 != 0:             # keep in-kernel (Bt*HW, C) reshape free
            continue
        if footprint(cand, 2) <= budget:
            Bt = cand
            break

    single_buffer = footprint(Bt, 2) > budget    # only possible at Bt == 1
    nbuf = 1 if single_buffer else 2
    # TODO(synk): if footprint(1, 1) still exceeds the budget (very large H*W),
    # stream HW tiles with online-softmax accumulators instead of one block.
    vmem_limit = int(min(budget, footprint(Bt, nbuf) + (8 << 20)))
    vmem_limit = max(vmem_limit, 16 << 20)

    kernel = functools.partial(psa_kernel, cr=Cr, q_col=q_col)

    def xo_spec():
        if single_buffer:
            return pl.BlockSpec((Bt, HW, C_pad), lambda b: (b, 0, 0),
                                pipeline_mode=pl.Buffered(1))
        return pl.BlockSpec((Bt, HW, C_pad), lambda b: (b, 0, 0))

    out = pl.pallas_call(
        kernel,
        out_shape=jax.ShapeDtypeStruct((B, HW, C_pad), bf16),
        grid_spec=pltpu.PrefetchScalarGridSpec(
            num_scalar_prefetch=0,
            grid=(B // Bt,),                     # batch-blocks; parallel across TCs
            in_specs=[xo_spec()]
                     + [pl.BlockSpec(w.shape, lambda b: (0, 0)) for w in weights],
            out_specs=xo_spec(),
        ),
        compiler_params=pltpu.CompilerParams(
            dimension_semantics=("parallel",),
            vmem_limit_bytes=vmem_limit),
    )(x_bpc, *weights)

    # (B, HW, C_pad) bf16 -> strip channel padding -> NCHW f32
    out = out[:, :, :C].reshape(B, H, W, C)
    return jnp.transpose(out, (0, 3, 1, 2)).astype(f32)


# ----------------------------------------------------------------------------
# Pure-JAX reference (mirrors the PyTorch code in NCHW) for self-check.
# ----------------------------------------------------------------------------
def psa_s_ref(x, p):
    B, C, H, W = x.shape
    conv = lambda t, w: jnp.einsum("bchw,cd->bdhw", t, w)

    # spatial_pool
    input_x = conv(x, p["w_v_right"])
    Cp = input_x.shape[1]
    input_x = input_x.reshape(B, Cp, H * W)
    cm = conv(x, p["w_q_right"]).reshape(B, 1, H * W)
    cm = jax.nn.softmax(cm, axis=2)
    context = jnp.einsum("bcn,bdn->bcd", input_x, cm)[..., None]    # (B,Cp,1,1)
    z1 = conv(context, p["w_up1"]) + p["b_up1"].reshape(1, -1, 1, 1)
    mu = jnp.mean(z1, axis=(1, 2, 3), keepdims=True)
    var = jnp.mean((z1 - mu) ** 2, axis=(1, 2, 3), keepdims=True)
    z1 = (z1 - mu) / jnp.sqrt(var + 1e-5) * p["ln_g"].reshape(1, -1, 1, 1) \
         + p["ln_b"].reshape(1, -1, 1, 1)
    z1 = jnp.maximum(z1, 0.0)
    z2 = conv(z1, p["w_up2"]) + p["b_up2"].reshape(1, -1, 1, 1)
    out = x * jax.nn.sigmoid(z2)

    # channel_pool
    g_x = conv(out, p["w_q_left"])
    avg = jnp.mean(g_x, axis=(2, 3)).reshape(B, 1, Cp)               # (B,1,Cp)
    theta = conv(out, p["w_v_left"]).reshape(B, Cp, H * W)
    theta = jax.nn.softmax(theta, axis=2)
    ctx = jnp.einsum("bij,bjn->bin", avg, theta).reshape(B, 1, H, W)
    return out * jax.nn.sigmoid(ctx)


# ----------------------------------------------------------------------------
def make_params(key, inplanes, planes, ratio=4):
    inter = planes // 2
    cr = inter // ratio
    ks = jax.random.split(key, 8)
    s = 0.1
    return {
        # 1x1 conv weights stored as (Cin, Cout) matrices
        "w_q_right": s * jax.random.normal(ks[0], (inplanes, 1), jnp.float32),
        "w_v_right": s * jax.random.normal(ks[1], (inplanes, inter), jnp.float32),
        "w_up1":     s * jax.random.normal(ks[2], (inter, cr), jnp.float32),
        "b_up1":     s * jax.random.normal(ks[3], (1, cr), jnp.float32),
        "ln_g":      jnp.ones((1, cr), jnp.float32),
        "ln_b":      jnp.zeros((1, cr), jnp.float32),
        "w_up2":     s * jax.random.normal(ks[4], (cr, planes), jnp.float32),
        "b_up2":     s * jax.random.normal(ks[5], (1, planes), jnp.float32),
        "w_q_left":  s * jax.random.normal(ks[6], (inplanes, inter), jnp.float32),
        "w_v_left":  s * jax.random.normal(ks[7], (inplanes, inter), jnp.float32),
    }


if __name__ == "__main__":
    # inplanes = planes = 64 -> inter = 32, cr = 8; HW = 256
    B, C, H, W = 2, 64, 16, 16
    key = jax.random.PRNGKey(0)
    kx, kp = jax.random.split(key)
    x = jax.random.normal(kx, (B, C, H, W), jnp.float32)
    params = make_params(kp, inplanes=C, planes=C)

    out = jax.block_until_ready(psa_s_pallas(x, params))
    ref = jax.block_until_ready(psa_s_ref(x, params))

    assert out.shape == (B, C, H, W)
    assert out.dtype == jnp.float32
    # bf16 I/O + bf16 MXU operands (f32 accumulation) -> relaxed tolerance.
    err = jnp.max(jnp.abs(out - ref))
    assert jnp.allclose(out, ref, rtol=2e-2, atol=2e-2), f"max err {err}"
    print("KERNEL_OK")
</pallas_src>

<mosaic_0001>
module attributes {stable_mosaic.version = 11 : i64} {
  func.func @psa_kernel(%arg0: i32, %arg1: memref<2x256x128xbf16, #tpu.memory_space<vmem>>, %arg2: memref<128x128xbf16, #tpu.memory_space<vmem>>, %arg3: memref<128x128xbf16, #tpu.memory_space<vmem>>, %arg4: memref<128x128xf32, #tpu.memory_space<vmem>>, %arg5: memref<128x128xf32, #tpu.memory_space<vmem>>, %arg6: memref<128x128xf32, #tpu.memory_space<vmem>>, %arg7: memref<4x128xf32, #tpu.memory_space<vmem>>, %arg8: memref<2x256x128xbf16, #tpu.memory_space<vmem>>) attributes {dimension_semantics = [#tpu.dimension_semantics<parallel>], iteration_bounds = array<i64: 1>, scalar_prefetch = 0 : i64, scratch_operands = 0 : i64, tpu.core_type = #tpu.core_type<tc>, window_params = [{transform_indices = @transform_0, window_bounds = array<i64: 2, 256, 128>}, {pipeline_mode = #tpu.pipeline_mode<synchronous>, transform_indices = @transform_1, window_bounds = array<i64: 128, 128>}, {pipeline_mode = #tpu.pipeline_mode<synchronous>, transform_indices = @transform_2, window_bounds = array<i64: 128, 128>}, {pipeline_mode = #tpu.pipeline_mode<synchronous>, transform_indices = @transform_3, window_bounds = array<i64: 128, 128>}, {pipeline_mode = #tpu.pipeline_mode<synchronous>, transform_indices = @transform_4, window_bounds = array<i64: 128, 128>}, {pipeline_mode = #tpu.pipeline_mode<synchronous>, transform_indices = @transform_5, window_bounds = array<i64: 128, 128>}, {pipeline_mode = #tpu.pipeline_mode<synchronous>, transform_indices = @transform_6, window_bounds = array<i64: 4, 128>}, {transform_indices = @transform_7, window_bounds = array<i64: 2, 256, 128>}]} {
    %c0 = arith.constant 0 : index
    %c0_0 = arith.constant 0 : index
    %c0_1 = arith.constant 0 : index
    %0 = vector.load %arg1[%c0, %c0_0, %c0_1] : memref<2x256x128xbf16, #tpu.memory_space<vmem>>, vector<2x256x128xbf16>
    %1 = vector.shape_cast %0 : vector<2x256x128xbf16> to vector<512x128xbf16>
    %c0_2 = arith.constant 0 : index
    %c0_3 = arith.constant 0 : index
    %2 = vector.load %arg2[%c0_2, %c0_3] : memref<128x128xbf16, #tpu.memory_space<vmem>>, vector<128x128xbf16>
    %cst = arith.constant dense<0.000000e+00> : vector<512x128xf32>
    %3 = tpu.matmul %1, %2, %cst {dimension_numbers = #tpu.dot_dimension_numbers<[1], [0], [0], [1], [0, 0, 1, 1], [], []>} : vector<512x128xbf16>, vector<128x128xbf16>, vector<512x128xf32> -> vector<512x128xf32>
    %4 = vector.shape_cast %3 : vector<512x128xf32> to vector<2x256x128xf32>
    %5 = vector.extract_strided_slice %4 {offsets = [0, 0, 32], sizes = [2, 256, 1], strides = [1, 1, 1]} : vector<2x256x128xf32> to vector<2x256x1xf32>
    %cst_4 = arith.constant dense<0xFF800000> : vector<2x1xf32>
    %6 = vector.multi_reduction <maximumf>, %5, %cst_4 [1] : vector<2x256x1xf32> to vector<2x1xf32>
    %7 = vector.shape_cast %6 : vector<2x1xf32> to vector<2x1x1xf32>
    %8 = vector.broadcast %7 : vector<2x1x1xf32> to vector<2x256x1xf32>
    %9 = arith.subf %5, %8 : vector<2x256x1xf32>
    %10 = math.exp %9 : vector<2x256x1xf32>
    %cst_5 = arith.constant dense<0.000000e+00> : vector<2x1xf32>
    %11 = vector.multi_reduction <add>, %10, %cst_5 [1] : vector<2x256x1xf32> to vector<2x1xf32>
    %12 = vector.shape_cast %11 : vector<2x1xf32> to vector<2x1x1xf32>
    %13 = tpu.reciprocal %12 {approx = true} : vector<2x1x1xf32> -> vector<2x1x1xf32>
    %cst_6 = arith.constant dense<0.000000e+00> : vector<2x1x128xf32>
    %14 = tpu.matmul %10, %4, %cst_6 {dimension_numbers = #tpu.dot_dimension_numbers<[1], [1], [2], [2], [0, 0, 0, 2, 1, 2], [0], [0]>} : vector<2x256x1xf32>, vector<2x256x128xf32>, vector<2x1x128xf32> -> vector<2x1x128xf32>
    %15 = vector.broadcast %13 : vector<2x1x1xf32> to vector<2x1x128xf32>
    %16 = arith.mulf %14, %15 : vector<2x1x128xf32>
    %17 = vector.shape_cast %16 : vector<2x1x128xf32> to vector<2x128xf32>
    %c0_7 = arith.constant 0 : index
    %c0_8 = arith.constant 0 : index
    %18 = vector.load %arg7[%c0_7, %c0_8] : memref<4x128xf32, #tpu.memory_space<vmem>>, vector<4x128xf32>
    %19 = vector.extract_strided_slice %18 {offsets = [0, 0], sizes = [1, 128], strides = [1, 1]} : vector<4x128xf32> to vector<1x128xf32>
    %20 = vector.extract_strided_slice %18 {offsets = [1, 0], sizes = [1, 128], strides = [1, 1]} : vector<4x128xf32> to vector<1x128xf32>
    %21 = vector.extract_strided_slice %18 {offsets = [2, 0], sizes = [1, 128], strides = [1, 1]} : vector<4x128xf32> to vector<1x128xf32>
    %22 = vector.extract_strided_slice %18 {offsets = [3, 0], sizes = [1, 128], strides = [1, 1]} : vector<4x128xf32> to vector<1x128xf32>
    %c0_9 = arith.constant 0 : index
    %c0_10 = arith.constant 0 : index
    %23 = vector.load %arg5[%c0_9, %c0_10] : memref<128x128xf32, #tpu.memory_space<vmem>>, vector<128x128xf32>
    %cst_11 = arith.constant dense<0.000000e+00> : vector<2x128xf32>
    %24 = tpu.matmul %17, %23, %cst_11 {dimension_numbers = #tpu.dot_dimension_numbers<[1], [0], [0], [1], [0, 0, 1, 1], [], []>} : vector<2x128xf32>, vector<128x128xf32>, vector<2x128xf32> -> vector<2x128xf32>
    %25 = vector.broadcast %19 : vector<1x128xf32> to vector<2x128xf32>
    %26 = arith.addf %24, %25 : vector<2x128xf32>
    %cst_12 = arith.constant dense<0.000000e+00> : vector<2xf32>
    %27 = vector.multi_reduction <add>, %26, %cst_12 [1] : vector<2x128xf32> to vector<2xf32>
    %28 = vector.shape_cast %27 : vector<2xf32> to vector<2x1xf32>
    %cst_13 = arith.constant 1.250000e-01 : f32
    %29 = vector.broadcast %cst_13 : f32 to vector<2x1xf32>
    %30 = arith.mulf %28, %29 : vector<2x1xf32>
    %31 = tpu.iota {dimensions = array<i32: 1>} : vector<1x128xi32>
    %c8_i32 = arith.constant 8 : i32
    %32 = vector.broadcast %c8_i32 : i32 to vector<1x128xi32>
    %33 = arith.cmpi slt, %31, %32 : vector<1x128xi32>
    %34 = vector.broadcast %30 : vector<2x1xf32> to vector<2x128xf32>
    %35 = arith.subf %26, %34 : vector<2x128xf32>
    %cst_14 = arith.constant 0.000000e+00 : f32
    %36 = vector.shape_cast %33 : vector<1x128xi1> to vector<1x128xi1>
    %37 = vector.broadcast %36 : vector<1x128xi1> to vector<2x128xi1>
    %38 = vector.broadcast %cst_14 : f32 to vector<2x128xf32>
    %39 = arith.select %37, %35, %38 : vector<2x128xi1>, vector<2x128xf32>
    %40 = arith.mulf %39, %39 : vector<2x128xf32>
    %cst_15 = arith.constant dense<0.000000e+00> : vector<2xf32>
    %41 = vector.multi_reduction <add>, %40, %cst_15 [1] : vector<2x128xf32> to vector<2xf32>
    %42 = vector.shape_cast %41 : vector<2xf32> to vector<2x1xf32>
    %cst_16 = arith.constant 1.250000e-01 : f32
    %43 = vector.broadcast %cst_16 : f32 to vector<2x1xf32>
    %44 = arith.mulf %42, %43 : vector<2x1xf32>
    %cst_17 = arith.constant 9.99999974E-6 : f32
    %45 = vector.broadcast %cst_17 : f32 to vector<2x1xf32>
    %46 = arith.addf %44, %45 : vector<2x1xf32>
    %47 = math.rsqrt %46 : vector<2x1xf32>
    %48 = vector.broadcast %47 : vector<2x1xf32> to vector<2x128xf32>
    %49 = arith.mulf %39, %48 : vector<2x128xf32>
    %50 = vector.broadcast %20 : vector<1x128xf32> to vector<2x128xf32>
    %51 = arith.mulf %49, %50 : vector<2x128xf32>
    %52 = vector.broadcast %21 : vector<1x128xf32> to vector<2x128xf32>
    %53 = arith.addf %51, %52 : vector<2x128xf32>
    %cst_18 = arith.constant 0.000000e+00 : f32
    %54 = vector.broadcast %cst_18 : f32 to vector<2x128xf32>
    %55 = arith.maximumf %53, %54 : vector<2x128xf32>
    %c0_19 = arith.constant 0 : index
    %c0_20 = arith.constant 0 : index
    %56 = vector.load %arg6[%c0_19, %c0_20] : memref<128x128xf32, #tpu.memory_space<vmem>>, vector<128x128xf32>
    %cst_21 = arith.constant dense<0.000000e+00> : vector<2x128xf32>
    %57 = tpu.matmul %55, %56, %cst_21 {dimension_numbers = #tpu.dot_dimension_numbers<[1], [0], [0], [1], [0, 0, 1, 1], [], []>} : vector<2x128xf32>, vector<128x128xf32>, vector<2x128xf32> -> vector<2x128xf32>
    %58 = vector.broadcast %22 : vector<1x128xf32> to vector<2x128xf32>
    %59 = arith.addf %57, %58 : vector<2x128xf32>
    %60 = arith.negf %59 : vector<2x128xf32>
    %61 = math.exp %60 : vector<2x128xf32>
    %cst_22 = arith.constant 1.000000e+00 : f32
    %62 = vector.broadcast %cst_22 : f32 to vector<2x128xf32>
    %63 = arith.addf %62, %61 : vector<2x128xf32>
    %64 = arith.divf %62, %63 : vector<2x128xf32>
    %65 = vector.shape_cast %64 : vector<2x128xf32> to vector<2x1x128xf32>
    %66 = arith.extf %0 : vector<2x256x128xbf16> to vector<2x256x128xf32>
    %67 = vector.broadcast %65 : vector<2x1x128xf32> to vector<2x256x128xf32>
    %68 = arith.mulf %66, %67 : vector<2x256x128xf32>
    %69 = arith.truncf %68 : vector<2x256x128xf32> to vector<2x256x128xbf16>
    %70 = vector.shape_cast %69 : vector<2x256x128xbf16> to vector<512x128xbf16>
    %c0_23 = arith.constant 0 : index
    %c0_24 = arith.constant 0 : index
    %71 = vector.load %arg3[%c0_23, %c0_24] : memref<128x128xbf16, #tpu.memory_space<vmem>>, vector<128x128xbf16>
    %cst_25 = arith.constant dense<0.000000e+00> : vector<512x128xf32>
    %72 = tpu.matmul %70, %71, %cst_25 {dimension_numbers = #tpu.dot_dimension_numbers<[1], [0], [0], [1], [0, 0, 1, 1], [], []>} : vector<512x128xbf16>, vector<128x128xbf16>, vector<512x128xf32> -> vector<512x128xf32>
    %73 = vector.shape_cast %72 : vector<512x128xf32> to vector<2x256x128xf32>
    %cst_26 = arith.constant dense<0.000000e+00> : vector<2x128xf32>
    %74 = vector.multi_reduction <add>, %68, %cst_26 [1] : vector<2x256x128xf32> to vector<2x128xf32>
    %cst_27 = arith.constant 3.906250e-03 : f32
    %75 = vector.broadcast %cst_27 : f32 to vector<2x128xf32>
    %76 = arith.mulf %74, %75 : vector<2x128xf32>
    %c0_28 = arith.constant 0 : index
    %c0_29 = arith.constant 0 : index
    %77 = vector.load %arg4[%c0_28, %c0_29] : memref<128x128xf32, #tpu.memory_space<vmem>>, vector<128x128xf32>
    %cst_30 = arith.constant dense<0.000000e+00> : vector<2x128xf32>
    %78 = tpu.matmul %76, %77, %cst_30 {dimension_numbers = #tpu.dot_dimension_numbers<[1], [0], [0], [1], [0, 0, 1, 1], [], []>} : vector<2x128xf32>, vector<128x128xf32>, vector<2x128xf32> -> vector<2x128xf32>
    %cst_31 = arith.constant dense<0xFF800000> : vector<2x128xf32>
    %79 = vector.multi_reduction <maximumf>, %73, %cst_31 [1] : vector<2x256x128xf32> to vector<2x128xf32>
    %80 = vector.shape_cast %79 : vector<2x128xf32> to vector<2x1x128xf32>
    %81 = vector.broadcast %80 : vector<2x1x128xf32> to vector<2x256x128xf32>
    %82 = arith.subf %73, %81 : vector<2x256x128xf32>
    %83 = math.exp %82 : vector<2x256x128xf32>
    %cst_32 = arith.constant dense<0.000000e+00> : vector<2x128xf32>
    %84 = vector.multi_reduction <add>, %83, %cst_32 [1] : vector<2x256x128xf32> to vector<2x128xf32>
    %85 = vector.shape_cast %84 : vector<2x128xf32> to vector<2x1x128xf32>
    %86 = vector.shape_cast %78 : vector<2x128xf32> to vector<2x1x128xf32>
    %87 = tpu.reciprocal %85 {approx = true} : vector<2x1x128xf32> -> vector<2x1x128xf32>
    %88 = arith.mulf %86, %87 : vector<2x1x128xf32>
    %cst_33 = arith.constant dense<0.000000e+00> : vector<2x256x1xf32>
    %89 = tpu.matmul %83, %88, %cst_33 {dimension_numbers = #tpu.dot_dimension_numbers<[2], [2], [1], [1], [0, 0, 0, 1, 1, 1], [0], [0]>} : vector<2x256x128xf32>, vector<2x1x128xf32>, vector<2x256x1xf32> -> vector<2x256x1xf32>
    %90 = arith.negf %89 : vector<2x256x1xf32>
    %91 = math.exp %90 : vector<2x256x1xf32>
    %cst_34 = arith.constant 1.000000e+00 : f32
    %92 = vector.broadcast %cst_34 : f32 to vector<2x256x1xf32>
    %93 = arith.addf %92, %91 : vector<2x256x1xf32>
    %94 = arith.divf %92, %93 : vector<2x256x1xf32>
    %95 = vector.broadcast %94 : vector<2x256x1xf32> to vector<2x256x128xf32>
    %96 = arith.mulf %68, %95 : vector<2x256x128xf32>
    %97 = arith.truncf %96 : vector<2x256x128xf32> to vector<2x256x128xbf16>
    %c0_35 = arith.constant 0 : index
    %c0_36 = arith.constant 0 : index
    %c0_37 = arith.constant 0 : index
    %98 = vector.load %arg8[%c0_35, %c0_36, %c0_37] : memref<2x256x128xbf16, #tpu.memory_space<vmem>>, vector<2x256x128xbf16>
    tpu.vector_store %arg8[%c0_35, %c0_36, %c0_37], %97 {strides = array<i32>} : memref<2x256x128xbf16, #tpu.memory_space<vmem>>, vector<2x256x128xbf16>,
    return
  }
  func.func @transform_0(%arg0: i32) -> (i32, i32, i32) {
    %c0_i32 = arith.constant 0 : i32
    %c0_i32_0 = arith.constant 0 : i32
    %c0_i32_1 = arith.constant 0 : i32
    return %arg0, %c0_i32, %c0_i32_0 : i32, i32, i32
  }
  func.func @transform_1(%arg0: i32) -> (i32, i32) {
    %c0_i32 = arith.constant 0 : i32
    %c0_i32_0 = arith.constant 0 : i32
    %c0_i32_1 = arith.constant 0 : i32
    return %c0_i32, %c0_i32_0 : i32, i32
  }
  func.func @transform_2(%arg0: i32) -> (i32, i32) {
    %c0_i32 = arith.constant 0 : i32
    %c0_i32_0 = arith.constant 0 : i32
    %c0_i32_1 = arith.constant 0 : i32
    return %c0_i32, %c0_i32_0 : i32, i32
  }
  func.func @transform_3(%arg0: i32) -> (i32, i32) {
    %c0_i32 = arith.constant 0 : i32
    %c0_i32_0 = arith.constant 0 : i32
    %c0_i32_1 = arith.constant 0 : i32
    return %c0_i32, %c0_i32_0 : i32, i32
  }
  func.func @transform_4(%arg0: i32) -> (i32, i32) {
    %c0_i32 = arith.constant 0 : i32
    %c0_i32_0 = arith.constant 0 : i32
    %c0_i32_1 = arith.constant 0 : i32
    return %c0_i32, %c0_i32_0 : i32, i32
  }
  func.func @transform_5(%arg0: i32) -> (i32, i32) {
    %c0_i32 = arith.constant 0 : i32
    %c0_i32_0 = arith.constant 0 : i32
    %c0_i32_1 = arith.constant 0 : i32
    return %c0_i32, %c0_i32_0 : i32, i32
  }
  func.func @transform_6(%arg0: i32) -> (i32, i32) {
    %c0_i32 = arith.constant 0 : i32
    %c0_i32_0 = arith.constant 0 : i32
    %c0_i32_1 = arith.constant 0 : i32
    return %c0_i32, %c0_i32_0 : i32, i32
  }
  func.func @transform_7(%arg0: i32) -> (i32, i32, i32) {
    %c0_i32 = arith.constant 0 : i32
    %c0_i32_0 = arith.constant 0 : i32
    %c0_i32_1 = arith.constant 0 : i32
    return %arg0, %c0_i32, %c0_i32_0 : i32, i32, i32
  }
}

</mosaic_0001>

<llo_original>
// kernel: tpu_custom_call.1
$region0: #{tpu_custom_call.1}
  #allocation0 [shape = 'u32[]', space=smem, size = 0x4, offset = 0x4, fixed_abs, tag = 'smem constant byte address 0x4 - core index']
  #allocation1 [shape = 'u32[72,128]{1,0:T(1,128)}', space=vmem, size = 0x9000, scoped, tag = 'internal scratch']
  %s0 = inlined_call_operand.hbm [shape: bf16[2,256,128], index: 0, kind: input, shape index: {}]
  %s1 = inlined_call_operand.hbm [shape: bf16[128,128], index: 1, kind: input, shape index: {}]
  %s2 = inlined_call_operand.hbm [shape: bf16[128,128], index: 2, kind: input, shape index: {}]
  %s3 = inlined_call_operand.hbm [shape: f32[128,128], index: 3, kind: input, shape index: {}]
  %s4 = inlined_call_operand.hbm [shape: f32[128,128], index: 4, kind: input, shape index: {}]
  %s5 = inlined_call_operand.hbm [shape: f32[128,128], index: 5, kind: input, shape index: {}]
  %s6 = inlined_call_operand.vmem [shape: f32[4,128], index: 6, kind: input, shape index: {}]
  %s7 = inlined_call_operand.hbm [shape: bf16[2,256,128], index: 7, kind: output, shape index: {}]
  %s8 = sld [smem:[#allocation0]]
  $region62: #{tpu_custom_call.1} parent=0
    _
  %s10 = ssub.s32 1, %s8
  %s11 = scalar_select 0, %s10, %s8
  $region1: #{tpu_custom_call.1} parent=0
    #allocation2 [shape = 'u8[131072]{0}', space=vmem, size = 0x20000, scoped, tag = 'input window, operand 0, single buffered']
    #allocation3 [shape = 's32[1]{0}', space=sflag, size = 0x4, scoped, tag = 'scoped memory for tpu_custom_call.1']
    #allocation4 [shape = 's32[1]{0}', space=sflag, size = 0x4, scoped, tag = 'scoped memory for tpu_custom_call.1']
    #allocation5 [shape = 'u8[32768]{0}', space=vmem, size = 0x8000, scoped, tag = 'input window, operand 1, single buffered']
    #allocation6 [shape = 's32[1]{0}', space=sflag, size = 0x4, scoped, tag = 'scoped memory for tpu_custom_call.1']
    #allocation7 [shape = 'u8[32768]{0}', space=vmem, size = 0x8000, scoped, tag = 'input window, operand 2, single buffered']
    #allocation8 [shape = 'u8[65536]{0}', space=vmem, size = 0x10000, scoped, tag = 'input window, operand 3, single buffered']
    #allocation9 [shape = 's32[1]{0}', space=sflag, size = 0x4, scoped, tag = 'scoped memory for tpu_custom_call.1']
    #allocation10 [shape = 'u8[65536]{0}', space=vmem, size = 0x10000, scoped, tag = 'input window, operand 4, single buffered']
    #allocation11 [shape = 'u8[65536]{0}', space=vmem, size = 0x10000, scoped, tag = 'input window, operand 5, single buffered']
    #allocation12 [shape = 's32[1]{0}', space=sflag, size = 0x4, scoped, tag = 'scoped memory for tpu_custom_call.1']
    #allocation13 [shape = 'u8[131072]{0}', space=vmem, size = 0x20000, scoped, tag = 'output window, operand 0, single buffered']
    %12 = vsyncpa [#allocation3], 0
    %13 = vsyncpa [#allocation6], 0
    %14 = vsyncpa [#allocation9], 0
    %15 = vsyncpa [#allocation12], 0
    %16 = vsyncpa [#allocation4], 0
    // Predicated region
    $region2: #{tpu_custom_call.1} parent=1 // pred_check
      _
    $region3: #{tpu_custom_call.1} parent=1 // pred_check_branch
      %18 = sbr.rel (0) target = $region5
    $region4: #{tpu_custom_call.1} parent=1 // pred_region
      %20 = vsyncadd [#allocation3], 0
      %s21 = sshll.u32 %s0, 4
      %s22 = int_to_ptr.hbm [resolvable:$true] %s21
      %s23 = sshll.u32 [#allocation2], 4
      %s24 = int_to_ptr.vmem [resolvable:$true] %s23
      %29 = dma.hbm_to_vmem [thread:$0]  %s22, 4096, %s24, [#allocation3], 64, 64, 4
    $region5: #{tpu_custom_call.1} parent=1 // pred_fallthru
      _
    // Predicated region
    $region6: #{tpu_custom_call.1} parent=1 // pred_check
      _
    $region7: #{tpu_custom_call.1} parent=1 // pred_check_branch
      %31 = sbr.rel (0) target = $region9
    $region8: #{tpu_custom_call.1} parent=1 // pred_region
      %33 = vsyncadd [#allocation6], 0
      %s34 = sshll.u32 %s1, 4
      %s35 = int_to_ptr.hbm [resolvable:$true] %s34
      %s36 = sshll.u32 [#allocation5], 4
      %s37 = int_to_ptr.vmem [resolvable:$true] %s36
      %42 = dma.hbm_to_vmem [thread:$0]  %s35, 1024, %s37, [#allocation6], 64, 64, 4
    $region9: #{tpu_custom_call.1} parent=1 // pred_fallthru
      _
    // Predicated region
    $region10: #{tpu_custom_call.1} parent=1 // pred_check
      _
    $region11: #{tpu_custom_call.1} parent=1 // pred_check_branch
      %44 = sbr.rel (0) target = $region13
    $region12: #{tpu_custom_call.1} parent=1 // pred_region
      %46 = vsyncadd [#allocation6], 0
      %s47 = sshll.u32 %s2, 4
      %s48 = int_to_ptr.hbm [resolvable:$true] %s47
      %s49 = sshll.u32 [#allocation7], 4
      %s50 = int_to_ptr.vmem [resolvable:$true] %s49
      %55 = dma.hbm_to_vmem [thread:$0]  %s48, 1024, %s50, [#allocation6], 64, 64, 4
    $region13: #{tpu_custom_call.1} parent=1 // pred_fallthru
      _
    // Predicated region
    $region14: #{tpu_custom_call.1} parent=1 // pred_check
      _
    $region15: #{tpu_custom_call.1} parent=1 // pred_check_branch
      %57 = sbr.rel (0) target = $region17
    $region16: #{tpu_custom_call.1} parent=1 // pred_region
      %59 = vsyncadd [#allocation9], 0
      %s60 = sshll.u32 %s3, 4
      %s61 = int_to_ptr.hbm [resolvable:$true] %s60
      %s62 = sshll.u32 [#allocation8], 4
      %s63 = int_to_ptr.vmem [resolvable:$true] %s62
      %68 = dma.hbm_to_vmem [thread:$0]  %s61, 2048, %s63, [#allocation9], 128, 128, 8
    $region17: #{tpu_custom_call.1} parent=1 // pred_fallthru
      _
    // Predicated region
    $region18: #{tpu_custom_call.1} parent=1 // pred_check
      _
    $region19: #{tpu_custom_call.1} parent=1 // pred_check_branch
      %70 = sbr.rel (0) target = $region21
    $region20: #{tpu_custom_call.1} parent=1 // pred_region
      %72 = vsyncadd [#allocation9], 0
      %s73 = sshll.u32 %s4, 4
      %s74 = int_to_ptr.hbm [resolvable:$true] %s73
      %s75 = sshll.u32 [#allocation10], 4
      %s76 = int_to_ptr.vmem [resolvable:$true] %s75
      %81 = dma.hbm_to_vmem [thread:$0]  %s74, 2048, %s76, [#allocation9], 128, 128, 8
    $region21: #{tpu_custom_call.1} parent=1 // pred_fallthru
      _
    // Predicated region
    $region22: #{tpu_custom_call.1} parent=1 // pred_check
      _
    $region23: #{tpu_custom_call.1} parent=1 // pred_check_branch
      %83 = sbr.rel (0) target = $region25
    $region24: #{tpu_custom_call.1} parent=1 // pred_region
      %85 = vsyncadd [#allocation12], 0
      %s86 = sshll.u32 %s5, 4
      %s87 = int_to_ptr.hbm [resolvable:$true] %s86
      %s88 = sshll.u32 [#allocation11], 4
      %s89 = int_to_ptr.vmem [resolvable:$true] %s88
      %94 = dma.hbm_to_vmem [thread:$0]  %s87, 2048, %s89, [#allocation12], 128, 128, 8
    $region25: #{tpu_custom_call.1} parent=1 // pred_fallthru
      _
    // Predicated region
    $region26: #{tpu_custom_call.1} parent=1 // pred_check
      _
    $region27: #{tpu_custom_call.1} parent=1 // pred_check_branch
      %96 = sbr.rel (0) target = $region29
    $region28: #{tpu_custom_call.1} parent=1 // pred_region
      _
    $region29: #{tpu_custom_call.1} parent=1 // pred_fallthru
      _
    // Predicated region
    $region30: #{tpu_custom_call.1} parent=1 // pred_check
      _
    $region31: #{tpu_custom_call.1} parent=1 // pred_check_branch
      %98 = sbr.rel (0) target = $region33
    $region32: #{tpu_custom_call.1} parent=1 // pred_region
      %100 = dma.done [#allocation3], 4096
    $region33: #{tpu_custom_call.1} parent=1 // pred_fallthru
      _
    // Predicated region
    $region34: #{tpu_custom_call.1} parent=1 // pred_check
      _
    $region35: #{tpu_custom_call.1} parent=1 // pred_check_branch
      %102 = sbr.rel (0) target = $region37
    $region36: #{tpu_custom_call.1} parent=1 // pred_region
      %104 = dma.done [#allocation6], 1024
    $region37: #{tpu_custom_call.1} parent=1 // pred_fallthru
      _
    // Predicated region
    $region38: #{tpu_custom_call.1} parent=1 // pred_check
      _
    $region39: #{tpu_custom_call.1} parent=1 // pred_check_branch
      %106 = sbr.rel (0) target = $region41
    $region40: #{tpu_custom_call.1} parent=1 // pred_region
      %108 = dma.done [#allocation6], 1024
    $region41: #{tpu_custom_call.1} parent=1 // pred_fallthru
      _
    // Predicated region
    $region42: #{tpu_custom_call.1} parent=1 // pred_check
      _
    $region43: #{tpu_custom_call.1} parent=1 // pred_check_branch
      %110 = sbr.rel (0) target = $region45
    $region44: #{tpu_custom_call.1} parent=1 // pred_region
      %112 = dma.done [#allocation9], 2048
    $region45: #{tpu_custom_call.1} parent=1 // pred_fallthru
      _
    // Predicated region
    $region46: #{tpu_custom_call.1} parent=1 // pred_check
      _
    $region47: #{tpu_custom_call.1} parent=1 // pred_check_branch
      %114 = sbr.rel (0) target = $region49
    $region48: #{tpu_custom_call.1} parent=1 // pred_region
      %116 = dma.done [#allocation9], 2048
    $region49: #{tpu_custom_call.1} parent=1 // pred_fallthru
      _
    // Predicated region
    $region50: #{tpu_custom_call.1} parent=1 // pred_check
      _
    $region51: #{tpu_custom_call.1} parent=1 // pred_check_branch
      %118 = sbr.rel (0) target = $region53
    $region52: #{tpu_custom_call.1} parent=1 // pred_region
      %120 = dma.done [#allocation12], 2048
    $region53: #{tpu_custom_call.1} parent=1 // pred_fallthru
      _
    %v121 = vld [vmem:[#allocation2] sm:$0xf]
    %v122 = vld [vmem:[#allocation2 + $0x4] sm:$0xf]
    %v123 = vld [vmem:[#allocation2 + $0x8] sm:$0xf]
    %v124 = vld [vmem:[#allocation2 + $0xc] sm:$0xf]
    %v125 = vld [vmem:[#allocation2 + $0x10] sm:$0xf]
    %v126 = vld [vmem:[#allocation2 + $0x14] sm:$0xf]
    %v127 = vld [vmem:[#allocation2 + $0x18] sm:$0xf]
    %v128 = vld [vmem:[#allocation2 + $0x1c] sm:$0xf]
    %v129 = vld [vmem:[#allocation2 + $0x20] sm:$0xf]
    %v130 = vld [vmem:[#allocation2 + $0x24] sm:$0xf]
    %v131 = vld [vmem:[#allocation2 + $0x28] sm:$0xf]
    %v132 = vld [vmem:[#allocation2 + $0x2c] sm:$0xf]
    %v133 = vld [vmem:[#allocation2 + $0x30] sm:$0xf]
    %v134 = vld [vmem:[#allocation2 + $0x34] sm:$0xf]
    %v135 = vld [vmem:[#allocation2 + $0x38] sm:$0xf]
    %v136 = vld [vmem:[#allocation2 + $0x3c] sm:$0xf]
    %v137 = vld [vmem:[#allocation2 + $0x40] sm:$0xf]
    %v138 = vld [vmem:[#allocation2 + $0x44] sm:$0xf]
    %v139 = vld [vmem:[#allocation2 + $0x48] sm:$0xf]
    %v140 = vld [vmem:[#allocation2 + $0x4c] sm:$0xf]
    %v141 = vld [vmem:[#allocation2 + $0x50] sm:$0xf]
    %v142 = vld [vmem:[#allocation2 + $0x54] sm:$0xf]
    %v143 = vld [vmem:[#allocation2 + $0x58] sm:$0xf]
    %v144 = vld [vmem:[#allocation2 + $0x5c] sm:$0xf]
    %v145 = vld [vmem:[#allocation2 + $0x60] sm:$0xf]
    %v146 = vld [vmem:[#allocation2 + $0x64] sm:$0xf]
    %v147 = vld [vmem:[#allocation2 + $0x68] sm:$0xf]
    %v148 = vld [vmem:[#allocation2 + $0x6c] sm:$0xf]
    %v149 = vld [vmem:[#allocation2 + $0x70] sm:$0xf]
    %v150 = vld [vmem:[#allocation2 + $0x74] sm:$0xf]
    %v151 = vld [vmem:[#allocation2 + $0x78] sm:$0xf]
    %v152 = vld [vmem:[#allocation2 + $0x7c] sm:$0xf]
    %v153 = vld [vmem:[#allocation2 + $0x80] sm:$0xf]
    %v154 = vld [vmem:[#allocation2 + $0x84] sm:$0xf]
    %v155 = vld [vmem:[#allocation2 + $0x88] sm:$0xf]
    %v156 = vld [vmem:[#allocation2 + $0x8c] sm:$0xf]
    %v157 = vld [vmem:[#allocation2 + $0x90] sm:$0xf]
    %v158 = vld [vmem:[#allocation2 + $0x94] sm:$0xf]
    %v159 = vld [vmem:[#allocation2 + $0x98] sm:$0xf]
    %v160 = vld [vmem:[#allocation2 + $0x9c] sm:$0xf]
    %v161 = vld [vmem:[#allocation2 + $0xa0] sm:$0xf]
    %v162 = vld [vmem:[#allocation2 + $0xa4] sm:$0xf]
    %v163 = vld [vmem:[#allocation2 + $0xa8] sm:$0xf]
    %v164 = vld [vmem:[#allocation2 + $0xac] sm:$0xf]
    %v165 = vld [vmem:[#allocation2 + $0xb0] sm:$0xf]
    %v166 = vld [vmem:[#allocation2 + $0xb4] sm:$0xf]
    %v167 = vld [vmem:[#allocation2 + $0xb8] sm:$0xf]
    %v168 = vld [vmem:[#allocation2 + $0xbc] sm:$0xf]
    %v169 = vld [vmem:[#allocation2 + $0xc0] sm:$0xf]
    %v170 = vld [vmem:[#allocation2 + $0xc4] sm:$0xf]
    %v171 = vld [vmem:[#allocation2 + $0xc8] sm:$0xf]
    %v172 = vld [vmem:[#allocation2 + $0xcc] sm:$0xf]
    %v173 = vld [vmem:[#allocation2 + $0xd0] sm:$0xf]
    %v174 = vld [vmem:[#allocation2 + $0xd4] sm:$0xf]
    %v175 = vld [vmem:[#allocation2 + $0xd8] sm:$0xf]
    %v176 = vld [vmem:[#allocation2 + $0xdc] sm:$0xf]
    %v177 = vld [vmem:[#allocation2 + $0xe0] sm:$0xf]
    %v178 = vld [vmem:[#allocation2 + $0xe4] sm:$0xf]
    %v179 = vld [vmem:[#allocation2 + $0xe8] sm:$0xf]
    %v180 = vld [vmem:[#allocation2 + $0xec] sm:$0xf]
    %v181 = vld [vmem:[#allocation2 + $0xf0] sm:$0xf]
    %v182 = vld [vmem:[#allocation2 + $0xf4] sm:$0xf]
    %v183 = vld [vmem:[#allocation2 + $0xf8] sm:$0xf]
    %v184 = vld [vmem:[#allocation2 + $0xfc] sm:$0xf]
    %v185 = vld [vmem:[#allocation5] sm:$0xf]
    %v186 = vld [vmem:[#allocation5 + $0x4] sm:$0xf]
    %v187 = vld [vmem:[#allocation5 + $0x8] sm:$0xf]
    %v188 = vld [vmem:[#allocation5 + $0xc] sm:$0xf]
    %v189 = vld [vmem:[#allocation5 + $0x10] sm:$0xf]
    %v190 = vld [vmem:[#allocation5 + $0x14] sm:$0xf]
    %v191 = vld [vmem:[#allocation5 + $0x18] sm:$0xf]
    %v192 = vld [vmem:[#allocation5 + $0x1c] sm:$0xf]
    %v193 = vld [vmem:[#allocation5 + $0x20] sm:$0xf]
    %v194 = vld [vmem:[#allocation5 + $0x24] sm:$0xf]
    %v195 = vld [vmem:[#allocation5 + $0x28] sm:$0xf]
    %v196 = vld [vmem:[#allocation5 + $0x2c] sm:$0xf]
    %v197 = vld [vmem:[#allocation5 + $0x30] sm:$0xf]
    %v198 = vld [vmem:[#allocation5 + $0x34] sm:$0xf]
    %v199 = vld [vmem:[#allocation5 + $0x38] sm:$0xf]
    %v200 = vld [vmem:[#allocation5 + $0x3c] sm:$0xf]
    %v265 = vunpack.c.l.b16 %v121
    %v266 = vunpack.c.l.b16 %v122
    %v267 = vunpack.c.l.b16 %v123
    %v268 = vunpack.c.l.b16 %v124
    %v269 = vunpack.c.l.b16 %v125
    %v270 = vunpack.c.l.b16 %v126
    %v271 = vunpack.c.l.b16 %v127
    %v272 = vunpack.c.l.b16 %v128
    %v273 = vunpack.c.l.b16 %v129
    %v274 = vunpack.c.l.b16 %v130
    %v275 = vunpack.c.l.b16 %v131
    %v276 = vunpack.c.l.b16 %v132
    %v277 = vunpack.c.l.b16 %v133
    %v278 = vunpack.c.l.b16 %v134
    %v279 = vunpack.c.l.b16 %v135
    %v280 = vunpack.c.l.b16 %v136
    %v281 = vunpack.c.l.b16 %v137
    %v282 = vunpack.c.l.b16 %v138
    %v283 = vunpack.c.l.b16 %v139
    %v284 = vunpack.c.l.b16 %v140
    %v285 = vunpack.c.l.b16 %v141
    %v286 = vunpack.c.l.b16 %v142
    %v287 = vunpack.c.l.b16 %v143
    %v288 = vunpack.c.l.b16 %v144
    %v289 = vunpack.c.l.b16 %v145
    %v290 = vunpack.c.l.b16 %v146
    %v291 = vunpack.c.l.b16 %v147
    %v292 = vunpack.c.l.b16 %v148
    %v293 = vunpack.c.l.b16 %v149
    %v294 = vunpack.c.l.b16 %v150
    %v295 = vunpack.c.l.b16 %v151
    %v296 = vunpack.c.l.b16 %v152
    %v297 = vunpack.c.l.b16 %v153
    %v298 = vunpack.c.l.b16 %v154
    %v299 = vunpack.c.l.b16 %v155
    %v300 = vunpack.c.l.b16 %v156
    %v301 = vunpack.c.l.b16 %v157
    %v302 = vunpack.c.l.b16 %v158
    %v303 = vunpack.c.l.b16 %v159
    %v304 = vunpack.c.l.b16 %v160
    %v305 = vunpack.c.l.b16 %v161
    %v306 = vunpack.c.l.b16 %v162
    %v307 = vunpack.c.l.b16 %v163
    %v308 = vunpack.c.l.b16 %v164
    %v309 = vunpack.c.l.b16 %v165
    %v310 = vunpack.c.l.b16 %v166
    %v311 = vunpack.c.l.b16 %v167
    %v312 = vunpack.c.l.b16 %v168
    %v313 = vunpack.c.l.b16 %v169
    %v314 = vunpack.c.l.b16 %v170
    %v315 = vunpack.c.l.b16 %v171
    %v316 = vunpack.c.l.b16 %v172
    %v317 = vunpack.c.l.b16 %v173
    %v318 = vunpack.c.l.b16 %v174
    %v319 = vunpack.c.l.b16 %v175
    %v320 = vunpack.c.l.b16 %v176
    %v321 = vunpack.c.l.b16 %v177
    %v322 = vunpack.c.l.b16 %v178
    %v323 = vunpack.c.l.b16 %v179
    %v324 = vunpack.c.l.b16 %v180
    %v325 = vunpack.c.l.b16 %v181
    %v326 = vunpack.c.l.b16 %v182
    %v327 = vunpack.c.l.b16 %v183
    %v328 = vunpack.c.l.b16 %v184
    %v329 = vpack.c.b16 %v266, %v265
    %v330 = vpack.c.b16 %v268, %v267
    %v331 = vpack.c.b16 %v270, %v269
    %v332 = vpack.c.b16 %v272, %v271
    %v333 = vpack.c.b16 %v274, %v273
    %v334 = vpack.c.b16 %v276, %v275
    %v335 = vpack.c.b16 %v278, %v277
    %v336 = vpack.c.b16 %v280, %v279
    %v337 = vpack.c.b16 %v282, %v281
    %v338 = vpack.c.b16 %v284, %v283
    %v339 = vpack.c.b16 %v286, %v285
    %v340 = vpack.c.b16 %v288, %v287
    %v341 = vpack.c.b16 %v290, %v289
    %v342 = vpack.c.b16 %v292, %v291
    %v343 = vpack.c.b16 %v294, %v293
    %v344 = vpack.c.b16 %v296, %v295
    %v345 = vpack.c.b16 %v298, %v297
    %v346 = vpack.c.b16 %v300, %v299
    %v347 = vpack.c.b16 %v302, %v301
    %v348 = vpack.c.b16 %v304, %v303
    %v349 = vpack.c.b16 %v306, %v305
    %v350 = vpack.c.b16 %v308, %v307
    %v351 = vpack.c.b16 %v310, %v309
    %v352 = vpack.c.b16 %v312, %v311
    %v353 = vpack.c.b16 %v314, %v313
    %v354 = vpack.c.b16 %v316, %v315
    %v355 = vpack.c.b16 %v318, %v317
    %v356 = vpack.c.b16 %v320, %v319
    %v357 = vpack.c.b16 %v322, %v321
    %v358 = vpack.c.b16 %v324, %v323
    %v359 = vpack.c.b16 %v326, %v325
    %v360 = vpack.c.b16 %v328, %v327
    %v409 = vunpack.c.l.b16 %v185
    %v410 = vunpack.c.l.b16 %v186
    %v411 = vunpack.c.l.b16 %v187
    %v412 = vunpack.c.l.b16 %v188
    %v413 = vunpack.c.l.b16 %v189
    %v414 = vunpack.c.l.b16 %v190
    %v415 = vunpack.c.l.b16 %v191
    %v416 = vunpack.c.l.b16 %v192
    %v417 = vunpack.c.l.b16 %v193
    %v418 = vunpack.c.l.b16 %v194
    %v419 = vunpack.c.l.b16 %v195
    %v420 = vunpack.c.l.b16 %v196
    %v421 = vunpack.c.l.b16 %v197
    %v422 = vunpack.c.l.b16 %v198
    %v423 = vunpack.c.l.b16 %v199
    %v424 = vunpack.c.l.b16 %v200
    %v425 = vpack.c.b16 %v410, %v409
    %v426 = vpack.c.b16 %v412, %v411
    %v427 = vpack.c.b16 %v414, %v413
    %v428 = vpack.c.b16 %v416, %v415
    %v429 = vpack.c.b16 %v418, %v417
    %v430 = vpack.c.b16 %v420, %v419
    %v431 = vpack.c.b16 %v422, %v421
    %v432 = vpack.c.b16 %v424, %v423
    %441 = vmatpush.bf16.msra.mxu0 %v432
    %442 = vmatpush.bf16.msra.mxu0 %v431
    %443 = vmatpush.bf16.msra.mxu0 %v430
    %444 = vmatpush.bf16.msra.mxu0 %v429
    %445 = vmatpush.bf16.msra.mxu0 %v428
    %446 = vmatpush.bf16.msra.mxu0 %v427
    %447 = vmatpush.bf16.msra.mxu0 %v426
    %448 = vmatpush.bf16.msra.mxu0 %v425
    %449 = vmatmul.bf16.gmra.mxu0 %v329
    %v450 = vpop.f32.mrf.mxu0
    %v451 = vadd.f32 0.0, %v450
    %v452 = vpop.f32.mrf.mxu0
    %v453 = vadd.f32 0.0, %v452
    %454 = vmatmul.bf16.gmra.mxu0 %v330
    %v455 = vpop.f32.mrf.mxu0
    %v456 = vadd.f32 0.0, %v455
    %v457 = vpop.f32.mrf.mxu0
    %v458 = vadd.f32 0.0, %v457
    %459 = vmatmul.bf16.gmra.mxu0 %v331
    %v460 = vpop.f32.mrf.mxu0
    %v461 = vadd.f32 0.0, %v460
    %v462 = vpop.f32.mrf.mxu0
    %v463 = vadd.f32 0.0, %v462
    %464 = vmatmul.bf16.gmra.mxu0 %v332
    %v465 = vpop.f32.mrf.mxu0
    %v466 = vadd.f32 0.0, %v465
    %v467 = vpop.f32.mrf.mxu0
    %v468 = vadd.f32 0.0, %v467
    %469 = vmatmul.bf16.gmra.mxu0 %v333
    %v470 = vpop.f32.mrf.mxu0
    %v471 = vadd.f32 0.0, %v470
    %v472 = vpop.f32.mrf.mxu0
    %v473 = vadd.f32 0.0, %v472
    %474 = vmatmul.bf16.gmra.mxu0 %v334
    %v475 = vpop.f32.mrf.mxu0
    %v476 = vadd.f32 0.0, %v475
    %v477 = vpop.f32.mrf.mxu0
    %v478 = vadd.f32 0.0, %v477
    %479 = vmatmul.bf16.gmra.mxu0 %v335
    %v480 = vpop.f32.mrf.mxu0
    %v481 = vadd.f32 0.0, %v480
    %v482 = vpop.f32.mrf.mxu0
    %v483 = vadd.f32 0.0, %v482
    %484 = vmatmul.bf16.gmra.mxu0 %v336
    %v485 = vpop.f32.mrf.mxu0
    %v486 = vadd.f32 0.0, %v485
    %v487 = vpop.f32.mrf.mxu0
    %v488 = vadd.f32 0.0, %v487
    %489 = vmatmul.bf16.gmra.mxu0 %v337
    %v490 = vpop.f32.mrf.mxu0
    %v491 = vadd.f32 0.0, %v490
    %v492 = vpop.f32.mrf.mxu0
    %v493 = vadd.f32 0.0, %v492
    %494 = vmatmul.bf16.gmra.mxu0 %v338
    %v495 = vpop.f32.mrf.mxu0
    %v496 = vadd.f32 0.0, %v495
    %v497 = vpop.f32.mrf.mxu0
    %v498 = vadd.f32 0.0, %v497
    %499 = vmatmul.bf16.gmra.mxu0 %v339
    %v500 = vpop.f32.mrf.mxu0
    %v501 = vadd.f32 0.0, %v500
    %v502 = vpop.f32.mrf.mxu0
    %v503 = vadd.f32 0.0, %v502
    %504 = vmatmul.bf16.gmra.mxu0 %v340
    %v505 = vpop.f32.mrf.mxu0
    %v506 = vadd.f32 0.0, %v505
    %v507 = vpop.f32.mrf.mxu0
    %v508 = vadd.f32 0.0, %v507
    %509 = vmatmul.bf16.gmra.mxu0 %v341
    %v510 = vpop.f32.mrf.mxu0
    %v511 = vadd.f32 0.0, %v510
    %v512 = vpop.f32.mrf.mxu0
    %v513 = vadd.f32 0.0, %v512
    %514 = vmatmul.bf16.gmra.mxu0 %v342
    %v515 = vpop.f32.mrf.mxu0
    %v516 = vadd.f32 0.0, %v515
    %v517 = vpop.f32.mrf.mxu0
    %v518 = vadd.f32 0.0, %v517
    %519 = vmatmul.bf16.gmra.mxu0 %v343
    %v520 = vpop.f32.mrf.mxu0
    %v521 = vadd.f32 0.0, %v520
    %v522 = vpop.f32.mrf.mxu0
    %v523 = vadd.f32 0.0, %v522
    %524 = vmatmul.bf16.gmra.mxu0 %v344
    %v525 = vpop.f32.mrf.mxu0
    %v526 = vadd.f32 0.0, %v525
    %v527 = vpop.f32.mrf.mxu0
    %v528 = vadd.f32 0.0, %v527
    %529 = vmatmul.bf16.gmra.mxu0 %v345
    %v530 = vpop.f32.mrf.mxu0
    %v531 = vadd.f32 0.0, %v530
    %v532 = vpop.f32.mrf.mxu0
    %v533 = vadd.f32 0.0, %v532
    %534 = vmatmul.bf16.gmra.mxu0 %v346
    %v535 = vpop.f32.mrf.mxu0
    %v536 = vadd.f32 0.0, %v535
    %v537 = vpop.f32.mrf.mxu0
    %v538 = vadd.f32 0.0, %v537
    %539 = vmatmul.bf16.gmra.mxu0 %v347
    %v540 = vpop.f32.mrf.mxu0
    %v541 = vadd.f32 0.0, %v540
    %v542 = vpop.f32.mrf.mxu0
    %v543 = vadd.f32 0.0, %v542
    %544 = vmatmul.bf16.gmra.mxu0 %v348
    %v545 = vpop.f32.mrf.mxu0
    %v546 = vadd.f32 0.0, %v545
    %v547 = vpop.f32.mrf.mxu0
    %v548 = vadd.f32 0.0, %v547
    %549 = vmatmul.bf16.gmra.mxu0 %v349
    %v550 = vpop.f32.mrf.mxu0
    %v551 = vadd.f32 0.0, %v550
    %v552 = vpop.f32.mrf.mxu0
    %v553 = vadd.f32 0.0, %v552
    %554 = vmatmul.bf16.gmra.mxu0 %v350
    %v555 = vpop.f32.mrf.mxu0
    %v556 = vadd.f32 0.0, %v555
    %v557 = vpop.f32.mrf.mxu0
    %v558 = vadd.f32 0.0, %v557
    %559 = vmatmul.bf16.gmra.mxu0 %v351
    %v560 = vpop.f32.mrf.mxu0
    %v561 = vadd.f32 0.0, %v560
    %v562 = vpop.f32.mrf.mxu0
    %v563 = vadd.f32 0.0, %v562
    %564 = vmatmul.bf16.gmra.mxu0 %v352
    %v565 = vpop.f32.mrf.mxu0
    %v566 = vadd.f32 0.0, %v565
    %v567 = vpop.f32.mrf.mxu0
    %v568 = vadd.f32 0.0, %v567
    %569 = vmatmul.bf16.gmra.mxu0 %v353
    %v570 = vpop.f32.mrf.mxu0
    %v571 = vadd.f32 0.0, %v570
    %v572 = vpop.f32.mrf.mxu0
    %v573 = vadd.f32 0.0, %v572
    %574 = vmatmul.bf16.gmra.mxu0 %v354
    %v575 = vpop.f32.mrf.mxu0
    %v576 = vadd.f32 0.0, %v575
    %v577 = vpop.f32.mrf.mxu0
    %v578 = vadd.f32 0.0, %v577
    %579 = vmatmul.bf16.gmra.mxu0 %v355
    %v580 = vpop.f32.mrf.mxu0
    %v581 = vadd.f32 0.0, %v580
    %v582 = vpop.f32.mrf.mxu0
    %v583 = vadd.f32 0.0, %v582
    %584 = vmatmul.bf16.gmra.mxu0 %v356
    %v585 = vpop.f32.mrf.mxu0
    %v586 = vadd.f32 0.0, %v585
    %v587 = vpop.f32.mrf.mxu0
    %v588 = vadd.f32 0.0, %v587
    %589 = vmatmul.bf16.gmra.mxu0 %v357
    %v590 = vpop.f32.mrf.mxu0
    %v591 = vadd.f32 0.0, %v590
    %v592 = vpop.f32.mrf.mxu0
    %v593 = vadd.f32 0.0, %v592
    %594 = vmatmul.bf16.gmra.mxu0 %v358
    %v595 = vpop.f32.mrf.mxu0
    %v596 = vadd.f32 0.0, %v595
    %v597 = vpop.f32.mrf.mxu0
    %v598 = vadd.f32 0.0, %v597
    %599 = vmatmul.bf16.gmra.mxu0 %v359
    %v600 = vpop.f32.mrf.mxu0
    %v601 = vadd.f32 0.0, %v600
    %v602 = vpop.f32.mrf.mxu0
    %v603 = vadd.f32 0.0, %v602
    %604 = vmatmul.bf16.gmra.mxu0 %v360
    %v605 = vpop.f32.mrf.mxu0
    %v606 = vadd.f32 0.0, %v605
    %v607 = vpop.f32.mrf.mxu0
    %v608 = vadd.f32 0.0, %v607
    %609 = vdwg.mxu0
    %vm610 = vcmask 269568
    %v611 = vsel %vm610, %v451, -inf
    %v612 = vsel %vm610, %v453, -inf
    %v613 = vsel %vm610, %v456, -inf
    %v614 = vmax.f32 %v611, %v613
    %v615 = vsel %vm610, %v458, -inf
    %v616 = vmax.f32 %v612, %v615
    %v617 = vsel %vm610, %v461, -inf
    %v618 = vmax.f32 %v614, %v617
    %v619 = vsel %vm610, %v463, -inf
    %v620 = vmax.f32 %v616, %v619
    %v621 = vsel %vm610, %v466, -inf
    %v622 = vmax.f32 %v618, %v621
    %v623 = vsel %vm610, %v468, -inf
    %v624 = vmax.f32 %v620, %v623
    %v625 = vsel %vm610, %v471, -inf
    %v626 = vmax.f32 %v622, %v625
    %v627 = vsel %vm610, %v473, -inf
    %v628 = vmax.f32 %v624, %v627
    %v629 = vsel %vm610, %v476, -inf
    %v630 = vmax.f32 %v626, %v629
    %v631 = vsel %vm610, %v478, -inf
    %v632 = vmax.f32 %v628, %v631
    %v633 = vsel %vm610, %v481, -inf
    %v634 = vmax.f32 %v630, %v633
    %v635 = vsel %vm610, %v483, -inf
    %v636 = vmax.f32 %v632, %v635
    %v637 = vsel %vm610, %v486, -inf
    %v638 = vmax.f32 %v634, %v637
    %v639 = vsel %vm610, %v488, -inf
    %v640 = vmax.f32 %v636, %v639
    %v641 = vsel %vm610, %v491, -inf
    %v642 = vmax.f32 %v638, %v641
    %v643 = vsel %vm610, %v493, -inf
    %v644 = vmax.f32 %v640, %v643
    %v645 = vsel %vm610, %v496, -inf
    %v646 = vmax.f32 %v642, %v645
    %v647 = vsel %vm610, %v498, -inf
    %v648 = vmax.f32 %v644, %v647
    %v649 = vsel %vm610, %v501, -inf
    %v650 = vmax.f32 %v646, %v649
    %v651 = vsel %vm610, %v503, -inf
    %v652 = vmax.f32 %v648, %v651
    %v653 = vsel %vm610, %v506, -inf
    %v654 = vmax.f32 %v650, %v653
    %v655 = vsel %vm610, %v508, -inf
    %v656 = vmax.f32 %v652, %v655
    %v657 = vsel %vm610, %v511, -inf
    %v658 = vmax.f32 %v654, %v657
    %v659 = vsel %vm610, %v513, -inf
    %v660 = vmax.f32 %v656, %v659
    %v661 = vsel %vm610, %v516, -inf
    %v662 = vmax.f32 %v658, %v661
    %v663 = vsel %vm610, %v518, -inf
    %v664 = vmax.f32 %v660, %v663
    %v665 = vsel %vm610, %v521, -inf
    %v666 = vmax.f32 %v662, %v665
    %v667 = vsel %vm610, %v523, -inf
    %v668 = vmax.f32 %v664, %v667
    %v669 = vsel %vm610, %v526, -inf
    %v670 = vmax.f32 %v666, %v669
    %v671 = vsel %vm610, %v528, -inf
    %v672 = vmax.f32 %v668, %v671
    %v673 = vmax.f32 %v670, %v672
    %v674 = vrot.slane %v673, 4
    %v675 = vmax.f32 %v673, %v674
    %v676 = vrot.slane %v675, 2
    %v677 = vmax.f32 %v675, %v676
    %v678 = vrot.slane %v677, 1
    %v679 = vmax.f32 %v677, %v678
    %v680 = vsel %vm610, %v531, -inf
    %v681 = vsel %vm610, %v533, -inf
    %v682 = vsel %vm610, %v536, -inf
    %v683 = vmax.f32 %v680, %v682
    %v684 = vsel %vm610, %v538, -inf
    %v685 = vmax.f32 %v681, %v684
    %v686 = vsel %vm610, %v541, -inf
    %v687 = vmax.f32 %v683, %v686
    %v688 = vsel %vm610, %v543, -inf
    %v689 = vmax.f32 %v685, %v688
    %v690 = vsel %vm610, %v546, -inf
    %v691 = vmax.f32 %v687, %v690
    %v692 = vsel %vm610, %v548, -inf
    %v693 = vmax.f32 %v689, %v692
    %v694 = vsel %vm610, %v551, -inf
    %v695 = vmax.f32 %v691, %v694
    %v696 = vsel %vm610, %v553, -inf
    %v697 = vmax.f32 %v693, %v696
    %v698 = vsel %vm610, %v556, -inf
    %v699 = vmax.f32 %v695, %v698
    %v700 = vsel %vm610, %v558, -inf
    %v701 = vmax.f32 %v697, %v700
    %v702 = vsel %vm610, %v561, -inf
    %v703 = vmax.f32 %v699, %v702
    %v704 = vsel %vm610, %v563, -inf
    %v705 = vmax.f32 %v701, %v704
    %v706 = vsel %vm610, %v566, -inf
    %v707 = vmax.f32 %v703, %v706
    %v708 = vsel %vm610, %v568, -inf
    %v709 = vmax.f32 %v705, %v708
    %v710 = vsel %vm610, %v571, -inf
    %v711 = vmax.f32 %v707, %v710
    %v712 = vsel %vm610, %v573, -inf
    %v713 = vmax.f32 %v709, %v712
    %v714 = vsel %vm610, %v576, -inf
    %v715 = vmax.f32 %v711, %v714
    %v716 = vsel %vm610, %v578, -inf
    %v717 = vmax.f32 %v713, %v716
    %v718 = vsel %vm610, %v581, -inf
    %v719 = vmax.f32 %v715, %v718
    %v720 = vsel %vm610, %v583, -inf
    %v721 = vmax.f32 %v717, %v720
    %v722 = vsel %vm610, %v586, -inf
    %v723 = vmax.f32 %v719, %v722
    %v724 = vsel %vm610, %v588, -inf
    %v725 = vmax.f32 %v721, %v724
    %v726 = vsel %vm610, %v591, -inf
    %v727 = vmax.f32 %v723, %v726
    %v728 = vsel %vm610, %v593, -inf
    %v729 = vmax.f32 %v725, %v728
    %v730 = vsel %vm610, %v596, -inf
    %v731 = vmax.f32 %v727, %v730
    %v732 = vsel %vm610, %v598, -inf
    %v733 = vmax.f32 %v729, %v732
    %v734 = vsel %vm610, %v601, -inf
    %v735 = vmax.f32 %v731, %v734
    %v736 = vsel %vm610, %v603, -inf
    %v737 = vmax.f32 %v733, %v736
    %v738 = vsel %vm610, %v606, -inf
    %v739 = vmax.f32 %v735, %v738
    %v740 = vsel %vm610, %v608, -inf
    %v741 = vmax.f32 %v737, %v740
    %v742 = vmax.f32 %v739, %v741
    %v743 = vrot.slane %v742, 4
    %v744 = vmax.f32 %v742, %v743
    %v745 = vrot.slane %v744, 2
    %v746 = vmax.f32 %v744, %v745
    %v747 = vrot.slane %v746, 1
    %v748 = vmax.f32 %v746, %v747
    %v749 = vsub.f32 %v451, %v679
    %v750 = vsub.f32 %v453, %v679
    %v751 = vsub.f32 %v456, %v679
    %v752 = vsub.f32 %v458, %v679
    %v753 = vsub.f32 %v461, %v679
    %v754 = vsub.f32 %v463, %v679
    %v755 = vsub.f32 %v466, %v679
    %v756 = vsub.f32 %v468, %v679
    %v757 = vsub.f32 %v471, %v679
    %v758 = vsub.f32 %v473, %v679
    %v759 = vsub.f32 %v476, %v679
    %v760 = vsub.f32 %v478, %v679
    %v761 = vsub.f32 %v481, %v679
    %v762 = vsub.f32 %v483, %v679
    %v763 = vsub.f32 %v486, %v679
    %v764 = vsub.f32 %v488, %v679
    %v765 = vsub.f32 %v491, %v679
    %v766 = vsub.f32 %v493, %v679
    %v767 = vsub.f32 %v496, %v679
    %v768 = vsub.f32 %v498, %v679
    %v769 = vsub.f32 %v501, %v679
    %v770 = vsub.f32 %v503, %v679
    %v771 = vsub.f32 %v506, %v679
    %v772 = vsub.f32 %v508, %v679
    %v773 = vsub.f32 %v511, %v679
    %v774 = vsub.f32 %v513, %v679
    %v775 = vsub.f32 %v516, %v679
    %v776 = vsub.f32 %v518, %v679
    %v777 = vsub.f32 %v521, %v679
    %v778 = vsub.f32 %v523, %v679
    %v779 = vsub.f32 %v526, %v679
    %v780 = vsub.f32 %v528, %v679
    %v781 = vsub.f32 %v531, %v748
    %v782 = vsub.f32 %v533, %v748
    %v783 = vsub.f32 %v536, %v748
    %v784 = vsub.f32 %v538, %v748
    %v785 = vsub.f32 %v541, %v748
    %v786 = vsub.f32 %v543, %v748
    %v787 = vsub.f32 %v546, %v748
    %v788 = vsub.f32 %v548, %v748
    %v789 = vsub.f32 %v551, %v748
    %v790 = vsub.f32 %v553, %v748
    %v791 = vsub.f32 %v556, %v748
    %v792 = vsub.f32 %v558, %v748
    %v793 = vsub.f32 %v561, %v748
    %v794 = vsub.f32 %v563, %v748
    %v795 = vsub.f32 %v566, %v748
    %v796 = vsub.f32 %v568, %v748
    %v797 = vsub.f32 %v571, %v748
    %v798 = vsub.f32 %v573, %v748
    %v799 = vsub.f32 %v576, %v748
    %v800 = vsub.f32 %v578, %v748
    %v801 = vsub.f32 %v581, %v748
    %v802 = vsub.f32 %v583, %v748
    %v803 = vsub.f32 %v586, %v748
    %v804 = vsub.f32 %v588, %v748
    %v805 = vsub.f32 %v591, %v748
    %v806 = vsub.f32 %v593, %v748
    %v807 = vsub.f32 %v596, %v748
    %v808 = vsub.f32 %v598, %v748
    %v809 = vsub.f32 %v601, %v748
    %v810 = vsub.f32 %v603, %v748
    %v811 = vsub.f32 %v606, %v748
    %v812 = vsub.f32 %v608, %v748
    %v813 = vmul.f32 %v749, 1.442695
    %v814 = vpow.pop %v813
    %v815 = vmul.f32 %v750, 1.442695
    %v816 = vpow.pop %v815
    %v817 = vmul.f32 %v751, 1.442695
    %v818 = vpow.pop %v817
    %v819 = vmul.f32 %v752, 1.442695
    %v820 = vpow.pop %v819
    %v821 = vmul.f32 %v753, 1.442695
    %v822 = vpow.pop %v821
    %v823 = vmul.f32 %v754, 1.442695
    %v824 = vpow.pop %v823
    %v825 = vmul.f32 %v755, 1.442695
    %v826 = vpow.pop %v825
    %v827 = vmul.f32 %v756, 1.442695
    %v828 = vpow.pop %v827
    %v829 = vmul.f32 %v757, 1.442695
    %v830 = vpow.pop %v829
    %v831 = vmul.f32 %v758, 1.442695
    %v832 = vpow.pop %v831
    %v833 = vmul.f32 %v759, 1.442695
    %v834 = vpow.pop %v833
    %v835 = vmul.f32 %v760, 1.442695
    %v836 = vpow.pop %v835
    %v837 = vmul.f32 %v761, 1.442695
    %v838 = vpow.pop %v837
    %v839 = vmul.f32 %v762, 1.442695
    %v840 = vpow.pop %v839
    %v841 = vmul.f32 %v763, 1.442695
    %v842 = vpow.pop %v841
    %v843 = vmul.f32 %v764, 1.442695
    %v844 = vpow.pop %v843
    %v845 = vmul.f32 %v765, 1.442695
    %v846 = vpow.pop %v845
    %v847 = vmul.f32 %v766, 1.442695
    %v848 = vpow.pop %v847
    %v849 = vmul.f32 %v767, 1.442695
    %v850 = vpow.pop %v849
    %v851 = vmul.f32 %v768, 1.442695
    %v852 = vpow.pop %v851
    %v853 = vmul.f32 %v769, 1.442695
    %v854 = vpow.pop %v853
    %v855 = vmul.f32 %v770, 1.442695
    %v856 = vpow.pop %v855
    %v857 = vmul.f32 %v771, 1.442695
    %v858 = vpow.pop %v857
    %v859 = vmul.f32 %v772, 1.442695
    %v860 = vpow.pop %v859
    %v861 = vmul.f32 %v773, 1.442695
    %v862 = vpow.pop %v861
    %v863 = vmul.f32 %v774, 1.442695
    %v864 = vpow.pop %v863
    %v865 = vmul.f32 %v775, 1.442695
    %v866 = vpow.pop %v865
    %v867 = vmul.f32 %v776, 1.442695
    %v868 = vpow.pop %v867
    %v869 = vmul.f32 %v777, 1.442695
    %v870 = vpow.pop %v869
    %v871 = vmul.f32 %v778, 1.442695
    %v872 = vpow.pop %v871
    %v873 = vmul.f32 %v779, 1.442695
    %v874 = vpow.pop %v873
    %v875 = vmul.f32 %v780, 1.442695
    %v876 = vpow.pop %v875
    %v877 = vmul.f32 %v781, 1.442695
    %v878 = vpow.pop %v877
    %v879 = vmul.f32 %v782, 1.442695
    %v880 = vpow.pop %v879
    %v881 = vmul.f32 %v783, 1.442695
    %v882 = vpow.pop %v881
    %v883 = vmul.f32 %v784, 1.442695
    %v884 = vpow.pop %v883
    %v885 = vmul.f32 %v785, 1.442695
    %v886 = vpow.pop %v885
    %v887 = vmul.f32 %v786, 1.442695
    %v888 = vpow.pop %v887
    %v889 = vmul.f32 %v787, 1.442695
    %v890 = vpow.pop %v889
    %v891 = vmul.f32 %v788, 1.442695
    %v892 = vpow.pop %v891
    %v893 = vmul.f32 %v789, 1.442695
    %v894 = vpow.pop %v893
    %v895 = vmul.f32 %v790, 1.442695
    %v896 = vpow.pop %v895
    %v897 = vmul.f32 %v791, 1.442695
    %v898 = vpow.pop %v897
    %v899 = vmul.f32 %v792, 1.442695
    %v900 = vpow.pop %v899
    %v901 = vmul.f32 %v793, 1.442695
    %v902 = vpow.pop %v901
    %v903 = vmul.f32 %v794, 1.442695
    %v904 = vpow.pop %v903
    %v905 = vmul.f32 %v795, 1.442695
    %v906 = vpow.pop %v905
    %v907 = vmul.f32 %v796, 1.442695
    %v908 = vpow.pop %v907
    %v909 = vmul.f32 %v797, 1.442695
    %v910 = vpow.pop %v909
    %v911 = vmul.f32 %v798, 1.442695
    %v912 = vpow.pop %v911
    %v913 = vmul.f32 %v799, 1.442695
    %v914 = vpow.pop %v913
    %v915 = vmul.f32 %v800, 1.442695
    %v916 = vpow.pop %v915
    %v917 = vmul.f32 %v801, 1.442695
    %v918 = vpow.pop %v917
    %v919 = vmul.f32 %v802, 1.442695
    %v920 = vpow.pop %v919
    %v921 = vmul.f32 %v803, 1.442695
    %v922 = vpow.pop %v921
    %v923 = vmul.f32 %v804, 1.442695
    %v924 = vpow.pop %v923
    %v925 = vmul.f32 %v805, 1.442695
    %v926 = vpow.pop %v925
    %v927 = vmul.f32 %v806, 1.442695
    %v928 = vpow.pop %v927
    %v929 = vmul.f32 %v807, 1.442695
    %v930 = vpow.pop %v929
    %v931 = vmul.f32 %v808, 1.442695
    %v932 = vpow.pop %v931
    %v933 = vmul.f32 %v809, 1.442695
    %v934 = vpow.pop %v933
    %v935 = vmul.f32 %v810, 1.442695
    %v936 = vpow.pop %v935
    %v937 = vmul.f32 %v811, 1.442695
    %v938 = vpow.pop %v937
    %v939 = vmul.f32 %v812, 1.442695
    %v940 = vpow.pop %v939
    %v941 = vsel %vm610, %v814, 0.0
    %v942 = vsel %vm610, %v816, 0.0
    %v943 = vadd.f32 %v941, %v942
    %v944 = vsel %vm610, %v818, 0.0
    %v945 = vadd.f32 %v943, %v944
    %v946 = vsel %vm610, %v820, 0.0
    %v947 = vadd.f32 %v945, %v946
    %v948 = vsel %vm610, %v822, 0.0
    %v949 = vadd.f32 %v947, %v948
    %v950 = vsel %vm610, %v824, 0.0
    %v951 = vadd.f32 %v949, %v950
    %v952 = vsel %vm610, %v826, 0.0
    %v953 = vadd.f32 %v951, %v952
    %v954 = vsel %vm610, %v828, 0.0
    %v955 = vadd.f32 %v953, %v954
    %v956 = vsel %vm610, %v830, 0.0
    %v957 = vadd.f32 %v955, %v956
    %v958 = vsel %vm610, %v832, 0.0
    %v959 = vadd.f32 %v957, %v958
    %v960 = vsel %vm610, %v834, 0.0
    %v961 = vadd.f32 %v959, %v960
    %v962 = vsel %vm610, %v836, 0.0
    %v963 = vadd.f32 %v961, %v962
    %v964 = vsel %vm610, %v838, 0.0
    %v965 = vadd.f32 %v963, %v964
    %v966 = vsel %vm610, %v840, 0.0
    %v967 = vadd.f32 %v965, %v966
    %v968 = vsel %vm610, %v842, 0.0
    %v969 = vadd.f32 %v967, %v968
    %v970 = vsel %vm610, %v844, 0.0
    %v971 = vadd.f32 %v969, %v970
    %v972 = vsel %vm610, %v846, 0.0
    %v973 = vadd.f32 %v971, %v972
    %v974 = vsel %vm610, %v848, 0.0
    %v975 = vadd.f32 %v973, %v974
    %v976 = vsel %vm610, %v850, 0.0
    %v977 = vadd.f32 %v975, %v976
    %v978 = vsel %vm610, %v852, 0.0
    %v979 = vadd.f32 %v977, %v978
    %v980 = vsel %vm610, %v854, 0.0
    %v981 = vadd.f32 %v979, %v980
    %v982 = vsel %vm610, %v856, 0.0
    %v983 = vadd.f32 %v981, %v982
    %v984 = vsel %vm610, %v858, 0.0
    %v985 = vadd.f32 %v983, %v984
    %v986 = vsel %vm610, %v860, 0.0
    %v987 = vadd.f32 %v985, %v986
    %v988 = vsel %vm610, %v862, 0.0
    %v989 = vadd.f32 %v987, %v988
    %v990 = vsel %vm610, %v864, 0.0
    %v991 = vadd.f32 %v989, %v990
    %v992 = vsel %vm610, %v866, 0.0
    %v993 = vadd.f32 %v991, %v992
    %v994 = vsel %vm610, %v868, 0.0
    %v995 = vadd.f32 %v993, %v994
    %v996 = vsel %vm610, %v870, 0.0
    %v997 = vadd.f32 %v995, %v996
    %v998 = vsel %vm610, %v872, 0.0
    %v999 = vadd.f32 %v997, %v998
    %v1000 = vsel %vm610, %v874, 0.0
    %v1001 = vadd.f32 %v999, %v1000
    %v1002 = vsel %vm610, %v876, 0.0
    %v1003 = vadd.f32 %v1001, %v1002
    %v1004 = vrot.slane %v1003, 4
    %v1005 = vadd.f32 %v1003, %v1004
    %v1006 = vrot.slane %v1005, 2
    %v1007 = vadd.f32 %v1005, %v1006
    %v1008 = vrot.slane %v1007, 1
    %v1009 = vadd.f32 %v1007, %v1008
    %v1010 = vsel %vm610, %v878, 0.0
    %v1011 = vsel %vm610, %v880, 0.0
    %v1012 = vadd.f32 %v1010, %v1011
    %v1013 = vsel %vm610, %v882, 0.0
    %v1014 = vadd.f32 %v1012, %v1013
    %v1015 = vsel %vm610, %v884, 0.0
    %v1016 = vadd.f32 %v1014, %v1015
    %v1017 = vsel %vm610, %v886, 0.0
    %v1018 = vadd.f32 %v1016, %v1017
    %v1019 = vsel %vm610, %v888, 0.0
    %v1020 = vadd.f32 %v1018, %v1019
    %v1021 = vsel %vm610, %v890, 0.0
    %v1022 = vadd.f32 %v1020, %v1021
    %v1023 = vsel %vm610, %v892, 0.0
    %v1024 = vadd.f32 %v1022, %v1023
    %v1025 = vsel %vm610, %v894, 0.0
    %v1026 = vadd.f32 %v1024, %v1025
    %v1027 = vsel %vm610, %v896, 0.0
    %v1028 = vadd.f32 %v1026, %v1027
    %v1029 = vsel %vm610, %v898, 0.0
    %v1030 = vadd.f32 %v1028, %v1029
    %v1031 = vsel %vm610, %v900, 0.0
    %v1032 = vadd.f32 %v1030, %v1031
    %v1033 = vsel %vm610, %v902, 0.0
    %v1034 = vadd.f32 %v1032, %v1033
    %v1035 = vsel %vm610, %v904, 0.0
    %v1036 = vadd.f32 %v1034, %v1035
    %v1037 = vsel %vm610, %v906, 0.0
    %v1038 = vadd.f32 %v1036, %v1037
    %v1039 = vsel %vm610, %v908, 0.0
    %v1040 = vadd.f32 %v1038, %v1039
    %v1041 = vsel %vm610, %v910, 0.0
    %v1042 = vadd.f32 %v1040, %v1041
    %v1043 = vsel %vm610, %v912, 0.0
    %v1044 = vadd.f32 %v1042, %v1043
    %v1045 = vsel %vm610, %v914, 0.0
    %v1046 = vadd.f32 %v1044, %v1045
    %v1047 = vsel %vm610, %v916, 0.0
    %v1048 = vadd.f32 %v1046, %v1047
    %v1049 = vsel %vm610, %v918, 0.0
    %v1050 = vadd.f32 %v1048, %v1049
    %v1051 = vsel %vm610, %v920, 0.0
    %v1052 = vadd.f32 %v1050, %v1051
    %v1053 = vsel %vm610, %v922, 0.0
    %v1054 = vadd.f32 %v1052, %v1053
    %v1055 = vsel %vm610, %v924, 0.0
    %v1056 = vadd.f32 %v1054, %v1055
    %v1057 = vsel %vm610, %v926, 0.0
    %v1058 = vadd.f32 %v1056, %v1057
    %v1059 = vsel %vm610, %v928, 0.0
    %v1060 = vadd.f32 %v1058, %v1059
    %v1061 = vsel %vm610, %v930, 0.0
    %v1062 = vadd.f32 %v1060, %v1061
    %v1063 = vsel %vm610, %v932, 0.0
    %v1064 = vadd.f32 %v1062, %v1063
    %v1065 = vsel %vm610, %v934, 0.0
    %v1066 = vadd.f32 %v1064, %v1065
    %v1067 = vsel %vm610, %v936, 0.0
    %v1068 = vadd.f32 %v1066, %v1067
    %v1069 = vsel %vm610, %v938, 0.0
    %v1070 = vadd.f32 %v1068, %v1069
    %v1071 = vsel %vm610, %v940, 0.0
    %v1072 = vadd.f32 %v1070, %v1071
    %v1073 = vrot.slane %v1072, 4
    %v1074 = vadd.f32 %v1072, %v1073
    %v1075 = vrot.slane %v1074, 2
    %v1076 = vadd.f32 %v1074, %v1075
    %v1077 = vrot.slane %v1076, 1
    %v1078 = vadd.f32 %v1076, %v1077
    %v1079 = vrcp.pop %v1009
    %v1080 = vrcp.pop %v1078
    %1113 = vrot.lane.b32.xlu0 %v814, 96
    %v1114 = vpop.permute.xlu0 %1113
    %1115 = vrot.lane.b32.xlu0 %v816, 96
    %v1116 = vpop.permute.xlu0 %1115
    %1117 = vrot.lane.b32.xlu0 %v818, 96
    %v1118 = vpop.permute.xlu0 %1117
    %1119 = vrot.lane.b32.xlu0 %v820, 96
    %v1120 = vpop.permute.xlu0 %1119
    %1121 = vrot.lane.b32.xlu0 %v822, 96
    %v1122 = vpop.permute.xlu0 %1121
    %1123 = vrot.lane.b32.xlu0 %v824, 96
    %v1124 = vpop.permute.xlu0 %1123
    %1125 = vrot.lane.b32.xlu0 %v826, 96
    %v1126 = vpop.permute.xlu0 %1125
    %1127 = vrot.lane.b32.xlu0 %v828, 96
    %v1128 = vpop.permute.xlu0 %1127
    %1129 = vrot.lane.b32.xlu0 %v830, 96
    %v1130 = vpop.permute.xlu0 %1129
    %1131 = vrot.lane.b32.xlu0 %v832, 96
    %v1132 = vpop.permute.xlu0 %1131
    %1133 = vrot.lane.b32.xlu0 %v834, 96
    %v1134 = vpop.permute.xlu0 %1133
    %1135 = vrot.lane.b32.xlu0 %v836, 96
    %v1136 = vpop.permute.xlu0 %1135
    %1137 = vrot.lane.b32.xlu0 %v838, 96
    %v1138 = vpop.permute.xlu0 %1137
    %1139 = vrot.lane.b32.xlu0 %v840, 96
    %v1140 = vpop.permute.xlu0 %1139
    %1141 = vrot.lane.b32.xlu0 %v842, 96
    %v1142 = vpop.permute.xlu0 %1141
    %1143 = vrot.lane.b32.xlu0 %v844, 96
    %v1144 = vpop.permute.xlu0 %1143
    %1145 = vrot.lane.b32.xlu0 %v846, 96
    %v1146 = vpop.permute.xlu0 %1145
    %1147 = vrot.lane.b32.xlu0 %v848, 96
    %v1148 = vpop.permute.xlu0 %1147
    %1149 = vrot.lane.b32.xlu0 %v850, 96
    %v1150 = vpop.permute.xlu0 %1149
    %1151 = vrot.lane.b32.xlu0 %v852, 96
    %v1152 = vpop.permute.xlu0 %1151
    %1153 = vrot.lane.b32.xlu0 %v854, 96
    %v1154 = vpop.permute.xlu0 %1153
    %1155 = vrot.lane.b32.xlu0 %v856, 96
    %v1156 = vpop.permute.xlu0 %1155
    %1157 = vrot.lane.b32.xlu0 %v858, 96
    %v1158 = vpop.permute.xlu0 %1157
    %1159 = vrot.lane.b32.xlu0 %v860, 96
    %v1160 = vpop.permute.xlu0 %1159
    %1161 = vrot.lane.b32.xlu0 %v862, 96
    %v1162 = vpop.permute.xlu0 %1161
    %1163 = vrot.lane.b32.xlu0 %v864, 96
    %v1164 = vpop.permute.xlu0 %1163
    %1165 = vrot.lane.b32.xlu0 %v866, 96
    %v1166 = vpop.permute.xlu0 %1165
    %1167 = vrot.lane.b32.xlu0 %v868, 96
    %v1168 = vpop.permute.xlu0 %1167
    %1169 = vrot.lane.b32.xlu0 %v870, 96
    %v1170 = vpop.permute.xlu0 %1169
    %1171 = vrot.lane.b32.xlu0 %v872, 96
    %v1172 = vpop.permute.xlu0 %1171
    %1173 = vrot.lane.b32.xlu0 %v874, 96
    %v1174 = vpop.permute.xlu0 %1173
    %1175 = vrot.lane.b32.xlu0 %v876, 96
    %v1176 = vpop.permute.xlu0 %1175
    %1209 = vxpose.xlu0.b32.start [1/16] %v1114, 128
    %1210 = vxpose.xlu0.b32.cont [2/16] %v1116, 128
    %1211 = vxpose.xlu0.b32.cont [3/16] %v1118, 128
    %1212 = vxpose.xlu0.b32.cont [4/16] %v1120, 128
    %1213 = vxpose.xlu0.b32.cont [5/16] %v1122, 128
    %1214 = vxpose.xlu0.b32.cont [6/16] %v1124, 128
    %1215 = vxpose.xlu0.b32.cont [7/16] %v1126, 128
    %1216 = vxpose.xlu0.b32.cont [8/16] %v1128, 128
    %1217 = vxpose.xlu0.b32.cont [9/16] %v1130, 128
    %1218 = vxpose.xlu0.b32.cont [10/16] %v1132, 128
    %1219 = vxpose.xlu0.b32.cont [11/16] %v1134, 128
    %1220 = vxpose.xlu0.b32.cont [12/16] %v1136, 128
    %1221 = vxpose.xlu0.b32.cont [13/16] %v1138, 128
    %1222 = vxpose.xlu0.b32.cont [14/16] %v1140, 128
    %1223 = vxpose.xlu0.b32.cont [15/16] %v1142, 128
    %1224 = vxpose.xlu0.b32.end [16/16] %v1144, 128
    %v1225 = vpop.trf.xlu0
    %v1226 = vpop.trf.xlu0
    %v1227 = vpop.trf.xlu0
    %v1228 = vpop.trf.xlu0
    %v1229 = vpop.trf.xlu0
    %v1230 = vpop.trf.xlu0
    %v1231 = vpop.trf.xlu0
    %v1232 = vpop.trf.xlu0
    %v1233 = vpop.trf.xlu0
    %v1234 = vpop.trf.xlu0
    %v1235 = vpop.trf.xlu0
    %v1236 = vpop.trf.xlu0
    %v1237 = vpop.trf.xlu0
    %v1238 = vpop.trf.xlu0
    %v1239 = vpop.trf.xlu0
    %v1240 = vpop.trf.xlu0
    %1241 = vxpose.xlu0.b32.start [1/16] %v1146, 128
    %1242 = vxpose.xlu0.b32.cont [2/16] %v1148, 128
    %1243 = vxpose.xlu0.b32.cont [3/16] %v1150, 128
    %1244 = vxpose.xlu0.b32.cont [4/16] %v1152, 128
    %1245 = vxpose.xlu0.b32.cont [5/16] %v1154, 128
    %1246 = vxpose.xlu0.b32.cont [6/16] %v1156, 128
    %1247 = vxpose.xlu0.b32.cont [7/16] %v1158, 128
    %1248 = vxpose.xlu0.b32.cont [8/16] %v1160, 128
    %1249 = vxpose.xlu0.b32.cont [9/16] %v1162, 128
    %1250 = vxpose.xlu0.b32.cont [10/16] %v1164, 128
    %1251 = vxpose.xlu0.b32.cont [11/16] %v1166, 128
    %1252 = vxpose.xlu0.b32.cont [12/16] %v1168, 128
    %1253 = vxpose.xlu0.b32.cont [13/16] %v1170, 128
    %1254 = vxpose.xlu0.b32.cont [14/16] %v1172, 128
    %1255 = vxpose.xlu0.b32.cont [15/16] %v1174, 128
    %1256 = vxpose.xlu0.b32.end [16/16] %v1176, 128
    %v1257 = vpop.trf.xlu0
    %v1258 = vpop.trf.xlu0
    %v1259 = vpop.trf.xlu0
    %v1260 = vpop.trf.xlu0
    %v1261 = vpop.trf.xlu0
    %v1262 = vpop.trf.xlu0
    %v1263 = vpop.trf.xlu0
    %v1264 = vpop.trf.xlu0
    %v1265 = vpop.trf.xlu0
    %v1266 = vpop.trf.xlu0
    %v1267 = vpop.trf.xlu0
    %v1268 = vpop.trf.xlu0
    %v1269 = vpop.trf.xlu0
    %v1270 = vpop.trf.xlu0
    %v1271 = vpop.trf.xlu0
    %v1272 = vpop.trf.xlu0
    %1273 = vmatpush.msra.mxu0 %v488
    %1274 = vmatpush.msra.mxu0 %v486
    %1275 = vmatpush.msra.mxu0 %v483
    %1276 = vmatpush.msra.mxu0 %v481
    %1277 = vmatpush.msra.mxu0 %v478
    %1278 = vmatpush.msra.mxu0 %v476
    %1279 = vmatpush.msra.mxu0 %v473
    %1280 = vmatpush.msra.mxu0 %v471
    %1281 = vmatpush.msra.mxu0 %v468
    %1282 = vmatpush.msra.mxu0 %v466
    %1283 = vmatpush.msra.mxu0 %v463
    %1284 = vmatpush.msra.mxu0 %v461
    %1285 = vmatpush.msra.mxu0 %v458
    %1286 = vmatpush.msra.mxu0 %v456
    %1287 = vmatpush.msra.mxu0 %v453
    %1288 = vmatpush.msra.mxu0 %v451
    %1289 = vmatmul.f32.gmra.mxu0 %v1225
    %v1290 = vpop.f32.mrf.mxu0
    %v1291 = vadd.f32 0.0, %v1290
    %1292 = vdwg.mxu0
    %1293 = vmatpush.msra.mxu0 %v528
    %1294 = vmatpush.msra.mxu0 %v526
    %1295 = vmatpush.msra.mxu0 %v523
    %1296 = vmatpush.msra.mxu0 %v521
    %1297 = vmatpush.msra.mxu0 %v518
    %1298 = vmatpush.msra.mxu0 %v516
    %1299 = vmatpush.msra.mxu0 %v513
    %1300 = vmatpush.msra.mxu0 %v511
    %1301 = vmatpush.msra.mxu0 %v508
    %1302 = vmatpush.msra.mxu0 %v506
    %1303 = vmatpush.msra.mxu0 %v503
    %1304 = vmatpush.msra.mxu0 %v501
    %1305 = vmatpush.msra.mxu0 %v498
    %1306 = vmatpush.msra.mxu0 %v496
    %1307 = vmatpush.msra.mxu0 %v493
    %1308 = vmatpush.msra.mxu0 %v491
    %1309 = vmatmul.f32.gmra.mxu0 %v1257
    %v1310 = vpop.f32.mrf.mxu0
    %v1311 = vadd.f32 %v1291, %v1310
    %1312 = vdwg.mxu0
    %1345 = vrot.lane.b32.xlu0 %v878, 96
    %v1346 = vpop.permute.xlu0 %1345
    %1347 = vrot.lane.b32.xlu0 %v880, 96
    %v1348 = vpop.permute.xlu0 %1347
    %1349 = vrot.lane.b32.xlu0 %v882, 96
    %v1350 = vpop.permute.xlu0 %1349
    %1351 = vrot.lane.b32.xlu0 %v884, 96
    %v1352 = vpop.permute.xlu0 %1351
    %1353 = vrot.lane.b32.xlu0 %v886, 96
    %v1354 = vpop.permute.xlu0 %1353
    %1355 = vrot.lane.b32.xlu0 %v888, 96
    %v1356 = vpop.permute.xlu0 %1355
    %1357 = vrot.lane.b32.xlu0 %v890, 96
    %v1358 = vpop.permute.xlu0 %1357
    %1359 = vrot.lane.b32.xlu0 %v892, 96
    %v1360 = vpop.permute.xlu0 %1359
    %1361 = vrot.lane.b32.xlu0 %v894, 96
    %v1362 = vpop.permute.xlu0 %1361
    %1363 = vrot.lane.b32.xlu0 %v896, 96
    %v1364 = vpop.permute.xlu0 %1363
    %1365 = vrot.lane.b32.xlu0 %v898, 96
    %v1366 = vpop.permute.xlu0 %1365
    %1367 = vrot.lane.b32.xlu0 %v900, 96
    %v1368 = vpop.permute.xlu0 %1367
    %1369 = vrot.lane.b32.xlu0 %v902, 96
    %v1370 = vpop.permute.xlu0 %1369
    %1371 = vrot.lane.b32.xlu0 %v904, 96
    %v1372 = vpop.permute.xlu0 %1371
    %1373 = vrot.lane.b32.xlu0 %v906, 96
    %v1374 = vpop.permute.xlu0 %1373
    %1375 = vrot.lane.b32.xlu0 %v908, 96
    %v1376 = vpop.permute.xlu0 %1375
    %1377 = vrot.lane.b32.xlu0 %v910, 96
    %v1378 = vpop.permute.xlu0 %1377
    %1379 = vrot.lane.b32.xlu0 %v912, 96
    %v1380 = vpop.permute.xlu0 %1379
    %1381 = vrot.lane.b32.xlu0 %v914, 96
    %v1382 = vpop.permute.xlu0 %1381
    %1383 = vrot.lane.b32.xlu0 %v916, 96
    %v1384 = vpop.permute.xlu0 %1383
    %1385 = vrot.lane.b32.xlu0 %v918, 96
    %v1386 = vpop.permute.xlu0 %1385
    %1387 = vrot.lane.b32.xlu0 %v920, 96
    %v1388 = vpop.permute.xlu0 %1387
    %1389 = vrot.lane.b32.xlu0 %v922, 96
    %v1390 = vpop.permute.xlu0 %1389
    %1391 = vrot.lane.b32.xlu0 %v924, 96
    %v1392 = vpop.permute.xlu0 %1391
    %1393 = vrot.lane.b32.xlu0 %v926, 96
    %v1394 = vpop.permute.xlu0 %1393
    %1395 = vrot.lane.b32.xlu0 %v928, 96
    %v1396 = vpop.permute.xlu0 %1395
    %1397 = vrot.lane.b32.xlu0 %v930, 96
    %v1398 = vpop.permute.xlu0 %1397
    %1399 = vrot.lane.b32.xlu0 %v932, 96
    %v1400 = vpop.permute.xlu0 %1399
    %1401 = vrot.lane.b32.xlu0 %v934, 96
    %v1402 = vpop.permute.xlu0 %1401
    %1403 = vrot.lane.b32.xlu0 %v936, 96
    %v1404 = vpop.permute.xlu0 %1403
    %1405 = vrot.lane.b32.xlu0 %v938, 96
    %v1406 = vpop.permute.xlu0 %1405
    %1407 = vrot.lane.b32.xlu0 %v940, 96
    %v1408 = vpop.permute.xlu0 %1407
    %1441 = vxpose.xlu0.b32.start [1/16] %v1346, 128
    %1442 = vxpose.xlu0.b32.cont [2/16] %v1348, 128
    %1443 = vxpose.xlu0.b32.cont [3/16] %v1350, 128
    %1444 = vxpose.xlu0.b32.cont [4/16] %v1352, 128
    %1445 = vxpose.xlu0.b32.cont [5/16] %v1354, 128
    %1446 = vxpose.xlu0.b32.cont [6/16] %v1356, 128
    %1447 = vxpose.xlu0.b32.cont [7/16] %v1358, 128
    %1448 = vxpose.xlu0.b32.cont [8/16] %v1360, 128
    %1449 = vxpose.xlu0.b32.cont [9/16] %v1362, 128
    %1450 = vxpose.xlu0.b32.cont [10/16] %v1364, 128
    %1451 = vxpose.xlu0.b32.cont [11/16] %v1366, 128
    %1452 = vxpose.xlu0.b32.cont [12/16] %v1368, 128
    %1453 = vxpose.xlu0.b32.cont [13/16] %v1370, 128
    %1454 = vxpose.xlu0.b32.cont [14/16] %v1372, 128
    %1455 = vxpose.xlu0.b32.cont [15/16] %v1374, 128
    %1456 = vxpose.xlu0.b32.end [16/16] %v1376, 128
    %v1457 = vpop.trf.xlu0
    %v1458 = vpop.trf.xlu0
    %v1459 = vpop.trf.xlu0
    %v1460 = vpop.trf.xlu0
    %v1461 = vpop.trf.xlu0
    %v1462 = vpop.trf.xlu0
    %v1463 = vpop.trf.xlu0
    %v1464 = vpop.trf.xlu0
    %v1465 = vpop.trf.xlu0
    %v1466 = vpop.trf.xlu0
    %v1467 = vpop.trf.xlu0
    %v1468 = vpop.trf.xlu0
    %v1469 = vpop.trf.xlu0
    %v1470 = vpop.trf.xlu0
    %v1471 = vpop.trf.xlu0
    %v1472 = vpop.trf.xlu0
    %1473 = vxpose.xlu0.b32.start [1/16] %v1378, 128
    %1474 = vxpose.xlu0.b32.cont [2/16] %v1380, 128
    %1475 = vxpose.xlu0.b32.cont [3/16] %v1382, 128
    %1476 = vxpose.xlu0.b32.cont [4/16] %v1384, 128
    %1477 = vxpose.xlu0.b32.cont [5/16] %v1386, 128
    %1478 = vxpose.xlu0.b32.cont [6/16] %v1388, 128
    %1479 = vxpose.xlu0.b32.cont [7/16] %v1390, 128
    %1480 = vxpose.xlu0.b32.cont [8/16] %v1392, 128
    %1481 = vxpose.xlu0.b32.cont [9/16] %v1394, 128
    %1482 = vxpose.xlu0.b32.cont [10/16] %v1396, 128
    %1483 = vxpose.xlu0.b32.cont [11/16] %v1398, 128
    %1484 = vxpose.xlu0.b32.cont [12/16] %v1400, 128
    %1485 = vxpose.xlu0.b32.cont [13/16] %v1402, 128
    %1486 = vxpose.xlu0.b32.cont [14/16] %v1404, 128
    %1487 = vxpose.xlu0.b32.cont [15/16] %v1406, 128
    %1488 = vxpose.xlu0.b32.end [16/16] %v1408, 128
    %v1489 = vpop.trf.xlu0
    %v1490 = vpop.trf.xlu0
    %v1491 = vpop.trf.xlu0
    %v1492 = vpop.trf.xlu0
    %v1493 = vpop.trf.xlu0
    %v1494 = vpop.trf.xlu0
    %v1495 = vpop.trf.xlu0
    %v1496 = vpop.trf.xlu0
    %v1497 = vpop.trf.xlu0
    %v1498 = vpop.trf.xlu0
    %v1499 = vpop.trf.xlu0
    %v1500 = vpop.trf.xlu0
    %v1501 = vpop.trf.xlu0
    %v1502 = vpop.trf.xlu0
    %v1503 = vpop.trf.xlu0
    %v1504 = vpop.trf.xlu0
    %1505 = vmatpush.msra.mxu0 %v568
    %1506 = vmatpush.msra.mxu0 %v566
    %1507 = vmatpush.msra.mxu0 %v563
    %1508 = vmatpush.msra.mxu0 %v561
    %1509 = vmatpush.msra.mxu0 %v558
    %1510 = vmatpush.msra.mxu0 %v556
    %1511 = vmatpush.msra.mxu0 %v553
    %1512 = vmatpush.msra.mxu0 %v551
    %1513 = vmatpush.msra.mxu0 %v548
    %1514 = vmatpush.msra.mxu0 %v546
    %1515 = vmatpush.msra.mxu0 %v543
    %1516 = vmatpush.msra.mxu0 %v541
    %1517 = vmatpush.msra.mxu0 %v538
    %1518 = vmatpush.msra.mxu0 %v536
    %1519 = vmatpush.msra.mxu0 %v533
    %1520 = vmatpush.msra.mxu0 %v531
    %1521 = vmatmul.f32.gmra.mxu0 %v1457
    %v1522 = vpop.f32.mrf.mxu0
    %v1523 = vadd.f32 0.0, %v1522
    %1524 = vdwg.mxu0
    %1525 = vmatpush.msra.mxu0 %v608
    %1526 = vmatpush.msra.mxu0 %v606
    %1527 = vmatpush.msra.mxu0 %v603
    %1528 = vmatpush.msra.mxu0 %v601
    %1529 = vmatpush.msra.mxu0 %v598
    %1530 = vmatpush.msra.mxu0 %v596
    %1531 = vmatpush.msra.mxu0 %v593
    %1532 = vmatpush.msra.mxu0 %v591
    %1533 = vmatpush.msra.mxu0 %v588
    %1534 = vmatpush.msra.mxu0 %v586
    %1535 = vmatpush.msra.mxu0 %v583
    %1536 = vmatpush.msra.mxu0 %v581
    %1537 = vmatpush.msra.mxu0 %v578
    %1538 = vmatpush.msra.mxu0 %v576
    %1539 = vmatpush.msra.mxu0 %v573
    %1540 = vmatpush.msra.mxu0 %v571
    %1541 = vmatmul.f32.gmra.mxu0 %v1489
    %v1542 = vpop.f32.mrf.mxu0
    %v1543 = vadd.f32 %v1523, %v1542
    %1544 = vdwg.mxu0
    %1546 = vset.pattern.permute.xlu0 32
    %1547 = vperm.xlu0 %1546, %v1079
    %v1548 = vpop.permute.xlu0 %1547
    %1551 = vset.pattern.permute.xlu0 32
    %1552 = vperm.xlu0 %1551, %v1080
    %v1553 = vpop.permute.xlu0 %1552
    %v1555 = vmul.f32 %v1311, %v1548
    %v1556 = vmul.f32 %v1543, %v1553
    %v1557 = vld [vmem:[%s6] sm:$0xf]
    %v1558 = vld [vmem:[#allocation10] sm:$0xff]
    %v1559 = vld [vmem:[#allocation10 + $0x8] sm:$0xff]
    %v1560 = vld [vmem:[#allocation10 + $0x10] sm:$0xff]
    %v1561 = vld [vmem:[#allocation10 + $0x18] sm:$0xff]
    %v1562 = vld [vmem:[#allocation10 + $0x20] sm:$0xff]
    %v1563 = vld [vmem:[#allocation10 + $0x28] sm:$0xff]
    %v1564 = vld [vmem:[#allocation10 + $0x30] sm:$0xff]
    %v1565 = vld [vmem:[#allocation10 + $0x38] sm:$0xff]
    %v1566 = vld [vmem:[#allocation10 + $0x40] sm:$0xff]
    %v1567 = vld [vmem:[#allocation10 + $0x48] sm:$0xff]
    %v1568 = vld [vmem:[#allocation10 + $0x50] sm:$0xff]
    %v1569 = vld [vmem:[#allocation10 + $0x58] sm:$0xff]
    %v1570 = vld [vmem:[#allocation10 + $0x60] sm:$0xff]
    %v1571 = vld [vmem:[#allocation10 + $0x68] sm:$0xff]
    %v1572 = vld [vmem:[#allocation10 + $0x70] sm:$0xff]
    %v1573 = vld [vmem:[#allocation10 + $0x78] sm:$0xff]
    %v1574 = vperm.slane %v1557, 0
    %v1577 = vrot.slane %v1556, 7
    %vm1578 = vcmask 1041409
    %v1579 = vsel %vm1578, %v1577, %v1555
    %1581 = vmatpush.msra.mxu0 %v1573
    %1582 = vmatpush.msra.mxu0 %v1572
    %1583 = vmatpush.msra.mxu0 %v1571
    %1584 = vmatpush.msra.mxu0 %v1570
    %1585 = vmatpush.msra.mxu0 %v1569
    %1586 = vmatpush.msra.mxu0 %v1568
    %1587 = vmatpush.msra.mxu0 %v1567
    %1588 = vmatpush.msra.mxu0 %v1566
    %1589 = vmatpush.msra.mxu0 %v1565
    %1590 = vmatpush.msra.mxu0 %v1564
    %1591 = vmatpush.msra.mxu0 %v1563
    %1592 = vmatpush.msra.mxu0 %v1562
    %1593 = vmatpush.msra.mxu0 %v1561
    %1594 = vmatpush.msra.mxu0 %v1560
    %1595 = vmatpush.msra.mxu0 %v1559
    %1596 = vmatpush.msra.mxu0 %v1558
    %1597 = vmatmul.f32.gmra.mxu0 %v1579
    %v1598 = vpop.f32.mrf.mxu0
    %v1599 = vadd.f32 %v1574, %v1598
    %1600 = vdwg.mxu0
    %vm1601 = vcmask 1041408
    %v1602 = vsel %vm1601, %v1599, 0.0
    %1603 = vadd.xlane.f32.xlu0 %v1602
    %v1604 = vpop.xlane.xlu0 %1603
    %v1605 = vmul.f32 %v1604, 0.125
    %v1606 = vlaneseq
    %v1607 = vand.u32 %v1606, 127
    %vm1608 = vcmp.lt.s32.totalorder %v1607, 8
    %v1609 = vsub.f32 %v1599, %v1605
    %v1610 = vsel %vm1608, 1, 0
    %vm1611 = vcmp.eq.s32.totalorder %v1610, 1
    %v1612 = vsel %vm1611, %v1609, 0.0
    %v1613 = vmul.f32 %v1612, %v1612
    %v1614 = vsel %vm1601, %v1613, 0.0
    %1615 = vadd.xlane.f32.xlu0 %v1614
    %v1616 = vpop.xlane.xlu0 %1615
    %v1617 = vmul.f32 %v1616, 0.125
    %v1618 = vadd.f32 %v1617, 1e-05
    %v1619 = vrsqrt.pop %v1618
    %v1620 = vmul.f32 %v1619, %v1618
    %v1621 = vmul.f32 %v1620, %v1619
    %v1622 = vmul.f32 0.5, %v1621
    %v1623 = vsub.f32 1.5, %v1622
    %v1624 = vmul.f32 %v1619, %v1623
    %vm1625 = vweird.f32 %v1618
    %vm1626 = vweird.f32 %v1619
    %vm1627 = vmor %vm1625, %vm1626
    %v1628 = vsel %vm1627, %v1619, %v1624
    %v1629 = vmul.f32 %v1612, %v1628
    %v1630 = vperm.slane %v1557, 1
    %v1631 = vmul.f32 %v1629, %v1630
    %v1632 = vperm.slane %v1557, 2
    %v1633 = vadd.f32 %v1631, %v1632
    %v1634 = vmax.f32 %v1633, 0.0
    %v1635 = vld [vmem:[#allocation11] sm:$0xff]
    %v1636 = vld [vmem:[#allocation11 + $0x8] sm:$0xff]
    %v1637 = vld [vmem:[#allocation11 + $0x10] sm:$0xff]
    %v1638 = vld [vmem:[#allocation11 + $0x18] sm:$0xff]
    %v1639 = vld [vmem:[#allocation11 + $0x20] sm:$0xff]
    %v1640 = vld [vmem:[#allocation11 + $0x28] sm:$0xff]
    %v1641 = vld [vmem:[#allocation11 + $0x30] sm:$0xff]
    %v1642 = vld [vmem:[#allocation11 + $0x38] sm:$0xff]
    %v1643 = vld [vmem:[#allocation11 + $0x40] sm:$0xff]
    %v1644 = vld [vmem:[#allocation11 + $0x48] sm:$0xff]
    %v1645 = vld [vmem:[#allocation11 + $0x50] sm:$0xff]
    %v1646 = vld [vmem:[#allocation11 + $0x58] sm:$0xff]
    %v1647 = vld [vmem:[#allocation11 + $0x60] sm:$0xff]
    %v1648 = vld [vmem:[#allocation11 + $0x68] sm:$0xff]
    %v1649 = vld [vmem:[#allocation11 + $0x70] sm:$0xff]
    %v1650 = vld [vmem:[#allocation11 + $0x78] sm:$0xff]
    %v1651 = vperm.slane %v1557, 3
    %1652 = vmatpush.msra.mxu0 %v1650
    %1653 = vmatpush.msra.mxu0 %v1649
    %1654 = vmatpush.msra.mxu0 %v1648
    %1655 = vmatpush.msra.mxu0 %v1647
    %1656 = vmatpush.msra.mxu0 %v1646
    %1657 = vmatpush.msra.mxu0 %v1645
    %1658 = vmatpush.msra.mxu0 %v1644
    %1659 = vmatpush.msra.mxu0 %v1643
    %1660 = vmatpush.msra.mxu0 %v1642
    %1661 = vmatpush.msra.mxu0 %v1641
    %1662 = vmatpush.msra.mxu0 %v1640
    %1663 = vmatpush.msra.mxu0 %v1639
    %1664 = vmatpush.msra.mxu0 %v1638
    %1665 = vmatpush.msra.mxu0 %v1637
    %1666 = vmatpush.msra.mxu0 %v1636
    %1667 = vmatpush.msra.mxu0 %v1635
    %1668 = vmatmul.f32.gmra.mxu0 %v1634
    %v1669 = vpop.f32.mrf.mxu0
    %v1670 = vadd.f32 %v1651, %v1669
    %1671 = vdwg.mxu0
    %v1672 = vxor.u32 %v1670, 2147483648
    %v1673 = vmul.f32 %v1672, 1.442695
    %v1674 = vpow.pop %v1673
    %v1675 = vadd.f32 %v1674, 1.0
    %v1676 = vrcp.pop %v1675
    %v1677 = vmul.f32 %v1675, %v1676
    %v1678 = vsub.f32 1.0, %v1677
    %v1679 = vmul.f32 %v1676, %v1678
    %v1680 = vadd.f32 %v1676, %v1679
    %vm1681 = vweird.f32 %v1675
    %vm1682 = vweird.f32 %v1676
    %vm1683 = vmor %vm1681, %vm1682
    %v1684 = vsel %vm1683, %v1676, %v1680
    %v1685 = vand.u32 2147483647, %v1675
    %vm1686 = vcmp.eq.f32.partialorder %v1685, 8.507059e+37
    %v1687 = vand.u32 %v1675, 2147483648
    %v1688 = vor.u32 1.1754944e-38, %v1687
    %v1689 = vsel %vm1686, %v1688, %v1684
    %v1690 = vmul.f32 1.0, %v1689
    %v1692 = vrot.slane %v1690, 1
    %v1693 = vunpack.c.l.bf16 %v121
    %v1694 = vunpack.c.l.bf16 %v122
    %v1695 = vunpack.c.l.bf16 %v123
    %v1696 = vunpack.c.l.bf16 %v124
    %v1697 = vunpack.c.l.bf16 %v125
    %v1698 = vunpack.c.l.bf16 %v126
    %v1699 = vunpack.c.l.bf16 %v127
    %v1700 = vunpack.c.l.bf16 %v128
    %v1701 = vunpack.c.l.bf16 %v129
    %v1702 = vunpack.c.l.bf16 %v130
    %v1703 = vunpack.c.l.bf16 %v131
    %v1704 = vunpack.c.l.bf16 %v132
    %v1705 = vunpack.c.l.bf16 %v133
    %v1706 = vunpack.c.l.bf16 %v134
    %v1707 = vunpack.c.l.bf16 %v135
    %v1708 = vunpack.c.l.bf16 %v136
    %v1709 = vunpack.c.l.bf16 %v137
    %v1710 = vunpack.c.l.bf16 %v138
    %v1711 = vunpack.c.l.bf16 %v139
    %v1712 = vunpack.c.l.bf16 %v140
    %v1713 = vunpack.c.l.bf16 %v141
    %v1714 = vunpack.c.l.bf16 %v142
    %v1715 = vunpack.c.l.bf16 %v143
    %v1716 = vunpack.c.l.bf16 %v144
    %v1717 = vunpack.c.l.bf16 %v145
    %v1718 = vunpack.c.l.bf16 %v146
    %v1719 = vunpack.c.l.bf16 %v147
    %v1720 = vunpack.c.l.bf16 %v148
    %v1721 = vunpack.c.l.bf16 %v149
    %v1722 = vunpack.c.l.bf16 %v150
    %v1723 = vunpack.c.l.bf16 %v151
    %v1724 = vunpack.c.l.bf16 %v152
    %v1725 = vunpack.c.l.bf16 %v153
    %v1726 = vunpack.c.l.bf16 %v154
    %v1727 = vunpack.c.l.bf16 %v155
    %v1728 = vunpack.c.l.bf16 %v156
    %v1729 = vunpack.c.l.bf16 %v157
    %v1730 = vunpack.c.l.bf16 %v158
    %v1731 = vunpack.c.l.bf16 %v159
    %v1732 = vunpack.c.l.bf16 %v160
    %v1733 = vunpack.c.l.bf16 %v161
    %v1734 = vunpack.c.l.bf16 %v162
    %v1735 = vunpack.c.l.bf16 %v163
    %v1736 = vunpack.c.l.bf16 %v164
    %v1737 = vunpack.c.l.bf16 %v165
    %v1738 = vunpack.c.l.bf16 %v166
    %v1739 = vunpack.c.l.bf16 %v167
    %v1740 = vunpack.c.l.bf16 %v168
    %v1741 = vunpack.c.l.bf16 %v169
    %v1742 = vunpack.c.l.bf16 %v170
    %v1743 = vunpack.c.l.bf16 %v171
    %v1744 = vunpack.c.l.bf16 %v172
    %v1745 = vunpack.c.l.bf16 %v173
    %v1746 = vunpack.c.l.bf16 %v174
    %v1747 = vunpack.c.l.bf16 %v175
    %v1748 = vunpack.c.l.bf16 %v176
    %v1749 = vunpack.c.l.bf16 %v177
    %v1750 = vunpack.c.l.bf16 %v178
    %v1751 = vunpack.c.l.bf16 %v179
    %v1752 = vunpack.c.l.bf16 %v180
    %v1753 = vunpack.c.l.bf16 %v181
    %v1754 = vunpack.c.l.bf16 %v182
    %v1755 = vunpack.c.l.bf16 %v183
    %v1756 = vunpack.c.l.bf16 %v184
    %v1757 = vperm.slane %v1690, 0
    %v1758 = vperm.slane %v1692, 0
    %v1761 = vmul.f32 %v1693, %v1757
    %v1762 = vmul.f32 %v1694, %v1757
    %v1763 = vmul.f32 %v1695, %v1757
    %v1764 = vmul.f32 %v1696, %v1757
    %v1765 = vmul.f32 %v1697, %v1757
    %v1766 = vmul.f32 %v1698, %v1757
    %v1767 = vmul.f32 %v1699, %v1757
    %v1768 = vmul.f32 %v1700, %v1757
    %v1769 = vmul.f32 %v1701, %v1757
    %v1770 = vmul.f32 %v1702, %v1757
    %v1771 = vmul.f32 %v1703, %v1757
    %v1772 = vmul.f32 %v1704, %v1757
    %v1773 = vmul.f32 %v1705, %v1757
    %v1774 = vmul.f32 %v1706, %v1757
    %v1775 = vmul.f32 %v1707, %v1757
    %v1776 = vmul.f32 %v1708, %v1757
    %v1777 = vmul.f32 %v1709, %v1757
    %v1778 = vmul.f32 %v1710, %v1757
    %v1779 = vmul.f32 %v1711, %v1757
    %v1780 = vmul.f32 %v1712, %v1757
    %v1781 = vmul.f32 %v1713, %v1757
    %v1782 = vmul.f32 %v1714, %v1757
    %v1783 = vmul.f32 %v1715, %v1757
    %v1784 = vmul.f32 %v1716, %v1757
    %v1785 = vmul.f32 %v1717, %v1757
    %v1786 = vmul.f32 %v1718, %v1757
    %v1787 = vmul.f32 %v1719, %v1757
    %v1788 = vmul.f32 %v1720, %v1757
    %v1789 = vmul.f32 %v1721, %v1757
    %v1790 = vmul.f32 %v1722, %v1757
    %v1791 = vmul.f32 %v1723, %v1757
    %v1792 = vmul.f32 %v1724, %v1757
    %v1793 = vmul.f32 %v1725, %v1758
    %v1794 = vmul.f32 %v1726, %v1758
    %v1795 = vmul.f32 %v1727, %v1758
    %v1796 = vmul.f32 %v1728, %v1758
    %v1797 = vmul.f32 %v1729, %v1758
    %v1798 = vmul.f32 %v1730, %v1758
    %v1799 = vmul.f32 %v1731, %v1758
    %v1800 = vmul.f32 %v1732, %v1758
    %v1801 = vmul.f32 %v1733, %v1758
    %v1802 = vmul.f32 %v1734, %v1758
    %v1803 = vmul.f32 %v1735, %v1758
    %v1804 = vmul.f32 %v1736, %v1758
    %v1805 = vmul.f32 %v1737, %v1758
    %v1806 = vmul.f32 %v1738, %v1758
    %v1807 = vmul.f32 %v1739, %v1758
    %v1808 = vmul.f32 %v1740, %v1758
    %v1809 = vmul.f32 %v1741, %v1758
    %v1810 = vmul.f32 %v1742, %v1758
    %v1811 = vmul.f32 %v1743, %v1758
    %v1812 = vmul.f32 %v1744, %v1758
    %v1813 = vmul.f32 %v1745, %v1758
    %v1814 = vmul.f32 %v1746, %v1758
    %v1815 = vmul.f32 %v1747, %v1758
    %v1816 = vmul.f32 %v1748, %v1758
    %v1817 = vmul.f32 %v1749, %v1758
    %v1818 = vmul.f32 %v1750, %v1758
    %v1819 = vmul.f32 %v1751, %v1758
    %v1820 = vmul.f32 %v1752, %v1758
    %v1821 = vmul.f32 %v1753, %v1758
    %v1822 = vmul.f32 %v1754, %v1758
    %v1823 = vmul.f32 %v1755, %v1758
    %v1824 = vmul.f32 %v1756, %v1758
    %v1825 = vpack.c.bf16 %v1761, %v1761
    %v1826 = vpack.c.bf16 %v1762, %v1762
    %v1827 = vpack.c.bf16 %v1763, %v1763
    %v1828 = vpack.c.bf16 %v1764, %v1764
    %v1829 = vpack.c.bf16 %v1765, %v1765
    %v1830 = vpack.c.bf16 %v1766, %v1766
    %v1831 = vpack.c.bf16 %v1767, %v1767
    %v1832 = vpack.c.bf16 %v1768, %v1768
    %v1833 = vpack.c.bf16 %v1769, %v1769
    %v1834 = vpack.c.bf16 %v1770, %v1770
    %v1835 = vpack.c.bf16 %v1771, %v1771
    %v1836 = vpack.c.bf16 %v1772, %v1772
    %v1837 = vpack.c.bf16 %v1773, %v1773
    %v1838 = vpack.c.bf16 %v1774, %v1774
    %v1839 = vpack.c.bf16 %v1775, %v1775
    %v1840 = vpack.c.bf16 %v1776, %v1776
    %v1841 = vpack.c.bf16 %v1777, %v1777
    %v1842 = vpack.c.bf16 %v1778, %v1778
    %v1843 = vpack.c.bf16 %v1779, %v1779
    %v1844 = vpack.c.bf16 %v1780, %v1780
    %v1845 = vpack.c.bf16 %v1781, %v1781
    %v1846 = vpack.c.bf16 %v1782, %v1782
    %v1847 = vpack.c.bf16 %v1783, %v1783
    %v1848 = vpack.c.bf16 %v1784, %v1784
    %v1849 = vpack.c.bf16 %v1785, %v1785
    %v1850 = vpack.c.bf16 %v1786, %v1786
    %v1851 = vpack.c.bf16 %v1787, %v1787
    %v1852 = vpack.c.bf16 %v1788, %v1788
    %v1853 = vpack.c.bf16 %v1789, %v1789
    %v1854 = vpack.c.bf16 %v1790, %v1790
    %v1855 = vpack.c.bf16 %v1791, %v1791
    %v1856 = vpack.c.bf16 %v1792, %v1792
    %v1857 = vpack.c.bf16 %v1793, %v1793
    %v1858 = vpack.c.bf16 %v1794, %v1794
    %v1859 = vpack.c.bf16 %v1795, %v1795
    %v1860 = vpack.c.bf16 %v1796, %v1796
    %v1861 = vpack.c.bf16 %v1797, %v1797
    %v1862 = vpack.c.bf16 %v1798, %v1798
    %v1863 = vpack.c.bf16 %v1799, %v1799
    %v1864 = vpack.c.bf16 %v1800, %v1800
    %v1865 = vpack.c.bf16 %v1801, %v1801
    %v1866 = vpack.c.bf16 %v1802, %v1802
    %v1867 = vpack.c.bf16 %v1803, %v1803
    %v1868 = vpack.c.bf16 %v1804, %v1804
    %v1869 = vpack.c.bf16 %v1805, %v1805
    %v1870 = vpack.c.bf16 %v1806, %v1806
    %v1871 = vpack.c.bf16 %v1807, %v1807
    %v1872 = vpack.c.bf16 %v1808, %v1808
    %v1873 = vpack.c.bf16 %v1809, %v1809
    %v1874 = vpack.c.bf16 %v1810, %v1810
    %v1875 = vpack.c.bf16 %v1811, %v1811
    %v1876 = vpack.c.bf16 %v1812, %v1812
    %v1877 = vpack.c.bf16 %v1813, %v1813
    %v1878 = vpack.c.bf16 %v1814, %v1814
    %v1879 = vpack.c.bf16 %v1815, %v1815
    %v1880 = vpack.c.bf16 %v1816, %v1816
    %v1881 = vpack.c.bf16 %v1817, %v1817
    %v1882 = vpack.c.bf16 %v1818, %v1818
    %v1883 = vpack.c.bf16 %v1819, %v1819
    %v1884 = vpack.c.bf16 %v1820, %v1820
    %v1885 = vpack.c.bf16 %v1821, %v1821
    %v1886 = vpack.c.bf16 %v1822, %v1822
    %v1887 = vpack.c.bf16 %v1823, %v1823
    %v1888 = vpack.c.bf16 %v1824, %v1824
    %v1889 = vld [vmem:[#allocation7] sm:$0xf]
    %v1890 = vld [vmem:[#allocation7 + $0x4] sm:$0xf]
    %v1891 = vld [vmem:[#allocation7 + $0x8] sm:$0xf]
    %v1892 = vld [vmem:[#allocation7 + $0xc] sm:$0xf]
    %v1893 = vld [vmem:[#allocation7 + $0x10] sm:$0xf]
    %v1894 = vld [vmem:[#allocation7 + $0x14] sm:$0xf]
    %v1895 = vld [vmem:[#allocation7 + $0x18] sm:$0xf]
    %v1896 = vld [vmem:[#allocation7 + $0x1c] sm:$0xf]
    %v1897 = vld [vmem:[#allocation7 + $0x20] sm:$0xf]
    %v1898 = vld [vmem:[#allocation7 + $0x24] sm:$0xf]
    %v1899 = vld [vmem:[#allocation7 + $0x28] sm:$0xf]
    %v1900 = vld [vmem:[#allocation7 + $0x2c] sm:$0xf]
    %v1901 = vld [vmem:[#allocation7 + $0x30] sm:$0xf]
    %v1902 = vld [vmem:[#allocation7 + $0x34] sm:$0xf]
    %v1903 = vld [vmem:[#allocation7 + $0x38] sm:$0xf]
    %v1904 = vld [vmem:[#allocation7 + $0x3c] sm:$0xf]
    %v1969 = vunpack.c.l.b16 %v1825
    %v1970 = vunpack.c.l.b16 %v1826
    %v1971 = vunpack.c.l.b16 %v1827
    %v1972 = vunpack.c.l.b16 %v1828
    %v1973 = vunpack.c.l.b16 %v1829
    %v1974 = vunpack.c.l.b16 %v1830
    %v1975 = vunpack.c.l.b16 %v1831
    %v1976 = vunpack.c.l.b16 %v1832
    %v1977 = vunpack.c.l.b16 %v1833
    %v1978 = vunpack.c.l.b16 %v1834
    %v1979 = vunpack.c.l.b16 %v1835
    %v1980 = vunpack.c.l.b16 %v1836
    %v1981 = vunpack.c.l.b16 %v1837
    %v1982 = vunpack.c.l.b16 %v1838
    %v1983 = vunpack.c.l.b16 %v1839
    %v1984 = vunpack.c.l.b16 %v1840
    %v1985 = vunpack.c.l.b16 %v1841
    %v1986 = vunpack.c.l.b16 %v1842
    %v1987 = vunpack.c.l.b16 %v1843
    %v1988 = vunpack.c.l.b16 %v1844
    %v1989 = vunpack.c.l.b16 %v1845
    %v1990 = vunpack.c.l.b16 %v1846
    %v1991 = vunpack.c.l.b16 %v1847
    %v1992 = vunpack.c.l.b16 %v1848
    %v1993 = vunpack.c.l.b16 %v1849
    %v1994 = vunpack.c.l.b16 %v1850
    %v1995 = vunpack.c.l.b16 %v1851
    %v1996 = vunpack.c.l.b16 %v1852
    %v1997 = vunpack.c.l.b16 %v1853
    %v1998 = vunpack.c.l.b16 %v1854
    %v1999 = vunpack.c.l.b16 %v1855
    %v2000 = vunpack.c.l.b16 %v1856
    %v2001 = vunpack.c.l.b16 %v1857
    %v2002 = vunpack.c.l.b16 %v1858
    %v2003 = vunpack.c.l.b16 %v1859
    %v2004 = vunpack.c.l.b16 %v1860
    %v2005 = vunpack.c.l.b16 %v1861
    %v2006 = vunpack.c.l.b16 %v1862
    %v2007 = vunpack.c.l.b16 %v1863
    %v2008 = vunpack.c.l.b16 %v1864
    %v2009 = vunpack.c.l.b16 %v1865
    %v2010 = vunpack.c.l.b16 %v1866
    %v2011 = vunpack.c.l.b16 %v1867
    %v2012 = vunpack.c.l.b16 %v1868
    %v2013 = vunpack.c.l.b16 %v1869
    %v2014 = vunpack.c.l.b16 %v1870
    %v2015 = vunpack.c.l.b16 %v1871
    %v2016 = vunpack.c.l.b16 %v1872
    %v2017 = vunpack.c.l.b16 %v1873
    %v2018 = vunpack.c.l.b16 %v1874
    %v2019 = vunpack.c.l.b16 %v1875
    %v2020 = vunpack.c.l.b16 %v1876
    %v2021 = vunpack.c.l.b16 %v1877
    %v2022 = vunpack.c.l.b16 %v1878
    %v2023 = vunpack.c.l.b16 %v1879
    %v2024 = vunpack.c.l.b16 %v1880
    %v2025 = vunpack.c.l.b16 %v1881
    %v2026 = vunpack.c.l.b16 %v1882
    %v2027 = vunpack.c.l.b16 %v1883
    %v2028 = vunpack.c.l.b16 %v1884
    %v2029 = vunpack.c.l.b16 %v1885
    %v2030 = vunpack.c.l.b16 %v1886
    %v2031 = vunpack.c.l.b16 %v1887
    %v2032 = vunpack.c.l.b16 %v1888
    %v2033 = vpack.c.b16 %v1970, %v1969
    %v2034 = vpack.c.b16 %v1972, %v1971
    %v2035 = vpack.c.b16 %v1974, %v1973
    %v2036 = vpack.c.b16 %v1976, %v1975
    %v2037 = vpack.c.b16 %v1978, %v1977
    %v2038 = vpack.c.b16 %v1980, %v1979
    %v2039 = vpack.c.b16 %v1982, %v1981
    %v2040 = vpack.c.b16 %v1984, %v1983
    %v2041 = vpack.c.b16 %v1986, %v1985
    %v2042 = vpack.c.b16 %v1988, %v1987
    %v2043 = vpack.c.b16 %v1990, %v1989
    %v2044 = vpack.c.b16 %v1992, %v1991
    %v2045 = vpack.c.b16 %v1994, %v1993
    %v2046 = vpack.c.b16 %v1996, %v1995
    %v2047 = vpack.c.b16 %v1998, %v1997
    %v2048 = vpack.c.b16 %v2000, %v1999
    %v2049 = vpack.c.b16 %v2002, %v2001
    %v2050 = vpack.c.b16 %v2004, %v2003
    %v2051 = vpack.c.b16 %v2006, %v2005
    %v2052 = vpack.c.b16 %v2008, %v2007
    %v2053 = vpack.c.b16 %v2010, %v2009
    %v2054 = vpack.c.b16 %v2012, %v2011
    %v2055 = vpack.c.b16 %v2014, %v2013
    %v2056 = vpack.c.b16 %v2016, %v2015
    %v2057 = vpack.c.b16 %v2018, %v2017
    %v2058 = vpack.c.b16 %v2020, %v2019
    %v2059 = vpack.c.b16 %v2022, %v2021
    %v2060 = vpack.c.b16 %v2024, %v2023
    %v2061 = vpack.c.b16 %v2026, %v2025
    %v2062 = vpack.c.b16 %v2028, %v2027
    %v2063 = vpack.c.b16 %v2030, %v2029
    %v2064 = vpack.c.b16 %v2032, %v2031
    %v2113 = vunpack.c.l.b16 %v1889
    %v2114 = vunpack.c.l.b16 %v1890
    %v2115 = vunpack.c.l.b16 %v1891
    %v2116 = vunpack.c.l.b16 %v1892
    %v2117 = vunpack.c.l.b16 %v1893
    %v2118 = vunpack.c.l.b16 %v1894
    %v2119 = vunpack.c.l.b16 %v1895
    %v2120 = vunpack.c.l.b16 %v1896
    %v2121 = vunpack.c.l.b16 %v1897
    %v2122 = vunpack.c.l.b16 %v1898
    %v2123 = vunpack.c.l.b16 %v1899
    %v2124 = vunpack.c.l.b16 %v1900
    %v2125 = vunpack.c.l.b16 %v1901
    %v2126 = vunpack.c.l.b16 %v1902
    %v2127 = vunpack.c.l.b16 %v1903
    %v2128 = vunpack.c.l.b16 %v1904
    %v2129 = vpack.c.b16 %v2114, %v2113
    %v2130 = vpack.c.b16 %v2116, %v2115
    %v2131 = vpack.c.b16 %v2118, %v2117
    %v2132 = vpack.c.b16 %v2120, %v2119
    %v2133 = vpack.c.b16 %v2122, %v2121
    %v2134 = vpack.c.b16 %v2124, %v2123
    %v2135 = vpack.c.b16 %v2126, %v2125
    %v2136 = vpack.c.b16 %v2128, %v2127
    %2145 = vmatpush.bf16.msra.mxu0 %v2136
    %2146 = vmatpush.bf16.msra.mxu0 %v2135
    %2147 = vmatpush.bf16.msra.mxu0 %v2134
    %2148 = vmatpush.bf16.msra.mxu0 %v2133
    %2149 = vmatpush.bf16.msra.mxu0 %v2132
    %2150 = vmatpush.bf16.msra.mxu0 %v2131
    %2151 = vmatpush.bf16.msra.mxu0 %v2130
    %2152 = vmatpush.bf16.msra.mxu0 %v2129
    %2153 = vmatmul.bf16.gmra.mxu0 %v2033
    %v2154 = vpop.f32.mrf.mxu0
    %v2155 = vadd.f32 0.0, %v2154
    %v2156 = vpop.f32.mrf.mxu0
    %v2157 = vadd.f32 0.0, %v2156
    %2158 = vmatmul.bf16.gmra.mxu0 %v2034
    %v2159 = vpop.f32.mrf.mxu0
    %v2160 = vadd.f32 0.0, %v2159
    %v2161 = vpop.f32.mrf.mxu0
    %v2162 = vadd.f32 0.0, %v2161
    %2163 = vmatmul.bf16.gmra.mxu0 %v2035
    %v2164 = vpop.f32.mrf.mxu0
    %v2165 = vadd.f32 0.0, %v2164
    %v2166 = vpop.f32.mrf.mxu0
    %v2167 = vadd.f32 0.0, %v2166
    %2168 = vmatmul.bf16.gmra.mxu0 %v2036
    %v2169 = vpop.f32.mrf.mxu0
    %v2170 = vadd.f32 0.0, %v2169
    %v2171 = vpop.f32.mrf.mxu0
    %v2172 = vadd.f32 0.0, %v2171
    %2173 = vmatmul.bf16.gmra.mxu0 %v2037
    %v2174 = vpop.f32.mrf.mxu0
    %v2175 = vadd.f32 0.0, %v2174
    %v2176 = vpop.f32.mrf.mxu0
    %v2177 = vadd.f32 0.0, %v2176
    %2178 = vmatmul.bf16.gmra.mxu0 %v2038
    %v2179 = vpop.f32.mrf.mxu0
    %v2180 = vadd.f32 0.0, %v2179
    %v2181 = vpop.f32.mrf.mxu0
    %v2182 = vadd.f32 0.0, %v2181
    %2183 = vmatmul.bf16.gmra.mxu0 %v2039
    %v2184 = vpop.f32.mrf.mxu0
    %v2185 = vadd.f32 0.0, %v2184
    %v2186 = vpop.f32.mrf.mxu0
    %v2187 = vadd.f32 0.0, %v2186
    %2188 = vmatmul.bf16.gmra.mxu0 %v2040
    %v2189 = vpop.f32.mrf.mxu0
    %v2190 = vadd.f32 0.0, %v2189
    %v2191 = vpop.f32.mrf.mxu0
    %v2192 = vadd.f32 0.0, %v2191
    %2193 = vmatmul.bf16.gmra.mxu0 %v2041
    %v2194 = vpop.f32.mrf.mxu0
    %v2195 = vadd.f32 0.0, %v2194
    %v2196 = vpop.f32.mrf.mxu0
    %v2197 = vadd.f32 0.0, %v2196
    %2198 = vmatmul.bf16.gmra.mxu0 %v2042
    %v2199 = vpop.f32.mrf.mxu0
    %v2200 = vadd.f32 0.0, %v2199
    %v2201 = vpop.f32.mrf.mxu0
    %v2202 = vadd.f32 0.0, %v2201
    %2203 = vmatmul.bf16.gmra.mxu0 %v2043
    %v2204 = vpop.f32.mrf.mxu0
    %v2205 = vadd.f32 0.0, %v2204
    %v2206 = vpop.f32.mrf.mxu0
    %v2207 = vadd.f32 0.0, %v2206
    %2208 = vmatmul.bf16.gmra.mxu0 %v2044
    %v2209 = vpop.f32.mrf.mxu0
    %v2210 = vadd.f32 0.0, %v2209
    %v2211 = vpop.f32.mrf.mxu0
    %v2212 = vadd.f32 0.0, %v2211
    %2213 = vmatmul.bf16.gmra.mxu0 %v2045
    %v2214 = vpop.f32.mrf.mxu0
    %v2215 = vadd.f32 0.0, %v2214
    %v2216 = vpop.f32.mrf.mxu0
    %v2217 = vadd.f32 0.0, %v2216
    %2218 = vmatmul.bf16.gmra.mxu0 %v2046
    %v2219 = vpop.f32.mrf.mxu0
    %v2220 = vadd.f32 0.0, %v2219
    %v2221 = vpop.f32.mrf.mxu0
    %v2222 = vadd.f32 0.0, %v2221
    %2223 = vmatmul.bf16.gmra.mxu0 %v2047
    %v2224 = vpop.f32.mrf.mxu0
    %v2225 = vadd.f32 0.0, %v2224
    %v2226 = vpop.f32.mrf.mxu0
    %v2227 = vadd.f32 0.0, %v2226
    %2228 = vmatmul.bf16.gmra.mxu0 %v2048
    %v2229 = vpop.f32.mrf.mxu0
    %v2230 = vadd.f32 0.0, %v2229
    %v2231 = vpop.f32.mrf.mxu0
    %v2232 = vadd.f32 0.0, %v2231
    %2233 = vmatmul.bf16.gmra.mxu0 %v2049
    %v2234 = vpop.f32.mrf.mxu0
    %v2235 = vadd.f32 0.0, %v2234
    %v2236 = vpop.f32.mrf.mxu0
    %v2237 = vadd.f32 0.0, %v2236
    %2238 = vmatmul.bf16.gmra.mxu0 %v2050
    %v2239 = vpop.f32.mrf.mxu0
    %v2240 = vadd.f32 0.0, %v2239
    %v2241 = vpop.f32.mrf.mxu0
    %v2242 = vadd.f32 0.0, %v2241
    %2243 = vmatmul.bf16.gmra.mxu0 %v2051
    %v2244 = vpop.f32.mrf.mxu0
    %v2245 = vadd.f32 0.0, %v2244
    %v2246 = vpop.f32.mrf.mxu0
    %v2247 = vadd.f32 0.0, %v2246
    %2248 = vmatmul.bf16.gmra.mxu0 %v2052
    %v2249 = vpop.f32.mrf.mxu0
    %v2250 = vadd.f32 0.0, %v2249
    %v2251 = vpop.f32.mrf.mxu0
    %v2252 = vadd.f32 0.0, %v2251
    %2253 = vmatmul.bf16.gmra.mxu0 %v2053
    %v2254 = vpop.f32.mrf.mxu0
    %v2255 = vadd.f32 0.0, %v2254
    %v2256 = vpop.f32.mrf.mxu0
    %v2257 = vadd.f32 0.0, %v2256
    %2258 = vmatmul.bf16.gmra.mxu0 %v2054
    %v2259 = vpop.f32.mrf.mxu0
    %v2260 = vadd.f32 0.0, %v2259
    %v2261 = vpop.f32.mrf.mxu0
    %v2262 = vadd.f32 0.0, %v2261
    %2263 = vmatmul.bf16.gmra.mxu0 %v2055
    %v2264 = vpop.f32.mrf.mxu0
    %v2265 = vadd.f32 0.0, %v2264
    %v2266 = vpop.f32.mrf.mxu0
    %v2267 = vadd.f32 0.0, %v2266
    %2268 = vmatmul.bf16.gmra.mxu0 %v2056
    %v2269 = vpop.f32.mrf.mxu0
    %v2270 = vadd.f32 0.0, %v2269
    %v2271 = vpop.f32.mrf.mxu0
    %v2272 = vadd.f32 0.0, %v2271
    %2273 = vmatmul.bf16.gmra.mxu0 %v2057
    %v2274 = vpop.f32.mrf.mxu0
    %v2275 = vadd.f32 0.0, %v2274
    %v2276 = vpop.f32.mrf.mxu0
    %v2277 = vadd.f32 0.0, %v2276
    %2278 = vmatmul.bf16.gmra.mxu0 %v2058
    %v2279 = vpop.f32.mrf.mxu0
    %v2280 = vadd.f32 0.0, %v2279
    %v2281 = vpop.f32.mrf.mxu0
    %v2282 = vadd.f32 0.0, %v2281
    %2283 = vmatmul.bf16.gmra.mxu0 %v2059
    %v2284 = vpop.f32.mrf.mxu0
    %v2285 = vadd.f32 0.0, %v2284
    %v2286 = vpop.f32.mrf.mxu0
    %v2287 = vadd.f32 0.0, %v2286
    %2288 = vmatmul.bf16.gmra.mxu0 %v2060
    %v2289 = vpop.f32.mrf.mxu0
    %v2290 = vadd.f32 0.0, %v2289
    %v2291 = vpop.f32.mrf.mxu0
    %v2292 = vadd.f32 0.0, %v2291
    %2293 = vmatmul.bf16.gmra.mxu0 %v2061
    %v2294 = vpop.f32.mrf.mxu0
    %v2295 = vadd.f32 0.0, %v2294
    %v2296 = vpop.f32.mrf.mxu0
    %v2297 = vadd.f32 0.0, %v2296
    %2298 = vmatmul.bf16.gmra.mxu0 %v2062
    %v2299 = vpop.f32.mrf.mxu0
    %v2300 = vadd.f32 0.0, %v2299
    %v2301 = vpop.f32.mrf.mxu0
    %v2302 = vadd.f32 0.0, %v2301
    %2303 = vmatmul.bf16.gmra.mxu0 %v2063
    %v2304 = vpop.f32.mrf.mxu0
    %v2305 = vadd.f32 0.0, %v2304
    %v2306 = vpop.f32.mrf.mxu0
    %v2307 = vadd.f32 0.0, %v2306
    %2308 = vmatmul.bf16.gmra.mxu0 %v2064
    %v2309 = vpop.f32.mrf.mxu0
    %v2310 = vadd.f32 0.0, %v2309
    %v2311 = vpop.f32.mrf.mxu0
    %v2312 = vadd.f32 0.0, %v2311
    %2313 = vdwg.mxu0
    %v2314 = vadd.f32 %v1761, %v1762
    %v2315 = vadd.f32 %v2314, %v1763
    %v2316 = vadd.f32 %v2315, %v1764
    %v2317 = vadd.f32 %v2316, %v1765
    %v2318 = vadd.f32 %v2317, %v1766
    %v2319 = vadd.f32 %v2318, %v1767
    %v2320 = vadd.f32 %v2319, %v1768
    %v2321 = vadd.f32 %v2320, %v1769
    %v2322 = vadd.f32 %v2321, %v1770
    %v2323 = vadd.f32 %v2322, %v1771
    %v2324 = vadd.f32 %v2323, %v1772
    %v2325 = vadd.f32 %v2324, %v1773
    %v2326 = vadd.f32 %v2325, %v1774
    %v2327 = vadd.f32 %v2326, %v1775
    %v2328 = vadd.f32 %v2327, %v1776
    %v2329 = vadd.f32 %v2328, %v1777
    %v2330 = vadd.f32 %v2329, %v1778
    %v2331 = vadd.f32 %v2330, %v1779
    %v2332 = vadd.f32 %v2331, %v1780
    %v2333 = vadd.f32 %v2332, %v1781
    %v2334 = vadd.f32 %v2333, %v1782
    %v2335 = vadd.f32 %v2334, %v1783
    %v2336 = vadd.f32 %v2335, %v1784
    %v2337 = vadd.f32 %v2336, %v1785
    %v2338 = vadd.f32 %v2337, %v1786
    %v2339 = vadd.f32 %v2338, %v1787
    %v2340 = vadd.f32 %v2339, %v1788
    %v2341 = vadd.f32 %v2340, %v1789
    %v2342 = vadd.f32 %v2341, %v1790
    %v2343 = vadd.f32 %v2342, %v1791
    %v2344 = vadd.f32 %v2343, %v1792
    %v2345 = vrot.slane %v2344, 4
    %v2346 = vadd.f32 %v2344, %v2345
    %v2347 = vrot.slane %v2346, 2
    %v2348 = vadd.f32 %v2346, %v2347
    %v2349 = vrot.slane %v2348, 1
    %v2350 = vadd.f32 %v2348, %v2349
    %v2351 = vadd.f32 %v1793, %v1794
    %v2352 = vadd.f32 %v2351, %v1795
    %v2353 = vadd.f32 %v2352, %v1796
    %v2354 = vadd.f32 %v2353, %v1797
    %v2355 = vadd.f32 %v2354, %v1798
    %v2356 = vadd.f32 %v2355, %v1799
    %v2357 = vadd.f32 %v2356, %v1800
    %v2358 = vadd.f32 %v2357, %v1801
    %v2359 = vadd.f32 %v2358, %v1802
    %v2360 = vadd.f32 %v2359, %v1803
    %v2361 = vadd.f32 %v2360, %v1804
    %v2362 = vadd.f32 %v2361, %v1805
    %v2363 = vadd.f32 %v2362, %v1806
    %v2364 = vadd.f32 %v2363, %v1807
    %v2365 = vadd.f32 %v2364, %v1808
    %v2366 = vadd.f32 %v2365, %v1809
    %v2367 = vadd.f32 %v2366, %v1810
    %v2368 = vadd.f32 %v2367, %v1811
    %v2369 = vadd.f32 %v2368, %v1812
    %v2370 = vadd.f32 %v2369, %v1813
    %v2371 = vadd.f32 %v2370, %v1814
    %v2372 = vadd.f32 %v2371, %v1815
    %v2373 = vadd.f32 %v2372, %v1816
    %v2374 = vadd.f32 %v2373, %v1817
    %v2375 = vadd.f32 %v2374, %v1818
    %v2376 = vadd.f32 %v2375, %v1819
    %v2377 = vadd.f32 %v2376, %v1820
    %v2378 = vadd.f32 %v2377, %v1821
    %v2379 = vadd.f32 %v2378, %v1822
    %v2380 = vadd.f32 %v2379, %v1823
    %v2381 = vadd.f32 %v2380, %v1824
    %v2382 = vrot.slane %v2381, 4
    %v2383 = vadd.f32 %v2381, %v2382
    %v2384 = vrot.slane %v2383, 2
    %v2385 = vadd.f32 %v2383, %v2384
    %v2386 = vrot.slane %v2385, 1
    %v2387 = vadd.f32 %v2385, %v2386
    %v2388 = vmul.f32 %v2350, 0.00390625
    %v2389 = vmul.f32 %v2387, 0.00390625
    %v2390 = vld [vmem:[#allocation8] sm:$0xff]
    %v2391 = vld [vmem:[#allocation8 + $0x8] sm:$0xff]
    %v2392 = vld [vmem:[#allocation8 + $0x10] sm:$0xff]
    %v2393 = vld [vmem:[#allocation8 + $0x18] sm:$0xff]
    %v2394 = vld [vmem:[#allocation8 + $0x20] sm:$0xff]
    %v2395 = vld [vmem:[#allocation8 + $0x28] sm:$0xff]
    %v2396 = vld [vmem:[#allocation8 + $0x30] sm:$0xff]
    %v2397 = vld [vmem:[#allocation8 + $0x38] sm:$0xff]
    %v2398 = vld [vmem:[#allocation8 + $0x40] sm:$0xff]
    %v2399 = vld [vmem:[#allocation8 + $0x48] sm:$0xff]
    %v2400 = vld [vmem:[#allocation8 + $0x50] sm:$0xff]
    %v2401 = vld [vmem:[#allocation8 + $0x58] sm:$0xff]
    %v2402 = vld [vmem:[#allocation8 + $0x60] sm:$0xff]
    %v2403 = vld [vmem:[#allocation8 + $0x68] sm:$0xff]
    %v2404 = vld [vmem:[#allocation8 + $0x70] sm:$0xff]
    %v2405 = vld [vmem:[#allocation8 + $0x78] sm:$0xff]
    %v2408 = vsel %vm1578, %v2389, %v2388
    %2410 = vmatpush.msra.mxu0 %v2405
    %2411 = vmatpush.msra.mxu0 %v2404
    %2412 = vmatpush.msra.mxu0 %v2403
    %2413 = vmatpush.msra.mxu0 %v2402
    %2414 = vmatpush.msra.mxu0 %v2401
    %2415 = vmatpush.msra.mxu0 %v2400
    %2416 = vmatpush.msra.mxu0 %v2399
    %2417 = vmatpush.msra.mxu0 %v2398
    %2418 = vmatpush.msra.mxu0 %v2397
    %2419 = vmatpush.msra.mxu0 %v2396
    %2420 = vmatpush.msra.mxu0 %v2395
    %2421 = vmatpush.msra.mxu0 %v2394
    %2422 = vmatpush.msra.mxu0 %v2393
    %2423 = vmatpush.msra.mxu0 %v2392
    %2424 = vmatpush.msra.mxu0 %v2391
    %2425 = vmatpush.msra.mxu0 %v2390
    %2426 = vmatmul.f32.gmra.mxu0 %v2408
    %v2427 = vpop.f32.mrf.mxu0
    %v2428 = vadd.f32 0.0, %v2427
    %2429 = vdwg.mxu0
    %v2430 = vmax.f32 %v2155, %v2160
    %v2431 = vmax.f32 %v2157, %v2162
    %v2432 = vmax.f32 %v2430, %v2165
    %v2433 = vmax.f32 %v2431, %v2167
    %v2434 = vmax.f32 %v2432, %v2170
    %v2435 = vmax.f32 %v2433, %v2172
    %v2436 = vmax.f32 %v2434, %v2175
    %v2437 = vmax.f32 %v2435, %v2177
    %v2438 = vmax.f32 %v2436, %v2180
    %v2439 = vmax.f32 %v2437, %v2182
    %v2440 = vmax.f32 %v2438, %v2185
    %v2441 = vmax.f32 %v2439, %v2187
    %v2442 = vmax.f32 %v2440, %v2190
    %v2443 = vmax.f32 %v2441, %v2192
    %v2444 = vmax.f32 %v2442, %v2195
    %v2445 = vmax.f32 %v2443, %v2197
    %v2446 = vmax.f32 %v2444, %v2200
    %v2447 = vmax.f32 %v2445, %v2202
    %v2448 = vmax.f32 %v2446, %v2205
    %v2449 = vmax.f32 %v2447, %v2207
    %v2450 = vmax.f32 %v2448, %v2210
    %v2451 = vmax.f32 %v2449, %v2212
    %v2452 = vmax.f32 %v2450, %v2215
    %v2453 = vmax.f32 %v2451, %v2217
    %v2454 = vmax.f32 %v2452, %v2220
    %v2455 = vmax.f32 %v2453, %v2222
    %v2456 = vmax.f32 %v2454, %v2225
    %v2457 = vmax.f32 %v2455, %v2227
    %v2458 = vmax.f32 %v2456, %v2230
    %v2459 = vmax.f32 %v2457, %v2232
    %v2460 = vmax.f32 %v2458, %v2459
    %v2461 = vrot.slane %v2460, 4
    %v2462 = vmax.f32 %v2460, %v2461
    %v2463 = vrot.slane %v2462, 2
    %v2464 = vmax.f32 %v2462, %v2463
    %v2465 = vrot.slane %v2464, 1
    %v2466 = vmax.f32 %v2464, %v2465
    %v2467 = vmax.f32 %v2235, %v2240
    %v2468 = vmax.f32 %v2237, %v2242
    %v2469 = vmax.f32 %v2467, %v2245
    %v2470 = vmax.f32 %v2468, %v2247
    %v2471 = vmax.f32 %v2469, %v2250
    %v2472 = vmax.f32 %v2470, %v2252
    %v2473 = vmax.f32 %v2471, %v2255
    %v2474 = vmax.f32 %v2472, %v2257
    %v2475 = vmax.f32 %v2473, %v2260
    %v2476 = vmax.f32 %v2474, %v2262
    %v2477 = vmax.f32 %v2475, %v2265
    %v2478 = vmax.f32 %v2476, %v2267
    %v2479 = vmax.f32 %v2477, %v2270
    %v2480 = vmax.f32 %v2478, %v2272
    %v2481 = vmax.f32 %v2479, %v2275
    %v2482 = vmax.f32 %v2480, %v2277
    %v2483 = vmax.f32 %v2481, %v2280
    %v2484 = vmax.f32 %v2482, %v2282
    %v2485 = vmax.f32 %v2483, %v2285
    %v2486 = vmax.f32 %v2484, %v2287
    %v2487 = vmax.f32 %v2485, %v2290
    %v2488 = vmax.f32 %v2486, %v2292
    %v2489 = vmax.f32 %v2487, %v2295
    %v2490 = vmax.f32 %v2488, %v2297
    %v2491 = vmax.f32 %v2489, %v2300
    %v2492 = vmax.f32 %v2490, %v2302
    %v2493 = vmax.f32 %v2491, %v2305
    %v2494 = vmax.f32 %v2492, %v2307
    %v2495 = vmax.f32 %v2493, %v2310
    %v2496 = vmax.f32 %v2494, %v2312
    %v2497 = vmax.f32 %v2495, %v2496
    %v2498 = vrot.slane %v2497, 4
    %v2499 = vmax.f32 %v2497, %v2498
    %v2500 = vrot.slane %v2499, 2
    %v2501 = vmax.f32 %v2499, %v2500
    %v2502 = vrot.slane %v2501, 1
    %v2503 = vmax.f32 %v2501, %v2502
    %v2504 = vsub.f32 %v2155, %v2466
    %v2505 = vsub.f32 %v2157, %v2466
    %v2506 = vsub.f32 %v2160, %v2466
    %v2507 = vsub.f32 %v2162, %v2466
    %v2508 = vsub.f32 %v2165, %v2466
    %v2509 = vsub.f32 %v2167, %v2466
    %v2510 = vsub.f32 %v2170, %v2466
    %v2511 = vsub.f32 %v2172, %v2466
    %v2512 = vsub.f32 %v2175, %v2466
    %v2513 = vsub.f32 %v2177, %v2466
    %v2514 = vsub.f32 %v2180, %v2466
    %v2515 = vsub.f32 %v2182, %v2466
    %v2516 = vsub.f32 %v2185, %v2466
    %v2517 = vsub.f32 %v2187, %v2466
    %v2518 = vsub.f32 %v2190, %v2466
    %v2519 = vsub.f32 %v2192, %v2466
    %v2520 = vsub.f32 %v2195, %v2466
    %v2521 = vsub.f32 %v2197, %v2466
    %v2522 = vsub.f32 %v2200, %v2466
    %v2523 = vsub.f32 %v2202, %v2466
    %v2524 = vsub.f32 %v2205, %v2466
    %v2525 = vsub.f32 %v2207, %v2466
    %v2526 = vsub.f32 %v2210, %v2466
    %v2527 = vsub.f32 %v2212, %v2466
    %v2528 = vsub.f32 %v2215, %v2466
    %v2529 = vsub.f32 %v2217, %v2466
    %v2530 = vsub.f32 %v2220, %v2466
    %v2531 = vsub.f32 %v2222, %v2466
    %v2532 = vsub.f32 %v2225, %v2466
    %v2533 = vsub.f32 %v2227, %v2466
    %v2534 = vsub.f32 %v2230, %v2466
    %v2535 = vsub.f32 %v2232, %v2466
    %v2536 = vsub.f32 %v2235, %v2503
    %v2537 = vsub.f32 %v2237, %v2503
    %v2538 = vsub.f32 %v2240, %v2503
    %v2539 = vsub.f32 %v2242, %v2503
    %v2540 = vsub.f32 %v2245, %v2503
    %v2541 = vsub.f32 %v2247, %v2503
    %v2542 = vsub.f32 %v2250, %v2503
    %v2543 = vsub.f32 %v2252, %v2503
    %v2544 = vsub.f32 %v2255, %v2503
    %v2545 = vsub.f32 %v2257, %v2503
    %v2546 = vsub.f32 %v2260, %v2503
    %v2547 = vsub.f32 %v2262, %v2503
    %v2548 = vsub.f32 %v2265, %v2503
    %v2549 = vsub.f32 %v2267, %v2503
    %v2550 = vsub.f32 %v2270, %v2503
    %v2551 = vsub.f32 %v2272, %v2503
    %v2552 = vsub.f32 %v2275, %v2503
    %v2553 = vsub.f32 %v2277, %v2503
    %v2554 = vsub.f32 %v2280, %v2503
    %v2555 = vsub.f32 %v2282, %v2503
    %v2556 = vsub.f32 %v2285, %v2503
    %v2557 = vsub.f32 %v2287, %v2503
    %v2558 = vsub.f32 %v2290, %v2503
    %v2559 = vsub.f32 %v2292, %v2503
    %v2560 = vsub.f32 %v2295, %v2503
    %v2561 = vsub.f32 %v2297, %v2503
    %v2562 = vsub.f32 %v2300, %v2503
    %v2563 = vsub.f32 %v2302, %v2503
    %v2564 = vsub.f32 %v2305, %v2503
    %v2565 = vsub.f32 %v2307, %v2503
    %v2566 = vsub.f32 %v2310, %v2503
    %v2567 = vsub.f32 %v2312, %v2503
    %v2568 = vmul.f32 %v2504, 1.442695
    %v2569 = vpow.pop %v2568
    %v2570 = vmul.f32 %v2505, 1.442695
    %v2571 = vpow.pop %v2570
    %v2572 = vmul.f32 %v2506, 1.442695
    %v2573 = vpow.pop %v2572
    %v2574 = vmul.f32 %v2507, 1.442695
    %v2575 = vpow.pop %v2574
    %v2576 = vmul.f32 %v2508, 1.442695
    %v2577 = vpow.pop %v2576
    %v2578 = vmul.f32 %v2509, 1.442695
    %v2579 = vpow.pop %v2578
    %v2580 = vmul.f32 %v2510, 1.442695
    %v2581 = vpow.pop %v2580
    %v2582 = vmul.f32 %v2511, 1.442695
    %v2583 = vpow.pop %v2582
    %v2584 = vmul.f32 %v2512, 1.442695
    %v2585 = vpow.pop %v2584
    %v2586 = vmul.f32 %v2513, 1.442695
    %v2587 = vpow.pop %v2586
    %v2588 = vmul.f32 %v2514, 1.442695
    %v2589 = vpow.pop %v2588
    %v2590 = vmul.f32 %v2515, 1.442695
    %v2591 = vpow.pop %v2590
    %v2592 = vmul.f32 %v2516, 1.442695
    %v2593 = vpow.pop %v2592
    %v2594 = vmul.f32 %v2517, 1.442695
    %v2595 = vpow.pop %v2594
    %v2596 = vmul.f32 %v2518, 1.442695
    %v2597 = vpow.pop %v2596
    %v2598 = vmul.f32 %v2519, 1.442695
    %v2599 = vpow.pop %v2598
    %v2600 = vmul.f32 %v2520, 1.442695
    %v2601 = vpow.pop %v2600
    %v2602 = vmul.f32 %v2521, 1.442695
    %v2603 = vpow.pop %v2602
    %v2604 = vmul.f32 %v2522, 1.442695
    %v2605 = vpow.pop %v2604
    %v2606 = vmul.f32 %v2523, 1.442695
    %v2607 = vpow.pop %v2606
    %v2608 = vmul.f32 %v2524, 1.442695
    %v2609 = vpow.pop %v2608
    %v2610 = vmul.f32 %v2525, 1.442695
    %v2611 = vpow.pop %v2610
    %v2612 = vmul.f32 %v2526, 1.442695
    %v2613 = vpow.pop %v2612
    %v2614 = vmul.f32 %v2527, 1.442695
    %v2615 = vpow.pop %v2614
    %v2616 = vmul.f32 %v2528, 1.442695
    %v2617 = vpow.pop %v2616
    %v2618 = vmul.f32 %v2529, 1.442695
    %v2619 = vpow.pop %v2618
    %v2620 = vmul.f32 %v2530, 1.442695
    %v2621 = vpow.pop %v2620
    %v2622 = vmul.f32 %v2531, 1.442695
    %v2623 = vpow.pop %v2622
    %v2624 = vmul.f32 %v2532, 1.442695
    %v2625 = vpow.pop %v2624
    %v2626 = vmul.f32 %v2533, 1.442695
    %v2627 = vpow.pop %v2626
    %v2628 = vmul.f32 %v2534, 1.442695
    %v2629 = vpow.pop %v2628
    %v2630 = vmul.f32 %v2535, 1.442695
    %v2631 = vpow.pop %v2630
    %v2632 = vmul.f32 %v2536, 1.442695
    %v2633 = vpow.pop %v2632
    %v2634 = vmul.f32 %v2537, 1.442695
    %v2635 = vpow.pop %v2634
    %v2636 = vmul.f32 %v2538, 1.442695
    %v2637 = vpow.pop %v2636
    %v2638 = vmul.f32 %v2539, 1.442695
    %v2639 = vpow.pop %v2638
    %v2640 = vmul.f32 %v2540, 1.442695
    %v2641 = vpow.pop %v2640
    %v2642 = vmul.f32 %v2541, 1.442695
    %v2643 = vpow.pop %v2642
    %v2644 = vmul.f32 %v2542, 1.442695
    %v2645 = vpow.pop %v2644
    %v2646 = vmul.f32 %v2543, 1.442695
    %v2647 = vpow.pop %v2646
    %v2648 = vmul.f32 %v2544, 1.442695
    %v2649 = vpow.pop %v2648
    %v2650 = vmul.f32 %v2545, 1.442695
    %v2651 = vpow.pop %v2650
    %v2652 = vmul.f32 %v2546, 1.442695
    %v2653 = vpow.pop %v2652
    %v2654 = vmul.f32 %v2547, 1.442695
    %v2655 = vpow.pop %v2654
    %v2656 = vmul.f32 %v2548, 1.442695
    %v2657 = vpow.pop %v2656
    %v2658 = vmul.f32 %v2549, 1.442695
    %v2659 = vpow.pop %v2658
    %v2660 = vmul.f32 %v2550, 1.442695
    %v2661 = vpow.pop %v2660
    %v2662 = vmul.f32 %v2551, 1.442695
    %v2663 = vpow.pop %v2662
    %v2664 = vmul.f32 %v2552, 1.442695
    %v2665 = vpow.pop %v2664
    %v2666 = vmul.f32 %v2553, 1.442695
    %v2667 = vpow.pop %v2666
    %v2668 = vmul.f32 %v2554, 1.442695
    %v2669 = vpow.pop %v2668
    %v2670 = vmul.f32 %v2555, 1.442695
    %v2671 = vpow.pop %v2670
    %v2672 = vmul.f32 %v2556, 1.442695
    %v2673 = vpow.pop %v2672
    %v2674 = vmul.f32 %v2557, 1.442695
    %v2675 = vpow.pop %v2674
    %v2676 = vmul.f32 %v2558, 1.442695
    %v2677 = vpow.pop %v2676
    %v2678 = vmul.f32 %v2559, 1.442695
    %v2679 = vpow.pop %v2678
    %v2680 = vmul.f32 %v2560, 1.442695
    %v2681 = vpow.pop %v2680
    %v2682 = vmul.f32 %v2561, 1.442695
    %v2683 = vpow.pop %v2682
    %v2684 = vmul.f32 %v2562, 1.442695
    %v2685 = vpow.pop %v2684
    %v2686 = vmul.f32 %v2563, 1.442695
    %v2687 = vpow.pop %v2686
    %v2688 = vmul.f32 %v2564, 1.442695
    %v2689 = vpow.pop %v2688
    %v2690 = vmul.f32 %v2565, 1.442695
    %v2691 = vpow.pop %v2690
    %v2692 = vmul.f32 %v2566, 1.442695
    %v2693 = vpow.pop %v2692
    %v2694 = vmul.f32 %v2567, 1.442695
    %v2695 = vpow.pop %v2694
    %v2696 = vadd.f32 %v2569, %v2571
    %v2697 = vadd.f32 %v2696, %v2573
    %v2698 = vadd.f32 %v2697, %v2575
    %v2699 = vadd.f32 %v2698, %v2577
    %v2700 = vadd.f32 %v2699, %v2579
    %v2701 = vadd.f32 %v2700, %v2581
    %v2702 = vadd.f32 %v2701, %v2583
    %v2703 = vadd.f32 %v2702, %v2585
    %v2704 = vadd.f32 %v2703, %v2587
    %v2705 = vadd.f32 %v2704, %v2589
    %v2706 = vadd.f32 %v2705, %v2591
    %v2707 = vadd.f32 %v2706, %v2593
    %v2708 = vadd.f32 %v2707, %v2595
    %v2709 = vadd.f32 %v2708, %v2597
    %v2710 = vadd.f32 %v2709, %v2599
    %v2711 = vadd.f32 %v2710, %v2601
    %v2712 = vadd.f32 %v2711, %v2603
    %v2713 = vadd.f32 %v2712, %v2605
    %v2714 = vadd.f32 %v2713, %v2607
    %v2715 = vadd.f32 %v2714, %v2609
    %v2716 = vadd.f32 %v2715, %v2611
    %v2717 = vadd.f32 %v2716, %v2613
    %v2718 = vadd.f32 %v2717, %v2615
    %v2719 = vadd.f32 %v2718, %v2617
    %v2720 = vadd.f32 %v2719, %v2619
    %v2721 = vadd.f32 %v2720, %v2621
    %v2722 = vadd.f32 %v2721, %v2623
    %v2723 = vadd.f32 %v2722, %v2625
    %v2724 = vadd.f32 %v2723, %v2627
    %v2725 = vadd.f32 %v2724, %v2629
    %v2726 = vadd.f32 %v2725, %v2631
    %v2727 = vrot.slane %v2726, 4
    %v2728 = vadd.f32 %v2726, %v2727
    %v2729 = vrot.slane %v2728, 2
    %v2730 = vadd.f32 %v2728, %v2729
    %v2731 = vrot.slane %v2730, 1
    %v2732 = vadd.f32 %v2730, %v2731
    %v2733 = vadd.f32 %v2633, %v2635
    %v2734 = vadd.f32 %v2733, %v2637
    %v2735 = vadd.f32 %v2734, %v2639
    %v2736 = vadd.f32 %v2735, %v2641
    %v2737 = vadd.f32 %v2736, %v2643
    %v2738 = vadd.f32 %v2737, %v2645
    %v2739 = vadd.f32 %v2738, %v2647
    %v2740 = vadd.f32 %v2739, %v2649
    %v2741 = vadd.f32 %v2740, %v2651
    %v2742 = vadd.f32 %v2741, %v2653
    %v2743 = vadd.f32 %v2742, %v2655
    %v2744 = vadd.f32 %v2743, %v2657
    %v2745 = vadd.f32 %v2744, %v2659
    %v2746 = vadd.f32 %v2745, %v2661
    %v2747 = vadd.f32 %v2746, %v2663
    %v2748 = vadd.f32 %v2747, %v2665
    %v2749 = vadd.f32 %v2748, %v2667
    %v2750 = vadd.f32 %v2749, %v2669
    %v2751 = vadd.f32 %v2750, %v2671
    %v2752 = vadd.f32 %v2751, %v2673
    %v2753 = vadd.f32 %v2752, %v2675
    %v2754 = vadd.f32 %v2753, %v2677
    %v2755 = vadd.f32 %v2754, %v2679
    %v2756 = vadd.f32 %v2755, %v2681
    %v2757 = vadd.f32 %v2756, %v2683
    %v2758 = vadd.f32 %v2757, %v2685
    %v2759 = vadd.f32 %v2758, %v2687
    %v2760 = vadd.f32 %v2759, %v2689
    %v2761 = vadd.f32 %v2760, %v2691
    %v2762 = vadd.f32 %v2761, %v2693
    %v2763 = vadd.f32 %v2762, %v2695
    %v2764 = vrot.slane %v2763, 4
    %v2765 = vadd.f32 %v2763, %v2764
    %v2766 = vrot.slane %v2765, 2
    %v2767 = vadd.f32 %v2765, %v2766
    %v2768 = vrot.slane %v2767, 1
    %v2769 = vadd.f32 %v2767, %v2768
    %v2771 = vrot.slane %v2428, 1
    %v2773 = vrcp.pop %v2732
    %v2774 = vrcp.pop %v2769
    %v2775 = vmul.f32 %v2428, %v2773
    %v2776 = vmul.f32 %v2771, %v2774
    %v2778 = vperm.slane %v2775, 0
    %v2780 = vmul.f32 %v2569, %v2778
    %v2781 = vmul.f32 %v2571, %v2778
    %v2782 = vmul.f32 %v2573, %v2778
    %v2783 = vmul.f32 %v2575, %v2778
    %v2784 = vmul.f32 %v2577, %v2778
    %v2785 = vmul.f32 %v2579, %v2778
    %v2786 = vmul.f32 %v2581, %v2778
    %v2787 = vmul.f32 %v2583, %v2778
    %v2788 = vmul.f32 %v2585, %v2778
    %v2789 = vmul.f32 %v2587, %v2778
    %v2790 = vmul.f32 %v2589, %v2778
    %v2791 = vmul.f32 %v2591, %v2778
    %v2792 = vmul.f32 %v2593, %v2778
    %v2793 = vmul.f32 %v2595, %v2778
    %v2794 = vmul.f32 %v2597, %v2778
    %v2795 = vmul.f32 %v2599, %v2778
    %v2796 = vmul.f32 %v2601, %v2778
    %v2797 = vmul.f32 %v2603, %v2778
    %v2798 = vmul.f32 %v2605, %v2778
    %v2799 = vmul.f32 %v2607, %v2778
    %v2800 = vmul.f32 %v2609, %v2778
    %v2801 = vmul.f32 %v2611, %v2778
    %v2802 = vmul.f32 %v2613, %v2778
    %v2803 = vmul.f32 %v2615, %v2778
    %v2804 = vmul.f32 %v2617, %v2778
    %v2805 = vmul.f32 %v2619, %v2778
    %v2806 = vmul.f32 %v2621, %v2778
    %v2807 = vmul.f32 %v2623, %v2778
    %v2808 = vmul.f32 %v2625, %v2778
    %v2809 = vmul.f32 %v2627, %v2778
    %v2810 = vmul.f32 %v2629, %v2778
    %v2811 = vmul.f32 %v2631, %v2778
    %2812 = vadd.xlane.f32.xlu0 %v2780
    %v2813 = vpop.xlane.xlu0 %2812
    %2814 = vadd.xlane.f32.xlu0 %v2781
    %v2815 = vpop.xlane.xlu0 %2814
    %2816 = vadd.xlane.f32.xlu0 %v2782
    %v2817 = vpop.xlane.xlu0 %2816
    %2818 = vadd.xlane.f32.xlu0 %v2783
    %v2819 = vpop.xlane.xlu0 %2818
    %2820 = vadd.xlane.f32.xlu0 %v2784
    %v2821 = vpop.xlane.xlu0 %2820
    %2822 = vadd.xlane.f32.xlu0 %v2785
    %v2823 = vpop.xlane.xlu0 %2822
    %2824 = vadd.xlane.f32.xlu0 %v2786
    %v2825 = vpop.xlane.xlu0 %2824
    %2826 = vadd.xlane.f32.xlu0 %v2787
    %v2827 = vpop.xlane.xlu0 %2826
    %2828 = vadd.xlane.f32.xlu0 %v2788
    %v2829 = vpop.xlane.xlu0 %2828
    %2830 = vadd.xlane.f32.xlu0 %v2789
    %v2831 = vpop.xlane.xlu0 %2830
    %2832 = vadd.xlane.f32.xlu0 %v2790
    %v2833 = vpop.xlane.xlu0 %2832
    %2834 = vadd.xlane.f32.xlu0 %v2791
    %v2835 = vpop.xlane.xlu0 %2834
    %2836 = vadd.xlane.f32.xlu0 %v2792
    %v2837 = vpop.xlane.xlu0 %2836
    %2838 = vadd.xlane.f32.xlu0 %v2793
    %v2839 = vpop.xlane.xlu0 %2838
    %2840 = vadd.xlane.f32.xlu0 %v2794
    %v2841 = vpop.xlane.xlu0 %2840
    %2842 = vadd.xlane.f32.xlu0 %v2795
    %v2843 = vpop.xlane.xlu0 %2842
    %2844 = vadd.xlane.f32.xlu0 %v2796
    %v2845 = vpop.xlane.xlu0 %2844
    %2846 = vadd.xlane.f32.xlu0 %v2797
    %v2847 = vpop.xlane.xlu0 %2846
    %2848 = vadd.xlane.f32.xlu0 %v2798
    %v2849 = vpop.xlane.xlu0 %2848
    %2850 = vadd.xlane.f32.xlu0 %v2799
    %v2851 = vpop.xlane.xlu0 %2850
    %2852 = vadd.xlane.f32.xlu0 %v2800
    %v2853 = vpop.xlane.xlu0 %2852
    %2854 = vadd.xlane.f32.xlu0 %v2801
    %v2855 = vpop.xlane.xlu0 %2854
    %2856 = vadd.xlane.f32.xlu0 %v2802
    %v2857 = vpop.xlane.xlu0 %2856
    %2858 = vadd.xlane.f32.xlu0 %v2803
    %v2859 = vpop.xlane.xlu0 %2858
    %2860 = vadd.xlane.f32.xlu0 %v2804
    %v2861 = vpop.xlane.xlu0 %2860
    %2862 = vadd.xlane.f32.xlu0 %v2805
    %v2863 = vpop.xlane.xlu0 %2862
    %2864 = vadd.xlane.f32.xlu0 %v2806
    %v2865 = vpop.xlane.xlu0 %2864
    %2866 = vadd.xlane.f32.xlu0 %v2807
    %v2867 = vpop.xlane.xlu0 %2866
    %2868 = vadd.xlane.f32.xlu0 %v2808
    %v2869 = vpop.xlane.xlu0 %2868
    %2870 = vadd.xlane.f32.xlu0 %v2809
    %v2871 = vpop.xlane.xlu0 %2870
    %2872 = vadd.xlane.f32.xlu0 %v2810
    %v2873 = vpop.xlane.xlu0 %2872
    %2874 = vadd.xlane.f32.xlu0 %v2811
    %v2875 = vpop.xlane.xlu0 %2874
    %v2877 = vperm.slane %v2776, 0
    %v2879 = vmul.f32 %v2633, %v2877
    %v2880 = vmul.f32 %v2635, %v2877
    %v2881 = vmul.f32 %v2637, %v2877
    %v2882 = vmul.f32 %v2639, %v2877
    %v2883 = vmul.f32 %v2641, %v2877
    %v2884 = vmul.f32 %v2643, %v2877
    %v2885 = vmul.f32 %v2645, %v2877
    %v2886 = vmul.f32 %v2647, %v2877
    %v2887 = vmul.f32 %v2649, %v2877
    %v2888 = vmul.f32 %v2651, %v2877
    %v2889 = vmul.f32 %v2653, %v2877
    %v2890 = vmul.f32 %v2655, %v2877
    %v2891 = vmul.f32 %v2657, %v2877
    %v2892 = vmul.f32 %v2659, %v2877
    %v2893 = vmul.f32 %v2661, %v2877
    %v2894 = vmul.f32 %v2663, %v2877
    %v2895 = vmul.f32 %v2665, %v2877
    %v2896 = vmul.f32 %v2667, %v2877
    %v2897 = vmul.f32 %v2669, %v2877
    %v2898 = vmul.f32 %v2671, %v2877
    %v2899 = vmul.f32 %v2673, %v2877
    %v2900 = vmul.f32 %v2675, %v2877
    %v2901 = vmul.f32 %v2677, %v2877
    %v2902 = vmul.f32 %v2679, %v2877
    %v2903 = vmul.f32 %v2681, %v2877
    %v2904 = vmul.f32 %v2683, %v2877
    %v2905 = vmul.f32 %v2685, %v2877
    %v2906 = vmul.f32 %v2687, %v2877
    %v2907 = vmul.f32 %v2689, %v2877
    %v2908 = vmul.f32 %v2691, %v2877
    %v2909 = vmul.f32 %v2693, %v2877
    %v2910 = vmul.f32 %v2695, %v2877
    %2911 = vadd.xlane.f32.xlu0 %v2879
    %v2912 = vpop.xlane.xlu0 %2911
    %2913 = vadd.xlane.f32.xlu0 %v2880
    %v2914 = vpop.xlane.xlu0 %2913
    %2915 = vadd.xlane.f32.xlu0 %v2881
    %v2916 = vpop.xlane.xlu0 %2915
    %2917 = vadd.xlane.f32.xlu0 %v2882
    %v2918 = vpop.xlane.xlu0 %2917
    %2919 = vadd.xlane.f32.xlu0 %v2883
    %v2920 = vpop.xlane.xlu0 %2919
    %2921 = vadd.xlane.f32.xlu0 %v2884
    %v2922 = vpop.xlane.xlu0 %2921
    %2923 = vadd.xlane.f32.xlu0 %v2885
    %v2924 = vpop.xlane.xlu0 %2923
    %2925 = vadd.xlane.f32.xlu0 %v2886
    %v2926 = vpop.xlane.xlu0 %2925
    %2927 = vadd.xlane.f32.xlu0 %v2887
    %v2928 = vpop.xlane.xlu0 %2927
    %2929 = vadd.xlane.f32.xlu0 %v2888
    %v2930 = vpop.xlane.xlu0 %2929
    %2931 = vadd.xlane.f32.xlu0 %v2889
    %v2932 = vpop.xlane.xlu0 %2931
    %2933 = vadd.xlane.f32.xlu0 %v2890
    %v2934 = vpop.xlane.xlu0 %2933
    %2935 = vadd.xlane.f32.xlu0 %v2891
    %v2936 = vpop.xlane.xlu0 %2935
    %2937 = vadd.xlane.f32.xlu0 %v2892
    %v2938 = vpop.xlane.xlu0 %2937
    %2939 = vadd.xlane.f32.xlu0 %v2893
    %v2940 = vpop.xlane.xlu0 %2939
    %2941 = vadd.xlane.f32.xlu0 %v2894
    %v2942 = vpop.xlane.xlu0 %2941
    %2943 = vadd.xlane.f32.xlu0 %v2895
    %v2944 = vpop.xlane.xlu0 %2943
    %2945 = vadd.xlane.f32.xlu0 %v2896
    %v2946 = vpop.xlane.xlu0 %2945
    %2947 = vadd.xlane.f32.xlu0 %v2897
    %v2948 = vpop.xlane.xlu0 %2947
    %2949 = vadd.xlane.f32.xlu0 %v2898
    %v2950 = vpop.xlane.xlu0 %2949
    %2951 = vadd.xlane.f32.xlu0 %v2899
    %v2952 = vpop.xlane.xlu0 %2951
    %2953 = vadd.xlane.f32.xlu0 %v2900
    %v2954 = vpop.xlane.xlu0 %2953
    %2955 = vadd.xlane.f32.xlu0 %v2901
    %v2956 = vpop.xlane.xlu0 %2955
    %2957 = vadd.xlane.f32.xlu0 %v2902
    %v2958 = vpop.xlane.xlu0 %2957
    %2959 = vadd.xlane.f32.xlu0 %v2903
    %v2960 = vpop.xlane.xlu0 %2959
    %2961 = vadd.xlane.f32.xlu0 %v2904
    %v2962 = vpop.xlane.xlu0 %2961
    %2963 = vadd.xlane.f32.xlu0 %v2905
    %v2964 = vpop.xlane.xlu0 %2963
    %2965 = vadd.xlane.f32.xlu0 %v2906
    %v2966 = vpop.xlane.xlu0 %2965
    %2967 = vadd.xlane.f32.xlu0 %v2907
    %v2968 = vpop.xlane.xlu0 %2967
    %2969 = vadd.xlane.f32.xlu0 %v2908
    %v2970 = vpop.xlane.xlu0 %2969
    %2971 = vadd.xlane.f32.xlu0 %v2909
    %v2972 = vpop.xlane.xlu0 %2971
    %2973 = vadd.xlane.f32.xlu0 %v2910
    %v2974 = vpop.xlane.xlu0 %2973
    %v2975 = vxor.u32 %v2813, 2147483648
    %v2976 = vxor.u32 %v2815, 2147483648
    %v2977 = vxor.u32 %v2817, 2147483648
    %v2978 = vxor.u32 %v2819, 2147483648
    %v2979 = vxor.u32 %v2821, 2147483648
    %v2980 = vxor.u32 %v2823, 2147483648
    %v2981 = vxor.u32 %v2825, 2147483648
    %v2982 = vxor.u32 %v2827, 2147483648
    %v2983 = vxor.u32 %v2829, 2147483648
    %v2984 = vxor.u32 %v2831, 2147483648
    %v2985 = vxor.u32 %v2833, 2147483648
    %v2986 = vxor.u32 %v2835, 2147483648
    %v2987 = vxor.u32 %v2837, 2147483648
    %v2988 = vxor.u32 %v2839, 2147483648
    %v2989 = vxor.u32 %v2841, 2147483648
    %v2990 = vxor.u32 %v2843, 2147483648
    %v2991 = vxor.u32 %v2845, 2147483648
    %v2992 = vxor.u32 %v2847, 2147483648
    %v2993 = vxor.u32 %v2849, 2147483648
    %v2994 = vxor.u32 %v2851, 2147483648
    %v2995 = vxor.u32 %v2853, 2147483648
    %v2996 = vxor.u32 %v2855, 2147483648
    %v2997 = vxor.u32 %v2857, 2147483648
    %v2998 = vxor.u32 %v2859, 2147483648
    %v2999 = vxor.u32 %v2861, 2147483648
    %v3000 = vxor.u32 %v2863, 2147483648
    %v3001 = vxor.u32 %v2865, 2147483648
    %v3002 = vxor.u32 %v2867, 2147483648
    %v3003 = vxor.u32 %v2869, 2147483648
    %v3004 = vxor.u32 %v2871, 2147483648
    %v3005 = vxor.u32 %v2873, 2147483648
    %v3006 = vxor.u32 %v2875, 2147483648
    %v3007 = vxor.u32 %v2912, 2147483648
    %v3008 = vxor.u32 %v2914, 2147483648
    %v3009 = vxor.u32 %v2916, 2147483648
    %v3010 = vxor.u32 %v2918, 2147483648
    %v3011 = vxor.u32 %v2920, 2147483648
    %v3012 = vxor.u32 %v2922, 2147483648
    %v3013 = vxor.u32 %v2924, 2147483648
    %v3014 = vxor.u32 %v2926, 2147483648
    %v3015 = vxor.u32 %v2928, 2147483648
    %v3016 = vxor.u32 %v2930, 2147483648
    %v3017 = vxor.u32 %v2932, 2147483648
    %v3018 = vxor.u32 %v2934, 2147483648
    %v3019 = vxor.u32 %v2936, 2147483648
    %v3020 = vxor.u32 %v2938, 2147483648
    %v3021 = vxor.u32 %v2940, 2147483648
    %v3022 = vxor.u32 %v2942, 2147483648
    %v3023 = vxor.u32 %v2944, 2147483648
    %v3024 = vxor.u32 %v2946, 2147483648
    %v3025 = vxor.u32 %v2948, 2147483648
    %v3026 = vxor.u32 %v2950, 2147483648
    %v3027 = vxor.u32 %v2952, 2147483648
    %v3028 = vxor.u32 %v2954, 2147483648
    %v3029 = vxor.u32 %v2956, 2147483648
    %v3030 = vxor.u32 %v2958, 2147483648
    %v3031 = vxor.u32 %v2960, 2147483648
    %v3032 = vxor.u32 %v2962, 2147483648
    %v3033 = vxor.u32 %v2964, 2147483648
    %v3034 = vxor.u32 %v2966, 2147483648
    %v3035 = vxor.u32 %v2968, 2147483648
    %v3036 = vxor.u32 %v2970, 2147483648
    %v3037 = vxor.u32 %v2972, 2147483648
    %v3038 = vxor.u32 %v2974, 2147483648
    %v3039 = vmul.f32 %v2975, 1.442695
    %v3040 = vpow.pop %v3039
    %v3041 = vmul.f32 %v2976, 1.442695
    %v3042 = vpow.pop %v3041
    %v3043 = vmul.f32 %v2977, 1.442695
    %v3044 = vpow.pop %v3043
    %v3045 = vmul.f32 %v2978, 1.442695
    %v3046 = vpow.pop %v3045
    %v3047 = vmul.f32 %v2979, 1.442695
    %v3048 = vpow.pop %v3047
    %v3049 = vmul.f32 %v2980, 1.442695
    %v3050 = vpow.pop %v3049
    %v3051 = vmul.f32 %v2981, 1.442695
    %v3052 = vpow.pop %v3051
    %v3053 = vmul.f32 %v2982, 1.442695
    %v3054 = vpow.pop %v3053
    %v3055 = vmul.f32 %v2983, 1.442695
    %v3056 = vpow.pop %v3055
    %v3057 = vmul.f32 %v2984, 1.442695
    %v3058 = vpow.pop %v3057
    %v3059 = vmul.f32 %v2985, 1.442695
    %v3060 = vpow.pop %v3059
    %v3061 = vmul.f32 %v2986, 1.442695
    %v3062 = vpow.pop %v3061
    %v3063 = vmul.f32 %v2987, 1.442695
    %v3064 = vpow.pop %v3063
    %v3065 = vmul.f32 %v2988, 1.442695
    %v3066 = vpow.pop %v3065
    %v3067 = vmul.f32 %v2989, 1.442695
    %v3068 = vpow.pop %v3067
    %v3069 = vmul.f32 %v2990, 1.442695
    %v3070 = vpow.pop %v3069
    %v3071 = vmul.f32 %v2991, 1.442695
    %v3072 = vpow.pop %v3071
    %v3073 = vmul.f32 %v2992, 1.442695
    %v3074 = vpow.pop %v3073
    %v3075 = vmul.f32 %v2993, 1.442695
    %v3076 = vpow.pop %v3075
    %v3077 = vmul.f32 %v2994, 1.442695
    %v3078 = vpow.pop %v3077
    %v3079 = vmul.f32 %v2995, 1.442695
    %v3080 = vpow.pop %v3079
    %v3081 = vmul.f32 %v2996, 1.442695
    %v3082 = vpow.pop %v3081
    %v3083 = vmul.f32 %v2997, 1.442695
    %v3084 = vpow.pop %v3083
    %v3085 = vmul.f32 %v2998, 1.442695
    %v3086 = vpow.pop %v3085
    %v3087 = vmul.f32 %v2999, 1.442695
    %v3088 = vpow.pop %v3087
    %v3089 = vmul.f32 %v3000, 1.442695
    %v3090 = vpow.pop %v3089
    %v3091 = vmul.f32 %v3001, 1.442695
    %v3092 = vpow.pop %v3091
    %v3093 = vmul.f32 %v3002, 1.442695
    %v3094 = vpow.pop %v3093
    %v3095 = vmul.f32 %v3003, 1.442695
    %v3096 = vpow.pop %v3095
    %v3097 = vmul.f32 %v3004, 1.442695
    %v3098 = vpow.pop %v3097
    %v3099 = vmul.f32 %v3005, 1.442695
    %v3100 = vpow.pop %v3099
    %v3101 = vmul.f32 %v3006, 1.442695
    %v3102 = vpow.pop %v3101
    %v3103 = vmul.f32 %v3007, 1.442695
    %v3104 = vpow.pop %v3103
    %v3105 = vmul.f32 %v3008, 1.442695
    %v3106 = vpow.pop %v3105
    %v3107 = vmul.f32 %v3009, 1.442695
    %v3108 = vpow.pop %v3107
    %v3109 = vmul.f32 %v3010, 1.442695
    %v3110 = vpow.pop %v3109
    %v3111 = vmul.f32 %v3011, 1.442695
    %v3112 = vpow.pop %v3111
    %v3113 = vmul.f32 %v3012, 1.442695
    %v3114 = vpow.pop %v3113
    %v3115 = vmul.f32 %v3013, 1.442695
    %v3116 = vpow.pop %v3115
    %v3117 = vmul.f32 %v3014, 1.442695
    %v3118 = vpow.pop %v3117
    %v3119 = vmul.f32 %v3015, 1.442695
    %v3120 = vpow.pop %v3119
    %v3121 = vmul.f32 %v3016, 1.442695
    %v3122 = vpow.pop %v3121
    %v3123 = vmul.f32 %v3017, 1.442695
    %v3124 = vpow.pop %v3123
    %v3125 = vmul.f32 %v3018, 1.442695
    %v3126 = vpow.pop %v3125
    %v3127 = vmul.f32 %v3019, 1.442695
    %v3128 = vpow.pop %v3127
    %v3129 = vmul.f32 %v3020, 1.442695
    %v3130 = vpow.pop %v3129
    %v3131 = vmul.f32 %v3021, 1.442695
    %v3132 = vpow.pop %v3131
    %v3133 = vmul.f32 %v3022, 1.442695
    %v3134 = vpow.pop %v3133
    %v3135 = vmul.f32 %v3023, 1.442695
    %v3136 = vpow.pop %v3135
    %v3137 = vmul.f32 %v3024, 1.442695
    %v3138 = vpow.pop %v3137
    %v3139 = vmul.f32 %v3025, 1.442695
    %v3140 = vpow.pop %v3139
    %v3141 = vmul.f32 %v3026, 1.442695
    %v3142 = vpow.pop %v3141
    %v3143 = vmul.f32 %v3027, 1.442695
    %v3144 = vpow.pop %v3143
    %v3145 = vmul.f32 %v3028, 1.442695
    %v3146 = vpow.pop %v3145
    %v3147 = vmul.f32 %v3029, 1.442695
    %v3148 = vpow.pop %v3147
    %v3149 = vmul.f32 %v3030, 1.442695
    %v3150 = vpow.pop %v3149
    %v3151 = vmul.f32 %v3031, 1.442695
    %v3152 = vpow.pop %v3151
    %v3153 = vmul.f32 %v3032, 1.442695
    %v3154 = vpow.pop %v3153
    %v3155 = vmul.f32 %v3033, 1.442695
    %v3156 = vpow.pop %v3155
    %v3157 = vmul.f32 %v3034, 1.442695
    %v3158 = vpow.pop %v3157
    %v3159 = vmul.f32 %v3035, 1.442695
    %v3160 = vpow.pop %v3159
    %v3161 = vmul.f32 %v3036, 1.442695
    %v3162 = vpow.pop %v3161
    %v3163 = vmul.f32 %v3037, 1.442695
    %v3164 = vpow.pop %v3163
    %v3165 = vmul.f32 %v3038, 1.442695
    %v3166 = vpow.pop %v3165
    %v3167 = vadd.f32 %v3040, 1.0
    %v3168 = vadd.f32 %v3042, 1.0
    %v3169 = vadd.f32 %v3044, 1.0
    %v3170 = vadd.f32 %v3046, 1.0
    %v3171 = vadd.f32 %v3048, 1.0
    %v3172 = vadd.f32 %v3050, 1.0
    %v3173 = vadd.f32 %v3052, 1.0
    %v3174 = vadd.f32 %v3054, 1.0
    %v3175 = vadd.f32 %v3056, 1.0
    %v3176 = vadd.f32 %v3058, 1.0
    %v3177 = vadd.f32 %v3060, 1.0
    %v3178 = vadd.f32 %v3062, 1.0
    %v3179 = vadd.f32 %v3064, 1.0
    %v3180 = vadd.f32 %v3066, 1.0
    %v3181 = vadd.f32 %v3068, 1.0
    %v3182 = vadd.f32 %v3070, 1.0
    %v3183 = vadd.f32 %v3072, 1.0
    %v3184 = vadd.f32 %v3074, 1.0
    %v3185 = vadd.f32 %v3076, 1.0
    %v3186 = vadd.f32 %v3078, 1.0
    %v3187 = vadd.f32 %v3080, 1.0
    %v3188 = vadd.f32 %v3082, 1.0
    %v3189 = vadd.f32 %v3084, 1.0
    %v3190 = vadd.f32 %v3086, 1.0
    %v3191 = vadd.f32 %v3088, 1.0
    %v3192 = vadd.f32 %v3090, 1.0
    %v3193 = vadd.f32 %v3092, 1.0
    %v3194 = vadd.f32 %v3094, 1.0
    %v3195 = vadd.f32 %v3096, 1.0
    %v3196 = vadd.f32 %v3098, 1.0
    %v3197 = vadd.f32 %v3100, 1.0
    %v3198 = vadd.f32 %v3102, 1.0
    %v3199 = vadd.f32 %v3104, 1.0
    %v3200 = vadd.f32 %v3106, 1.0
    %v3201 = vadd.f32 %v3108, 1.0
    %v3202 = vadd.f32 %v3110, 1.0
    %v3203 = vadd.f32 %v3112, 1.0
    %v3204 = vadd.f32 %v3114, 1.0
    %v3205 = vadd.f32 %v3116, 1.0
    %v3206 = vadd.f32 %v3118, 1.0
    %v3207 = vadd.f32 %v3120, 1.0
    %v3208 = vadd.f32 %v3122, 1.0
    %v3209 = vadd.f32 %v3124, 1.0
    %v3210 = vadd.f32 %v3126, 1.0
    %v3211 = vadd.f32 %v3128, 1.0
    %v3212 = vadd.f32 %v3130, 1.0
    %v3213 = vadd.f32 %v3132, 1.0
    %v3214 = vadd.f32 %v3134, 1.0
    %v3215 = vadd.f32 %v3136, 1.0
    %v3216 = vadd.f32 %v3138, 1.0
    %v3217 = vadd.f32 %v3140, 1.0
    %v3218 = vadd.f32 %v3142, 1.0
    %v3219 = vadd.f32 %v3144, 1.0
    %v3220 = vadd.f32 %v3146, 1.0
    %v3221 = vadd.f32 %v3148, 1.0
    %v3222 = vadd.f32 %v3150, 1.0
    %v3223 = vadd.f32 %v3152, 1.0
    %v3224 = vadd.f32 %v3154, 1.0
    %v3225 = vadd.f32 %v3156, 1.0
    %v3226 = vadd.f32 %v3158, 1.0
    %v3227 = vadd.f32 %v3160, 1.0
    %v3228 = vadd.f32 %v3162, 1.0
    %v3229 = vadd.f32 %v3164, 1.0
    %v3230 = vadd.f32 %v3166, 1.0
    %v3231 = vrcp.pop %v3167
    %v3232 = vmul.f32 %v3167, %v3231
    %v3233 = vsub.f32 1.0, %v3232
    %v3234 = vmul.f32 %v3231, %v3233
    %v3235 = vadd.f32 %v3231, %v3234
    %vm3236 = vweird.f32 %v3167
    %vm3237 = vweird.f32 %v3231
    %vm3238 = vmor %vm3236, %vm3237
    %v3239 = vsel %vm3238, %v3231, %v3235
    %v3240 = vand.u32 2147483647, %v3167
    %vm3241 = vcmp.eq.f32.partialorder %v3240, 8.507059e+37
    %v3242 = vand.u32 %v3167, 2147483648
    %v3243 = vor.u32 1.1754944e-38, %v3242
    %v3244 = vsel %vm3241, %v3243, %v3239
    %v3245 = vmul.f32 1.0, %v3244
    %v3246 = vrcp.pop %v3168
    %v3247 = vmul.f32 %v3168, %v3246
    %v3248 = vsub.f32 1.0, %v3247
    %v3249 = vmul.f32 %v3246, %v3248
    %v3250 = vadd.f32 %v3246, %v3249
    %vm3251 = vweird.f32 %v3168
    %vm3252 = vweird.f32 %v3246
    %vm3253 = vmor %vm3251, %vm3252
    %v3254 = vsel %vm3253, %v3246, %v3250
    %v3255 = vand.u32 2147483647, %v3168
    %vm3256 = vcmp.eq.f32.partialorder %v3255, 8.507059e+37
    %v3257 = vand.u32 %v3168, 2147483648
    %v3258 = vor.u32 1.1754944e-38, %v3257
    %v3259 = vsel %vm3256, %v3258, %v3254
    %v3260 = vmul.f32 1.0, %v3259
    %v3261 = vrcp.pop %v3169
    %v3262 = vmul.f32 %v3169, %v3261
    %v3263 = vsub.f32 1.0, %v3262
    %v3264 = vmul.f32 %v3261, %v3263
    %v3265 = vadd.f32 %v3261, %v3264
    %vm3266 = vweird.f32 %v3169
    %vm3267 = vweird.f32 %v3261
    %vm3268 = vmor %vm3266, %vm3267
    %v3269 = vsel %vm3268, %v3261, %v3265
    %v3270 = vand.u32 2147483647, %v3169
    %vm3271 = vcmp.eq.f32.partialorder %v3270, 8.507059e+37
    %v3272 = vand.u32 %v3169, 2147483648
    %v3273 = vor.u32 1.1754944e-38, %v3272
    %v3274 = vsel %vm3271, %v3273, %v3269
    %v3275 = vmul.f32 1.0, %v3274
    %v3276 = vrcp.pop %v3170
    %v3277 = vmul.f32 %v3170, %v3276
    %v3278 = vsub.f32 1.0, %v3277
    %v3279 = vmul.f32 %v3276, %v3278
    %v3280 = vadd.f32 %v3276, %v3279
    %vm3281 = vweird.f32 %v3170
    %vm3282 = vweird.f32 %v3276
    %vm3283 = vmor %vm3281, %vm3282
    %v3284 = vsel %vm3283, %v3276, %v3280
    %v3285 = vand.u32 2147483647, %v3170
    %vm3286 = vcmp.eq.f32.partialorder %v3285, 8.507059e+37
    %v3287 = vand.u32 %v3170, 2147483648
    %v3288 = vor.u32 1.1754944e-38, %v3287
    %v3289 = vsel %vm3286, %v3288, %v3284
    %v3290 = vmul.f32 1.0, %v3289
    %v3291 = vrcp.pop %v3171
    %v3292 = vmul.f32 %v3171, %v3291
    %v3293 = vsub.f32 1.0, %v3292
    %v3294 = vmul.f32 %v3291, %v3293
    %v3295 = vadd.f32 %v3291, %v3294
    %vm3296 = vweird.f32 %v3171
    %vm3297 = vweird.f32 %v3291
    %vm3298 = vmor %vm3296, %vm3297
    %v3299 = vsel %vm3298, %v3291, %v3295
    %v3300 = vand.u32 2147483647, %v3171
    %vm3301 = vcmp.eq.f32.partialorder %v3300, 8.507059e+37
    %v3302 = vand.u32 %v3171, 2147483648
    %v3303 = vor.u32 1.1754944e-38, %v3302
    %v3304 = vsel %vm3301, %v3303, %v3299
    %v3305 = vmul.f32 1.0, %v3304
    %v3306 = vrcp.pop %v3172
    %v3307 = vmul.f32 %v3172, %v3306
    %v3308 = vsub.f32 1.0, %v3307
    %v3309 = vmul.f32 %v3306, %v3308
    %v3310 = vadd.f32 %v3306, %v3309
    %vm3311 = vweird.f32 %v3172
    %vm3312 = vweird.f32 %v3306
    %vm3313 = vmor %vm3311, %vm3312
    %v3314 = vsel %vm3313, %v3306, %v3310
    %v3315 = vand.u32 2147483647, %v3172
    %vm3316 = vcmp.eq.f32.partialorder %v3315, 8.507059e+37
    %v3317 = vand.u32 %v3172, 2147483648
    %v3318 = vor.u32 1.1754944e-38, %v3317
    %v3319 = vsel %vm3316, %v3318, %v3314
    %v3320 = vmul.f32 1.0, %v3319
    %v3321 = vrcp.pop %v3173
    %v3322 = vmul.f32 %v3173, %v3321
    %v3323 = vsub.f32 1.0, %v3322
    %v3324 = vmul.f32 %v3321, %v3323
    %v3325 = vadd.f32 %v3321, %v3324
    %vm3326 = vweird.f32 %v3173
    %vm3327 = vweird.f32 %v3321
    %vm3328 = vmor %vm3326, %vm3327
    %v3329 = vsel %vm3328, %v3321, %v3325
    %v3330 = vand.u32 2147483647, %v3173
    %vm3331 = vcmp.eq.f32.partialorder %v3330, 8.507059e+37
    %v3332 = vand.u32 %v3173, 2147483648
    %v3333 = vor.u32 1.1754944e-38, %v3332
    %v3334 = vsel %vm3331, %v3333, %v3329
    %v3335 = vmul.f32 1.0, %v3334
    %v3336 = vrcp.pop %v3174
    %v3337 = vmul.f32 %v3174, %v3336
    %v3338 = vsub.f32 1.0, %v3337
    %v3339 = vmul.f32 %v3336, %v3338
    %v3340 = vadd.f32 %v3336, %v3339
    %vm3341 = vweird.f32 %v3174
    %vm3342 = vweird.f32 %v3336
    %vm3343 = vmor %vm3341, %vm3342
    %v3344 = vsel %vm3343, %v3336, %v3340
    %v3345 = vand.u32 2147483647, %v3174
    %vm3346 = vcmp.eq.f32.partialorder %v3345, 8.507059e+37
    %v3347 = vand.u32 %v3174, 2147483648
    %v3348 = vor.u32 1.1754944e-38, %v3347
    %v3349 = vsel %vm3346, %v3348, %v3344
    %v3350 = vmul.f32 1.0, %v3349
    %v3351 = vrcp.pop %v3175
    %v3352 = vmul.f32 %v3175, %v3351
    %v3353 = vsub.f32 1.0, %v3352
    %v3354 = vmul.f32 %v3351, %v3353
    %v3355 = vadd.f32 %v3351, %v3354
    %vm3356 = vweird.f32 %v3175
    %vm3357 = vweird.f32 %v3351
    %vm3358 = vmor %vm3356, %vm3357
    %v3359 = vsel %vm3358, %v3351, %v3355
    %v3360 = vand.u32 2147483647, %v3175
    %vm3361 = vcmp.eq.f32.partialorder %v3360, 8.507059e+37
    %v3362 = vand.u32 %v3175, 2147483648
    %v3363 = vor.u32 1.1754944e-38, %v3362
    %v3364 = vsel %vm3361, %v3363, %v3359
    %v3365 = vmul.f32 1.0, %v3364
    %v3366 = vrcp.pop %v3176
    %v3367 = vmul.f32 %v3176, %v3366
    %v3368 = vsub.f32 1.0, %v3367
    %v3369 = vmul.f32 %v3366, %v3368
    %v3370 = vadd.f32 %v3366, %v3369
    %vm3371 = vweird.f32 %v3176
    %vm3372 = vweird.f32 %v3366
    %vm3373 = vmor %vm3371, %vm3372
    %v3374 = vsel %vm3373, %v3366, %v3370
    %v3375 = vand.u32 2147483647, %v3176
    %vm3376 = vcmp.eq.f32.partialorder %v3375, 8.507059e+37
    %v3377 = vand.u32 %v3176, 2147483648
    %v3378 = vor.u32 1.1754944e-38, %v3377
    %v3379 = vsel %vm3376, %v3378, %v3374
    %v3380 = vmul.f32 1.0, %v3379
    %v3381 = vrcp.pop %v3177
    %v3382 = vmul.f32 %v3177, %v3381
    %v3383 = vsub.f32 1.0, %v3382
    %v3384 = vmul.f32 %v3381, %v3383
    %v3385 = vadd.f32 %v3381, %v3384
    %vm3386 = vweird.f32 %v3177
    %vm3387 = vweird.f32 %v3381
    %vm3388 = vmor %vm3386, %vm3387
    %v3389 = vsel %vm3388, %v3381, %v3385
    %v3390 = vand.u32 2147483647, %v3177
    %vm3391 = vcmp.eq.f32.partialorder %v3390, 8.507059e+37
    %v3392 = vand.u32 %v3177, 2147483648
    %v3393 = vor.u32 1.1754944e-38, %v3392
    %v3394 = vsel %vm3391, %v3393, %v3389
    %v3395 = vmul.f32 1.0, %v3394
    %v3396 = vrcp.pop %v3178
    %v3397 = vmul.f32 %v3178, %v3396
    %v3398 = vsub.f32 1.0, %v3397
    %v3399 = vmul.f32 %v3396, %v3398
    %v3400 = vadd.f32 %v3396, %v3399
    %vm3401 = vweird.f32 %v3178
    %vm3402 = vweird.f32 %v3396
    %vm3403 = vmor %vm3401, %vm3402
    %v3404 = vsel %vm3403, %v3396, %v3400
    %v3405 = vand.u32 2147483647, %v3178
    %vm3406 = vcmp.eq.f32.partialorder %v3405, 8.507059e+37
    %v3407 = vand.u32 %v3178, 2147483648
    %v3408 = vor.u32 1.1754944e-38, %v3407
    %v3409 = vsel %vm3406, %v3408, %v3404
    %v3410 = vmul.f32 1.0, %v3409
    %v3411 = vrcp.pop %v3179
    %v3412 = vmul.f32 %v3179, %v3411
    %v3413 = vsub.f32 1.0, %v3412
    %v3414 = vmul.f32 %v3411, %v3413
    %v3415 = vadd.f32 %v3411, %v3414
    %vm3416 = vweird.f32 %v3179
    %vm3417 = vweird.f32 %v3411
    %vm3418 = vmor %vm3416, %vm3417
    %v3419 = vsel %vm3418, %v3411, %v3415
    %v3420 = vand.u32 2147483647, %v3179
    %vm3421 = vcmp.eq.f32.partialorder %v3420, 8.507059e+37
    %v3422 = vand.u32 %v3179, 2147483648
    %v3423 = vor.u32 1.1754944e-38, %v3422
    %v3424 = vsel %vm3421, %v3423, %v3419
    %v3425 = vmul.f32 1.0, %v3424
    %v3426 = vrcp.pop %v3180
    %v3427 = vmul.f32 %v3180, %v3426
    %v3428 = vsub.f32 1.0, %v3427
    %v3429 = vmul.f32 %v3426, %v3428
    %v3430 = vadd.f32 %v3426, %v3429
    %vm3431 = vweird.f32 %v3180
    %vm3432 = vweird.f32 %v3426
    %vm3433 = vmor %vm3431, %vm3432
    %v3434 = vsel %vm3433, %v3426, %v3430
    %v3435 = vand.u32 2147483647, %v3180
    %vm3436 = vcmp.eq.f32.partialorder %v3435, 8.507059e+37
    %v3437 = vand.u32 %v3180, 2147483648
    %v3438 = vor.u32 1.1754944e-38, %v3437
    %v3439 = vsel %vm3436, %v3438, %v3434
    %v3440 = vmul.f32 1.0, %v3439
    %v3441 = vrcp.pop %v3181
    %v3442 = vmul.f32 %v3181, %v3441
    %v3443 = vsub.f32 1.0, %v3442
    %v3444 = vmul.f32 %v3441, %v3443
    %v3445 = vadd.f32 %v3441, %v3444
    %vm3446 = vweird.f32 %v3181
    %vm3447 = vweird.f32 %v3441
    %vm3448 = vmor %vm3446, %vm3447
    %v3449 = vsel %vm3448, %v3441, %v3445
    %v3450 = vand.u32 2147483647, %v3181
    %vm3451 = vcmp.eq.f32.partialorder %v3450, 8.507059e+37
    %v3452 = vand.u32 %v3181, 2147483648
    %v3453 = vor.u32 1.1754944e-38, %v3452
    %v3454 = vsel %vm3451, %v3453, %v3449
    %v3455 = vmul.f32 1.0, %v3454
    %v3456 = vrcp.pop %v3182
    %v3457 = vmul.f32 %v3182, %v3456
    %v3458 = vsub.f32 1.0, %v3457
    %v3459 = vmul.f32 %v3456, %v3458
    %v3460 = vadd.f32 %v3456, %v3459
    %vm3461 = vweird.f32 %v3182
    %vm3462 = vweird.f32 %v3456
    %vm3463 = vmor %vm3461, %vm3462
    %v3464 = vsel %vm3463, %v3456, %v3460
    %v3465 = vand.u32 2147483647, %v3182
    %vm3466 = vcmp.eq.f32.partialorder %v3465, 8.507059e+37
    %v3467 = vand.u32 %v3182, 2147483648
    %v3468 = vor.u32 1.1754944e-38, %v3467
    %v3469 = vsel %vm3466, %v3468, %v3464
    %v3470 = vmul.f32 1.0, %v3469
    %v3471 = vrcp.pop %v3183
    %v3472 = vmul.f32 %v3183, %v3471
    %v3473 = vsub.f32 1.0, %v3472
    %v3474 = vmul.f32 %v3471, %v3473
    %v3475 = vadd.f32 %v3471, %v3474
    %vm3476 = vweird.f32 %v3183
    %vm3477 = vweird.f32 %v3471
    %vm3478 = vmor %vm3476, %vm3477
    %v3479 = vsel %vm3478, %v3471, %v3475
    %v3480 = vand.u32 2147483647, %v3183
    %vm3481 = vcmp.eq.f32.partialorder %v3480, 8.507059e+37
    %v3482 = vand.u32 %v3183, 2147483648
    %v3483 = vor.u32 1.1754944e-38, %v3482
    %v3484 = vsel %vm3481, %v3483, %v3479
    %v3485 = vmul.f32 1.0, %v3484
    %v3486 = vrcp.pop %v3184
    %v3487 = vmul.f32 %v3184, %v3486
    %v3488 = vsub.f32 1.0, %v3487
    %v3489 = vmul.f32 %v3486, %v3488
    %v3490 = vadd.f32 %v3486, %v3489
    %vm3491 = vweird.f32 %v3184
    %vm3492 = vweird.f32 %v3486
    %vm3493 = vmor %vm3491, %vm3492
    %v3494 = vsel %vm3493, %v3486, %v3490
    %v3495 = vand.u32 2147483647, %v3184
    %vm3496 = vcmp.eq.f32.partialorder %v3495, 8.507059e+37
    %v3497 = vand.u32 %v3184, 2147483648
    %v3498 = vor.u32 1.1754944e-38, %v3497
    %v3499 = vsel %vm3496, %v3498, %v3494
    %v3500 = vmul.f32 1.0, %v3499
    %v3501 = vrcp.pop %v3185
    %v3502 = vmul.f32 %v3185, %v3501
    %v3503 = vsub.f32 1.0, %v3502
    %v3504 = vmul.f32 %v3501, %v3503
    %v3505 = vadd.f32 %v3501, %v3504
    %vm3506 = vweird.f32 %v3185
    %vm3507 = vweird.f32 %v3501
    %vm3508 = vmor %vm3506, %vm3507
    %v3509 = vsel %vm3508, %v3501, %v3505
    %v3510 = vand.u32 2147483647, %v3185
    %vm3511 = vcmp.eq.f32.partialorder %v3510, 8.507059e+37
    %v3512 = vand.u32 %v3185, 2147483648
    %v3513 = vor.u32 1.1754944e-38, %v3512
    %v3514 = vsel %vm3511, %v3513, %v3509
    %v3515 = vmul.f32 1.0, %v3514
    %v3516 = vrcp.pop %v3186
    %v3517 = vmul.f32 %v3186, %v3516
    %v3518 = vsub.f32 1.0, %v3517
    %v3519 = vmul.f32 %v3516, %v3518
    %v3520 = vadd.f32 %v3516, %v3519
    %vm3521 = vweird.f32 %v3186
    %vm3522 = vweird.f32 %v3516
    %vm3523 = vmor %vm3521, %vm3522
    %v3524 = vsel %vm3523, %v3516, %v3520
    %v3525 = vand.u32 2147483647, %v3186
    %vm3526 = vcmp.eq.f32.partialorder %v3525, 8.507059e+37
    %v3527 = vand.u32 %v3186, 2147483648
    %v3528 = vor.u32 1.1754944e-38, %v3527
    %v3529 = vsel %vm3526, %v3528, %v3524
    %v3530 = vmul.f32 1.0, %v3529
    %v3531 = vrcp.pop %v3187
    %v3532 = vmul.f32 %v3187, %v3531
    %v3533 = vsub.f32 1.0, %v3532
    %v3534 = vmul.f32 %v3531, %v3533
    %v3535 = vadd.f32 %v3531, %v3534
    %vm3536 = vweird.f32 %v3187
    %vm3537 = vweird.f32 %v3531
    %vm3538 = vmor %vm3536, %vm3537
    %v3539 = vsel %vm3538, %v3531, %v3535
    %v3540 = vand.u32 2147483647, %v3187
    %vm3541 = vcmp.eq.f32.partialorder %v3540, 8.507059e+37
    %v3542 = vand.u32 %v3187, 2147483648
    %v3543 = vor.u32 1.1754944e-38, %v3542
    %v3544 = vsel %vm3541, %v3543, %v3539
    %v3545 = vmul.f32 1.0, %v3544
    %v3546 = vrcp.pop %v3188
    %v3547 = vmul.f32 %v3188, %v3546
    %v3548 = vsub.f32 1.0, %v3547
    %v3549 = vmul.f32 %v3546, %v3548
    %v3550 = vadd.f32 %v3546, %v3549
    %vm3551 = vweird.f32 %v3188
    %vm3552 = vweird.f32 %v3546
    %vm3553 = vmor %vm3551, %vm3552
    %v3554 = vsel %vm3553, %v3546, %v3550
    %v3555 = vand.u32 2147483647, %v3188
    %vm3556 = vcmp.eq.f32.partialorder %v3555, 8.507059e+37
    %v3557 = vand.u32 %v3188, 2147483648
    %v3558 = vor.u32 1.1754944e-38, %v3557
    %v3559 = vsel %vm3556, %v3558, %v3554
    %v3560 = vmul.f32 1.0, %v3559
    %v3561 = vrcp.pop %v3189
    %v3562 = vmul.f32 %v3189, %v3561
    %v3563 = vsub.f32 1.0, %v3562
    %v3564 = vmul.f32 %v3561, %v3563
    %v3565 = vadd.f32 %v3561, %v3564
    %vm3566 = vweird.f32 %v3189
    %vm3567 = vweird.f32 %v3561
    %vm3568 = vmor %vm3566, %vm3567
    %v3569 = vsel %vm3568, %v3561, %v3565
    %v3570 = vand.u32 2147483647, %v3189
    %vm3571 = vcmp.eq.f32.partialorder %v3570, 8.507059e+37
    %v3572 = vand.u32 %v3189, 2147483648
    %v3573 = vor.u32 1.1754944e-38, %v3572
    %v3574 = vsel %vm3571, %v3573, %v3569
    %v3575 = vmul.f32 1.0, %v3574
    %v3576 = vrcp.pop %v3190
    %v3577 = vmul.f32 %v3190, %v3576
    %v3578 = vsub.f32 1.0, %v3577
    %v3579 = vmul.f32 %v3576, %v3578
    %v3580 = vadd.f32 %v3576, %v3579
    %vm3581 = vweird.f32 %v3190
    %vm3582 = vweird.f32 %v3576
    %vm3583 = vmor %vm3581, %vm3582
    %v3584 = vsel %vm3583, %v3576, %v3580
    %v3585 = vand.u32 2147483647, %v3190
    %vm3586 = vcmp.eq.f32.partialorder %v3585, 8.507059e+37
    %v3587 = vand.u32 %v3190, 2147483648
    %v3588 = vor.u32 1.1754944e-38, %v3587
    %v3589 = vsel %vm3586, %v3588, %v3584
    %v3590 = vmul.f32 1.0, %v3589
    %v3591 = vrcp.pop %v3191
    %v3592 = vmul.f32 %v3191, %v3591
    %v3593 = vsub.f32 1.0, %v3592
    %v3594 = vmul.f32 %v3591, %v3593
    %v3595 = vadd.f32 %v3591, %v3594
    %vm3596 = vweird.f32 %v3191
    %vm3597 = vweird.f32 %v3591
    %vm3598 = vmor %vm3596, %vm3597
    %v3599 = vsel %vm3598, %v3591, %v3595
    %v3600 = vand.u32 2147483647, %v3191
    %vm3601 = vcmp.eq.f32.partialorder %v3600, 8.507059e+37
    %v3602 = vand.u32 %v3191, 2147483648
    %v3603 = vor.u32 1.1754944e-38, %v3602
    %v3604 = vsel %vm3601, %v3603, %v3599
    %v3605 = vmul.f32 1.0, %v3604
    %v3606 = vrcp.pop %v3192
    %v3607 = vmul.f32 %v3192, %v3606
    %v3608 = vsub.f32 1.0, %v3607
    %v3609 = vmul.f32 %v3606, %v3608
    %v3610 = vadd.f32 %v3606, %v3609
    %vm3611 = vweird.f32 %v3192
    %vm3612 = vweird.f32 %v3606
    %vm3613 = vmor %vm3611, %vm3612
    %v3614 = vsel %vm3613, %v3606, %v3610
    %v3615 = vand.u32 2147483647, %v3192
    %vm3616 = vcmp.eq.f32.partialorder %v3615, 8.507059e+37
    %v3617 = vand.u32 %v3192, 2147483648
    %v3618 = vor.u32 1.1754944e-38, %v3617
    %v3619 = vsel %vm3616, %v3618, %v3614
    %v3620 = vmul.f32 1.0, %v3619
    %v3621 = vrcp.pop %v3193
    %v3622 = vmul.f32 %v3193, %v3621
    %v3623 = vsub.f32 1.0, %v3622
    %v3624 = vmul.f32 %v3621, %v3623
    %v3625 = vadd.f32 %v3621, %v3624
    %vm3626 = vweird.f32 %v3193
    %vm3627 = vweird.f32 %v3621
    %vm3628 = vmor %vm3626, %vm3627
    %v3629 = vsel %vm3628, %v3621, %v3625
    %v3630 = vand.u32 2147483647, %v3193
    %vm3631 = vcmp.eq.f32.partialorder %v3630, 8.507059e+37
    %v3632 = vand.u32 %v3193, 2147483648
    %v3633 = vor.u32 1.1754944e-38, %v3632
    %v3634 = vsel %vm3631, %v3633, %v3629
    %v3635 = vmul.f32 1.0, %v3634
    %v3636 = vrcp.pop %v3194
    %v3637 = vmul.f32 %v3194, %v3636
    %v3638 = vsub.f32 1.0, %v3637
    %v3639 = vmul.f32 %v3636, %v3638
    %v3640 = vadd.f32 %v3636, %v3639
    %vm3641 = vweird.f32 %v3194
    %vm3642 = vweird.f32 %v3636
    %vm3643 = vmor %vm3641, %vm3642
    %v3644 = vsel %vm3643, %v3636, %v3640
    %v3645 = vand.u32 2147483647, %v3194
    %vm3646 = vcmp.eq.f32.partialorder %v3645, 8.507059e+37
    %v3647 = vand.u32 %v3194, 2147483648
    %v3648 = vor.u32 1.1754944e-38, %v3647
    %v3649 = vsel %vm3646, %v3648, %v3644
    %v3650 = vmul.f32 1.0, %v3649
    %v3651 = vrcp.pop %v3195
    %v3652 = vmul.f32 %v3195, %v3651
    %v3653 = vsub.f32 1.0, %v3652
    %v3654 = vmul.f32 %v3651, %v3653
    %v3655 = vadd.f32 %v3651, %v3654
    %vm3656 = vweird.f32 %v3195
    %vm3657 = vweird.f32 %v3651
    %vm3658 = vmor %vm3656, %vm3657
    %v3659 = vsel %vm3658, %v3651, %v3655
    %v3660 = vand.u32 2147483647, %v3195
    %vm3661 = vcmp.eq.f32.partialorder %v3660, 8.507059e+37
    %v3662 = vand.u32 %v3195, 2147483648
    %v3663 = vor.u32 1.1754944e-38, %v3662
    %v3664 = vsel %vm3661, %v3663, %v3659
    %v3665 = vmul.f32 1.0, %v3664
    %v3666 = vrcp.pop %v3196
    %v3667 = vmul.f32 %v3196, %v3666
    %v3668 = vsub.f32 1.0, %v3667
    %v3669 = vmul.f32 %v3666, %v3668
    %v3670 = vadd.f32 %v3666, %v3669
    %vm3671 = vweird.f32 %v3196
    %vm3672 = vweird.f32 %v3666
    %vm3673 = vmor %vm3671, %vm3672
    %v3674 = vsel %vm3673, %v3666, %v3670
    %v3675 = vand.u32 2147483647, %v3196
    %vm3676 = vcmp.eq.f32.partialorder %v3675, 8.507059e+37
    %v3677 = vand.u32 %v3196, 2147483648
    %v3678 = vor.u32 1.1754944e-38, %v3677
    %v3679 = vsel %vm3676, %v3678, %v3674
    %v3680 = vmul.f32 1.0, %v3679
    %v3681 = vrcp.pop %v3197
    %v3682 = vmul.f32 %v3197, %v3681
    %v3683 = vsub.f32 1.0, %v3682
    %v3684 = vmul.f32 %v3681, %v3683
    %v3685 = vadd.f32 %v3681, %v3684
    %vm3686 = vweird.f32 %v3197
    %vm3687 = vweird.f32 %v3681
    %vm3688 = vmor %vm3686, %vm3687
    %v3689 = vsel %vm3688, %v3681, %v3685
    %v3690 = vand.u32 2147483647, %v3197
    %vm3691 = vcmp.eq.f32.partialorder %v3690, 8.507059e+37
    %v3692 = vand.u32 %v3197, 2147483648
    %v3693 = vor.u32 1.1754944e-38, %v3692
    %v3694 = vsel %vm3691, %v3693, %v3689
    %v3695 = vmul.f32 1.0, %v3694
    %v3696 = vrcp.pop %v3198
    %v3697 = vmul.f32 %v3198, %v3696
    %v3698 = vsub.f32 1.0, %v3697
    %v3699 = vmul.f32 %v3696, %v3698
    %v3700 = vadd.f32 %v3696, %v3699
    %vm3701 = vweird.f32 %v3198
    %vm3702 = vweird.f32 %v3696
    %vm3703 = vmor %vm3701, %vm3702
    %v3704 = vsel %vm3703, %v3696, %v3700
    %v3705 = vand.u32 2147483647, %v3198
    %vm3706 = vcmp.eq.f32.partialorder %v3705, 8.507059e+37
    %v3707 = vand.u32 %v3198, 2147483648
    %v3708 = vor.u32 1.1754944e-38, %v3707
    %v3709 = vsel %vm3706, %v3708, %v3704
    %v3710 = vmul.f32 1.0, %v3709
    %v3711 = vrcp.pop %v3199
    %v3712 = vmul.f32 %v3199, %v3711
    %v3713 = vsub.f32 1.0, %v3712
    %v3714 = vmul.f32 %v3711, %v3713
    %v3715 = vadd.f32 %v3711, %v3714
    %vm3716 = vweird.f32 %v3199
    %vm3717 = vweird.f32 %v3711
    %vm3718 = vmor %vm3716, %vm3717
    %v3719 = vsel %vm3718, %v3711, %v3715
    %v3720 = vand.u32 2147483647, %v3199
    %vm3721 = vcmp.eq.f32.partialorder %v3720, 8.507059e+37
    %v3722 = vand.u32 %v3199, 2147483648
    %v3723 = vor.u32 1.1754944e-38, %v3722
    %v3724 = vsel %vm3721, %v3723, %v3719
    %v3725 = vmul.f32 1.0, %v3724
    %v3726 = vrcp.pop %v3200
    %v3727 = vmul.f32 %v3200, %v3726
    %v3728 = vsub.f32 1.0, %v3727
    %v3729 = vmul.f32 %v3726, %v3728
    %v3730 = vadd.f32 %v3726, %v3729
    %vm3731 = vweird.f32 %v3200
    %vm3732 = vweird.f32 %v3726
    %vm3733 = vmor %vm3731, %vm3732
    %v3734 = vsel %vm3733, %v3726, %v3730
    %v3735 = vand.u32 2147483647, %v3200
    %vm3736 = vcmp.eq.f32.partialorder %v3735, 8.507059e+37
    %v3737 = vand.u32 %v3200, 2147483648
    %v3738 = vor.u32 1.1754944e-38, %v3737
    %v3739 = vsel %vm3736, %v3738, %v3734
    %v3740 = vmul.f32 1.0, %v3739
    %v3741 = vrcp.pop %v3201
    %v3742 = vmul.f32 %v3201, %v3741
    %v3743 = vsub.f32 1.0, %v3742
    %v3744 = vmul.f32 %v3741, %v3743
    %v3745 = vadd.f32 %v3741, %v3744
    %vm3746 = vweird.f32 %v3201
    %vm3747 = vweird.f32 %v3741
    %vm3748 = vmor %vm3746, %vm3747
    %v3749 = vsel %vm3748, %v3741, %v3745
    %v3750 = vand.u32 2147483647, %v3201
    %vm3751 = vcmp.eq.f32.partialorder %v3750, 8.507059e+37
    %v3752 = vand.u32 %v3201, 2147483648
    %v3753 = vor.u32 1.1754944e-38, %v3752
    %v3754 = vsel %vm3751, %v3753, %v3749
    %v3755 = vmul.f32 1.0, %v3754
    %v3756 = vrcp.pop %v3202
    %v3757 = vmul.f32 %v3202, %v3756
    %v3758 = vsub.f32 1.0, %v3757
    %v3759 = vmul.f32 %v3756, %v3758
    %v3760 = vadd.f32 %v3756, %v3759
    %vm3761 = vweird.f32 %v3202
    %vm3762 = vweird.f32 %v3756
    %vm3763 = vmor %vm3761, %vm3762
    %v3764 = vsel %vm3763, %v3756, %v3760
    %v3765 = vand.u32 2147483647, %v3202
    %vm3766 = vcmp.eq.f32.partialorder %v3765, 8.507059e+37
    %v3767 = vand.u32 %v3202, 2147483648
    %v3768 = vor.u32 1.1754944e-38, %v3767
    %v3769 = vsel %vm3766, %v3768, %v3764
    %v3770 = vmul.f32 1.0, %v3769
    %v3771 = vrcp.pop %v3203
    %v3772 = vmul.f32 %v3203, %v3771
    %v3773 = vsub.f32 1.0, %v3772
    %v3774 = vmul.f32 %v3771, %v3773
    %v3775 = vadd.f32 %v3771, %v3774
    %vm3776 = vweird.f32 %v3203
    %vm3777 = vweird.f32 %v3771
    %vm3778 = vmor %vm3776, %vm3777
    %v3779 = vsel %vm3778, %v3771, %v3775
    %v3780 = vand.u32 2147483647, %v3203
    %vm3781 = vcmp.eq.f32.partialorder %v3780, 8.507059e+37
    %v3782 = vand.u32 %v3203, 2147483648
    %v3783 = vor.u32 1.1754944e-38, %v3782
    %v3784 = vsel %vm3781, %v3783, %v3779
    %v3785 = vmul.f32 1.0, %v3784
    %v3786 = vrcp.pop %v3204
    %v3787 = vmul.f32 %v3204, %v3786
    %v3788 = vsub.f32 1.0, %v3787
    %v3789 = vmul.f32 %v3786, %v3788
    %v3790 = vadd.f32 %v3786, %v3789
    %vm3791 = vweird.f32 %v3204
    %vm3792 = vweird.f32 %v3786
    %vm3793 = vmor %vm3791, %vm3792
    %v3794 = vsel %vm3793, %v3786, %v3790
    %v3795 = vand.u32 2147483647, %v3204
    %vm3796 = vcmp.eq.f32.partialorder %v3795, 8.507059e+37
    %v3797 = vand.u32 %v3204, 2147483648
    %v3798 = vor.u32 1.1754944e-38, %v3797
    %v3799 = vsel %vm3796, %v3798, %v3794
    %v3800 = vmul.f32 1.0, %v3799
    %v3801 = vrcp.pop %v3205
    %v3802 = vmul.f32 %v3205, %v3801
    %v3803 = vsub.f32 1.0, %v3802
    %v3804 = vmul.f32 %v3801, %v3803
    %v3805 = vadd.f32 %v3801, %v3804
    %vm3806 = vweird.f32 %v3205
    %vm3807 = vweird.f32 %v3801
    %vm3808 = vmor %vm3806, %vm3807
    %v3809 = vsel %vm3808, %v3801, %v3805
    %v3810 = vand.u32 2147483647, %v3205
    %vm3811 = vcmp.eq.f32.partialorder %v3810, 8.507059e+37
    %v3812 = vand.u32 %v3205, 2147483648
    %v3813 = vor.u32 1.1754944e-38, %v3812
    %v3814 = vsel %vm3811, %v3813, %v3809
    %v3815 = vmul.f32 1.0, %v3814
    %v3816 = vrcp.pop %v3206
    %v3817 = vmul.f32 %v3206, %v3816
    %v3818 = vsub.f32 1.0, %v3817
    %v3819 = vmul.f32 %v3816, %v3818
    %v3820 = vadd.f32 %v3816, %v3819
    %vm3821 = vweird.f32 %v3206
    %vm3822 = vweird.f32 %v3816
    %vm3823 = vmor %vm3821, %vm3822
    %v3824 = vsel %vm3823, %v3816, %v3820
    %v3825 = vand.u32 2147483647, %v3206
    %vm3826 = vcmp.eq.f32.partialorder %v3825, 8.507059e+37
    %v3827 = vand.u32 %v3206, 2147483648
    %v3828 = vor.u32 1.1754944e-38, %v3827
    %v3829 = vsel %vm3826, %v3828, %v3824
    %v3830 = vmul.f32 1.0, %v3829
    %v3831 = vrcp.pop %v3207
    %v3832 = vmul.f32 %v3207, %v3831
    %v3833 = vsub.f32 1.0, %v3832
    %v3834 = vmul.f32 %v3831, %v3833
    %v3835 = vadd.f32 %v3831, %v3834
    %vm3836 = vweird.f32 %v3207
    %vm3837 = vweird.f32 %v3831
    %vm3838 = vmor %vm3836, %vm3837
    %v3839 = vsel %vm3838, %v3831, %v3835
    %v3840 = vand.u32 2147483647, %v3207
    %vm3841 = vcmp.eq.f32.partialorder %v3840, 8.507059e+37
    %v3842 = vand.u32 %v3207, 2147483648
    %v3843 = vor.u32 1.1754944e-38, %v3842
    %v3844 = vsel %vm3841, %v3843, %v3839
    %v3845 = vmul.f32 1.0, %v3844
    %v3846 = vrcp.pop %v3208
    %v3847 = vmul.f32 %v3208, %v3846
    %v3848 = vsub.f32 1.0, %v3847
    %v3849 = vmul.f32 %v3846, %v3848
    %v3850 = vadd.f32 %v3846, %v3849
    %vm3851 = vweird.f32 %v3208
    %vm3852 = vweird.f32 %v3846
    %vm3853 = vmor %vm3851, %vm3852
    %v3854 = vsel %vm3853, %v3846, %v3850
    %v3855 = vand.u32 2147483647, %v3208
    %vm3856 = vcmp.eq.f32.partialorder %v3855, 8.507059e+37
    %v3857 = vand.u32 %v3208, 2147483648
    %v3858 = vor.u32 1.1754944e-38, %v3857
    %v3859 = vsel %vm3856, %v3858, %v3854
    %v3860 = vmul.f32 1.0, %v3859
    %v3861 = vrcp.pop %v3209
    %v3862 = vmul.f32 %v3209, %v3861
    %v3863 = vsub.f32 1.0, %v3862
    %v3864 = vmul.f32 %v3861, %v3863
    %v3865 = vadd.f32 %v3861, %v3864
    %vm3866 = vweird.f32 %v3209
    %vm3867 = vweird.f32 %v3861
    %vm3868 = vmor %vm3866, %vm3867
    %v3869 = vsel %vm3868, %v3861, %v3865
    %v3870 = vand.u32 2147483647, %v3209
    %vm3871 = vcmp.eq.f32.partialorder %v3870, 8.507059e+37
    %v3872 = vand.u32 %v3209, 2147483648
    %v3873 = vor.u32 1.1754944e-38, %v3872
    %v3874 = vsel %vm3871, %v3873, %v3869
    %v3875 = vmul.f32 1.0, %v3874
    %v3876 = vrcp.pop %v3210
    %v3877 = vmul.f32 %v3210, %v3876
    %v3878 = vsub.f32 1.0, %v3877
    %v3879 = vmul.f32 %v3876, %v3878
    %v3880 = vadd.f32 %v3876, %v3879
    %vm3881 = vweird.f32 %v3210
    %vm3882 = vweird.f32 %v3876
    %vm3883 = vmor %vm3881, %vm3882
    %v3884 = vsel %vm3883, %v3876, %v3880
    %v3885 = vand.u32 2147483647, %v3210
    %vm3886 = vcmp.eq.f32.partialorder %v3885, 8.507059e+37
    %v3887 = vand.u32 %v3210, 2147483648
    %v3888 = vor.u32 1.1754944e-38, %v3887
    %v3889 = vsel %vm3886, %v3888, %v3884
    %v3890 = vmul.f32 1.0, %v3889
    %v3891 = vrcp.pop %v3211
    %v3892 = vmul.f32 %v3211, %v3891
    %v3893 = vsub.f32 1.0, %v3892
    %v3894 = vmul.f32 %v3891, %v3893
    %v3895 = vadd.f32 %v3891, %v3894
    %vm3896 = vweird.f32 %v3211
    %vm3897 = vweird.f32 %v3891
    %vm3898 = vmor %vm3896, %vm3897
    %v3899 = vsel %vm3898, %v3891, %v3895
    %v3900 = vand.u32 2147483647, %v3211
    %vm3901 = vcmp.eq.f32.partialorder %v3900, 8.507059e+37
    %v3902 = vand.u32 %v3211, 2147483648
    %v3903 = vor.u32 1.1754944e-38, %v3902
    %v3904 = vsel %vm3901, %v3903, %v3899
    %v3905 = vmul.f32 1.0, %v3904
    %v3906 = vrcp.pop %v3212
    %v3907 = vmul.f32 %v3212, %v3906
    %v3908 = vsub.f32 1.0, %v3907
    %v3909 = vmul.f32 %v3906, %v3908
    %v3910 = vadd.f32 %v3906, %v3909
    %vm3911 = vweird.f32 %v3212
    %vm3912 = vweird.f32 %v3906
    %vm3913 = vmor %vm3911, %vm3912
    %v3914 = vsel %vm3913, %v3906, %v3910
    %v3915 = vand.u32 2147483647, %v3212
    %vm3916 = vcmp.eq.f32.partialorder %v3915, 8.507059e+37
    %v3917 = vand.u32 %v3212, 2147483648
    %v3918 = vor.u32 1.1754944e-38, %v3917
    %v3919 = vsel %vm3916, %v3918, %v3914
    %v3920 = vmul.f32 1.0, %v3919
    %v3921 = vrcp.pop %v3213
    %v3922 = vmul.f32 %v3213, %v3921
    %v3923 = vsub.f32 1.0, %v3922
    %v3924 = vmul.f32 %v3921, %v3923
    %v3925 = vadd.f32 %v3921, %v3924
    %vm3926 = vweird.f32 %v3213
    %vm3927 = vweird.f32 %v3921
    %vm3928 = vmor %vm3926, %vm3927
    %v3929 = vsel %vm3928, %v3921, %v3925
    %v3930 = vand.u32 2147483647, %v3213
    %vm3931 = vcmp.eq.f32.partialorder %v3930, 8.507059e+37
    %v3932 = vand.u32 %v3213, 2147483648
    %v3933 = vor.u32 1.1754944e-38, %v3932
    %v3934 = vsel %vm3931, %v3933, %v3929
    %v3935 = vmul.f32 1.0, %v3934
    %v3936 = vrcp.pop %v3214
    %v3937 = vmul.f32 %v3214, %v3936
    %v3938 = vsub.f32 1.0, %v3937
    %v3939 = vmul.f32 %v3936, %v3938
    %v3940 = vadd.f32 %v3936, %v3939
    %vm3941 = vweird.f32 %v3214
    %vm3942 = vweird.f32 %v3936
    %vm3943 = vmor %vm3941, %vm3942
    %v3944 = vsel %vm3943, %v3936, %v3940
    %v3945 = vand.u32 2147483647, %v3214
    %vm3946 = vcmp.eq.f32.partialorder %v3945, 8.507059e+37
    %v3947 = vand.u32 %v3214, 2147483648
    %v3948 = vor.u32 1.1754944e-38, %v3947
    %v3949 = vsel %vm3946, %v3948, %v3944
    %v3950 = vmul.f32 1.0, %v3949
    %v3951 = vrcp.pop %v3215
    %v3952 = vmul.f32 %v3215, %v3951
    %v3953 = vsub.f32 1.0, %v3952
    %v3954 = vmul.f32 %v3951, %v3953
    %v3955 = vadd.f32 %v3951, %v3954
    %vm3956 = vweird.f32 %v3215
    %vm3957 = vweird.f32 %v3951
    %vm3958 = vmor %vm3956, %vm3957
    %v3959 = vsel %vm3958, %v3951, %v3955
    %v3960 = vand.u32 2147483647, %v3215
    %vm3961 = vcmp.eq.f32.partialorder %v3960, 8.507059e+37
    %v3962 = vand.u32 %v3215, 2147483648
    %v3963 = vor.u32 1.1754944e-38, %v3962
    %v3964 = vsel %vm3961, %v3963, %v3959
    %v3965 = vmul.f32 1.0, %v3964
    %v3966 = vrcp.pop %v3216
    %v3967 = vmul.f32 %v3216, %v3966
    %v3968 = vsub.f32 1.0, %v3967
    %v3969 = vmul.f32 %v3966, %v3968
    %v3970 = vadd.f32 %v3966, %v3969
    %vm3971 = vweird.f32 %v3216
    %vm3972 = vweird.f32 %v3966
    %vm3973 = vmor %vm3971, %vm3972
    %v3974 = vsel %vm3973, %v3966, %v3970
    %v3975 = vand.u32 2147483647, %v3216
    %vm3976 = vcmp.eq.f32.partialorder %v3975, 8.507059e+37
    %v3977 = vand.u32 %v3216, 2147483648
    %v3978 = vor.u32 1.1754944e-38, %v3977
    %v3979 = vsel %vm3976, %v3978, %v3974
    %v3980 = vmul.f32 1.0, %v3979
    %v3981 = vrcp.pop %v3217
    %v3982 = vmul.f32 %v3217, %v3981
    %v3983 = vsub.f32 1.0, %v3982
    %v3984 = vmul.f32 %v3981, %v3983
    %v3985 = vadd.f32 %v3981, %v3984
    %vm3986 = vweird.f32 %v3217
    %vm3987 = vweird.f32 %v3981
    %vm3988 = vmor %vm3986, %vm3987
    %v3989 = vsel %vm3988, %v3981, %v3985
    %v3990 = vand.u32 2147483647, %v3217
    %vm3991 = vcmp.eq.f32.partialorder %v3990, 8.507059e+37
    %v3992 = vand.u32 %v3217, 2147483648
    %v3993 = vor.u32 1.1754944e-38, %v3992
    %v3994 = vsel %vm3991, %v3993, %v3989
    %v3995 = vmul.f32 1.0, %v3994
    %v3996 = vrcp.pop %v3218
    %v3997 = vmul.f32 %v3218, %v3996
    %v3998 = vsub.f32 1.0, %v3997
    %v3999 = vmul.f32 %v3996, %v3998
    %v4000 = vadd.f32 %v3996, %v3999
    %vm4001 = vweird.f32 %v3218
    %vm4002 = vweird.f32 %v3996
    %vm4003 = vmor %vm4001, %vm4002
    %v4004 = vsel %vm4003, %v3996, %v4000
    %v4005 = vand.u32 2147483647, %v3218
    %vm4006 = vcmp.eq.f32.partialorder %v4005, 8.507059e+37
    %v4007 = vand.u32 %v3218, 2147483648
    %v4008 = vor.u32 1.1754944e-38, %v4007
    %v4009 = vsel %vm4006, %v4008, %v4004
    %v4010 = vmul.f32 1.0, %v4009
    %v4011 = vrcp.pop %v3219
    %v4012 = vmul.f32 %v3219, %v4011
    %v4013 = vsub.f32 1.0, %v4012
    %v4014 = vmul.f32 %v4011, %v4013
    %v4015 = vadd.f32 %v4011, %v4014
    %vm4016 = vweird.f32 %v3219
    %vm4017 = vweird.f32 %v4011
    %vm4018 = vmor %vm4016, %vm4017
    %v4019 = vsel %vm4018, %v4011, %v4015
    %v4020 = vand.u32 2147483647, %v3219
    %vm4021 = vcmp.eq.f32.partialorder %v4020, 8.507059e+37
    %v4022 = vand.u32 %v3219, 2147483648
    %v4023 = vor.u32 1.1754944e-38, %v4022
    %v4024 = vsel %vm4021, %v4023, %v4019
    %v4025 = vmul.f32 1.0, %v4024
    %v4026 = vrcp.pop %v3220
    %v4027 = vmul.f32 %v3220, %v4026
    %v4028 = vsub.f32 1.0, %v4027
    %v4029 = vmul.f32 %v4026, %v4028
    %v4030 = vadd.f32 %v4026, %v4029
    %vm4031 = vweird.f32 %v3220
    %vm4032 = vweird.f32 %v4026
    %vm4033 = vmor %vm4031, %vm4032
    %v4034 = vsel %vm4033, %v4026, %v4030
    %v4035 = vand.u32 2147483647, %v3220
    %vm4036 = vcmp.eq.f32.partialorder %v4035, 8.507059e+37
    %v4037 = vand.u32 %v3220, 2147483648
    %v4038 = vor.u32 1.1754944e-38, %v4037
    %v4039 = vsel %vm4036, %v4038, %v4034
    %v4040 = vmul.f32 1.0, %v4039
    %v4041 = vrcp.pop %v3221
    %v4042 = vmul.f32 %v3221, %v4041
    %v4043 = vsub.f32 1.0, %v4042
    %v4044 = vmul.f32 %v4041, %v4043
    %v4045 = vadd.f32 %v4041, %v4044
    %vm4046 = vweird.f32 %v3221
    %vm4047 = vweird.f32 %v4041
    %vm4048 = vmor %vm4046, %vm4047
    %v4049 = vsel %vm4048, %v4041, %v4045
    %v4050 = vand.u32 2147483647, %v3221
    %vm4051 = vcmp.eq.f32.partialorder %v4050, 8.507059e+37
    %v4052 = vand.u32 %v3221, 2147483648
    %v4053 = vor.u32 1.1754944e-38, %v4052
    %v4054 = vsel %vm4051, %v4053, %v4049
    %v4055 = vmul.f32 1.0, %v4054
    %v4056 = vrcp.pop %v3222
    %v4057 = vmul.f32 %v3222, %v4056
    %v4058 = vsub.f32 1.0, %v4057
    %v4059 = vmul.f32 %v4056, %v4058
    %v4060 = vadd.f32 %v4056, %v4059
    %vm4061 = vweird.f32 %v3222
    %vm4062 = vweird.f32 %v4056
    %vm4063 = vmor %vm4061, %vm4062
    %v4064 = vsel %vm4063, %v4056, %v4060
    %v4065 = vand.u32 2147483647, %v3222
    %vm4066 = vcmp.eq.f32.partialorder %v4065, 8.507059e+37
    %v4067 = vand.u32 %v3222, 2147483648
    %v4068 = vor.u32 1.1754944e-38, %v4067
    %v4069 = vsel %vm4066, %v4068, %v4064
    %v4070 = vmul.f32 1.0, %v4069
    %v4071 = vrcp.pop %v3223
    %v4072 = vmul.f32 %v3223, %v4071
    %v4073 = vsub.f32 1.0, %v4072
    %v4074 = vmul.f32 %v4071, %v4073
    %v4075 = vadd.f32 %v4071, %v4074
    %vm4076 = vweird.f32 %v3223
    %vm4077 = vweird.f32 %v4071
    %vm4078 = vmor %vm4076, %vm4077
    %v4079 = vsel %vm4078, %v4071, %v4075
    %v4080 = vand.u32 2147483647, %v3223
    %vm4081 = vcmp.eq.f32.partialorder %v4080, 8.507059e+37
    %v4082 = vand.u32 %v3223, 2147483648
    %v4083 = vor.u32 1.1754944e-38, %v4082
    %v4084 = vsel %vm4081, %v4083, %v4079
    %v4085 = vmul.f32 1.0, %v4084
    %v4086 = vrcp.pop %v3224
    %v4087 = vmul.f32 %v3224, %v4086
    %v4088 = vsub.f32 1.0, %v4087
    %v4089 = vmul.f32 %v4086, %v4088
    %v4090 = vadd.f32 %v4086, %v4089
    %vm4091 = vweird.f32 %v3224
    %vm4092 = vweird.f32 %v4086
    %vm4093 = vmor %vm4091, %vm4092
    %v4094 = vsel %vm4093, %v4086, %v4090
    %v4095 = vand.u32 2147483647, %v3224
    %vm4096 = vcmp.eq.f32.partialorder %v4095, 8.507059e+37
    %v4097 = vand.u32 %v3224, 2147483648
    %v4098 = vor.u32 1.1754944e-38, %v4097
    %v4099 = vsel %vm4096, %v4098, %v4094
    %v4100 = vmul.f32 1.0, %v4099
    %v4101 = vrcp.pop %v3225
    %v4102 = vmul.f32 %v3225, %v4101
    %v4103 = vsub.f32 1.0, %v4102
    %v4104 = vmul.f32 %v4101, %v4103
    %v4105 = vadd.f32 %v4101, %v4104
    %vm4106 = vweird.f32 %v3225
    %vm4107 = vweird.f32 %v4101
    %vm4108 = vmor %vm4106, %vm4107
    %v4109 = vsel %vm4108, %v4101, %v4105
    %v4110 = vand.u32 2147483647, %v3225
    %vm4111 = vcmp.eq.f32.partialorder %v4110, 8.507059e+37
    %v4112 = vand.u32 %v3225, 2147483648
    %v4113 = vor.u32 1.1754944e-38, %v4112
    %v4114 = vsel %vm4111, %v4113, %v4109
    %v4115 = vmul.f32 1.0, %v4114
    %v4116 = vrcp.pop %v3226
    %v4117 = vmul.f32 %v3226, %v4116
    %v4118 = vsub.f32 1.0, %v4117
    %v4119 = vmul.f32 %v4116, %v4118
    %v4120 = vadd.f32 %v4116, %v4119
    %vm4121 = vweird.f32 %v3226
    %vm4122 = vweird.f32 %v4116
    %vm4123 = vmor %vm4121, %vm4122
    %v4124 = vsel %vm4123, %v4116, %v4120
    %v4125 = vand.u32 2147483647, %v3226
    %vm4126 = vcmp.eq.f32.partialorder %v4125, 8.507059e+37
    %v4127 = vand.u32 %v3226, 2147483648
    %v4128 = vor.u32 1.1754944e-38, %v4127
    %v4129 = vsel %vm4126, %v4128, %v4124
    %v4130 = vmul.f32 1.0, %v4129
    %v4131 = vrcp.pop %v3227
    %v4132 = vmul.f32 %v3227, %v4131
    %v4133 = vsub.f32 1.0, %v4132
    %v4134 = vmul.f32 %v4131, %v4133
    %v4135 = vadd.f32 %v4131, %v4134
    %vm4136 = vweird.f32 %v3227
    %vm4137 = vweird.f32 %v4131
    %vm4138 = vmor %vm4136, %vm4137
    %v4139 = vsel %vm4138, %v4131, %v4135
    %v4140 = vand.u32 2147483647, %v3227
    %vm4141 = vcmp.eq.f32.partialorder %v4140, 8.507059e+37
    %v4142 = vand.u32 %v3227, 2147483648
    %v4143 = vor.u32 1.1754944e-38, %v4142
    %v4144 = vsel %vm4141, %v4143, %v4139
    %v4145 = vmul.f32 1.0, %v4144
    %v4146 = vrcp.pop %v3228
    %v4147 = vmul.f32 %v3228, %v4146
    %v4148 = vsub.f32 1.0, %v4147
    %v4149 = vmul.f32 %v4146, %v4148
    %v4150 = vadd.f32 %v4146, %v4149
    %vm4151 = vweird.f32 %v3228
    %vm4152 = vweird.f32 %v4146
    %vm4153 = vmor %vm4151, %vm4152
    %v4154 = vsel %vm4153, %v4146, %v4150
    %v4155 = vand.u32 2147483647, %v3228
    %vm4156 = vcmp.eq.f32.partialorder %v4155, 8.507059e+37
    %v4157 = vand.u32 %v3228, 2147483648
    %v4158 = vor.u32 1.1754944e-38, %v4157
    %v4159 = vsel %vm4156, %v4158, %v4154
    %v4160 = vmul.f32 1.0, %v4159
    %v4161 = vrcp.pop %v3229
    %v4162 = vmul.f32 %v3229, %v4161
    %v4163 = vsub.f32 1.0, %v4162
    %v4164 = vmul.f32 %v4161, %v4163
    %v4165 = vadd.f32 %v4161, %v4164
    %vm4166 = vweird.f32 %v3229
    %vm4167 = vweird.f32 %v4161
    %vm4168 = vmor %vm4166, %vm4167
    %v4169 = vsel %vm4168, %v4161, %v4165
    %v4170 = vand.u32 2147483647, %v3229
    %vm4171 = vcmp.eq.f32.partialorder %v4170, 8.507059e+37
    %v4172 = vand.u32 %v3229, 2147483648
    %v4173 = vor.u32 1.1754944e-38, %v4172
    %v4174 = vsel %vm4171, %v4173, %v4169
    %v4175 = vmul.f32 1.0, %v4174
    %v4176 = vrcp.pop %v3230
    %v4177 = vmul.f32 %v3230, %v4176
    %v4178 = vsub.f32 1.0, %v4177
    %v4179 = vmul.f32 %v4176, %v4178
    %v4180 = vadd.f32 %v4176, %v4179
    %vm4181 = vweird.f32 %v3230
    %vm4182 = vweird.f32 %v4176
    %vm4183 = vmor %vm4181, %vm4182
    %v4184 = vsel %vm4183, %v4176, %v4180
    %v4185 = vand.u32 2147483647, %v3230
    %vm4186 = vcmp.eq.f32.partialorder %v4185, 8.507059e+37
    %v4187 = vand.u32 %v3230, 2147483648
    %v4188 = vor.u32 1.1754944e-38, %v4187
    %v4189 = vsel %vm4186, %v4188, %v4184
    %v4190 = vmul.f32 1.0, %v4189
    %4192 = vset.pattern.permute.xlu0 0
    %4193 = vperm.xlu0 %4192, %v3245
    %v4194 = vpop.permute.xlu0 %4193
    %4197 = vset.pattern.permute.xlu0 0
    %4198 = vperm.xlu0 %4197, %v3260
    %v4199 = vpop.permute.xlu0 %4198
    %4202 = vset.pattern.permute.xlu0 0
    %4203 = vperm.xlu0 %4202, %v3275
    %v4204 = vpop.permute.xlu0 %4203
    %4207 = vset.pattern.permute.xlu0 0
    %4208 = vperm.xlu0 %4207, %v3290
    %v4209 = vpop.permute.xlu0 %4208
    %4212 = vset.pattern.permute.xlu0 0
    %4213 = vperm.xlu0 %4212, %v3305
    %v4214 = vpop.permute.xlu0 %4213
    %4217 = vset.pattern.permute.xlu0 0
    %4218 = vperm.xlu0 %4217, %v3320
    %v4219 = vpop.permute.xlu0 %4218
    %4222 = vset.pattern.permute.xlu0 0
    %4223 = vperm.xlu0 %4222, %v3335
    %v4224 = vpop.permute.xlu0 %4223
    %4227 = vset.pattern.permute.xlu0 0
    %4228 = vperm.xlu0 %4227, %v3350
    %v4229 = vpop.permute.xlu0 %4228
    %4232 = vset.pattern.permute.xlu0 0
    %4233 = vperm.xlu0 %4232, %v3365
    %v4234 = vpop.permute.xlu0 %4233
    %4237 = vset.pattern.permute.xlu0 0
    %4238 = vperm.xlu0 %4237, %v3380
    %v4239 = vpop.permute.xlu0 %4238
    %4242 = vset.pattern.permute.xlu0 0
    %4243 = vperm.xlu0 %4242, %v3395
    %v4244 = vpop.permute.xlu0 %4243
    %4247 = vset.pattern.permute.xlu0 0
    %4248 = vperm.xlu0 %4247, %v3410
    %v4249 = vpop.permute.xlu0 %4248
    %4252 = vset.pattern.permute.xlu0 0
    %4253 = vperm.xlu0 %4252, %v3425
    %v4254 = vpop.permute.xlu0 %4253
    %4257 = vset.pattern.permute.xlu0 0
    %4258 = vperm.xlu0 %4257, %v3440
    %v4259 = vpop.permute.xlu0 %4258
    %4262 = vset.pattern.permute.xlu0 0
    %4263 = vperm.xlu0 %4262, %v3455
    %v4264 = vpop.permute.xlu0 %4263
    %4267 = vset.pattern.permute.xlu0 0
    %4268 = vperm.xlu0 %4267, %v3470
    %v4269 = vpop.permute.xlu0 %4268
    %4272 = vset.pattern.permute.xlu0 0
    %4273 = vperm.xlu0 %4272, %v3485
    %v4274 = vpop.permute.xlu0 %4273
    %4277 = vset.pattern.permute.xlu0 0
    %4278 = vperm.xlu0 %4277, %v3500
    %v4279 = vpop.permute.xlu0 %4278
    %4282 = vset.pattern.permute.xlu0 0
    %4283 = vperm.xlu0 %4282, %v3515
    %v4284 = vpop.permute.xlu0 %4283
    %4287 = vset.pattern.permute.xlu0 0
    %4288 = vperm.xlu0 %4287, %v3530
    %v4289 = vpop.permute.xlu0 %4288
    %4292 = vset.pattern.permute.xlu0 0
    %4293 = vperm.xlu0 %4292, %v3545
    %v4294 = vpop.permute.xlu0 %4293
    %4297 = vset.pattern.permute.xlu0 0
    %4298 = vperm.xlu0 %4297, %v3560
    %v4299 = vpop.permute.xlu0 %4298
    %4302 = vset.pattern.permute.xlu0 0
    %4303 = vperm.xlu0 %4302, %v3575
    %v4304 = vpop.permute.xlu0 %4303
    %4307 = vset.pattern.permute.xlu0 0
    %4308 = vperm.xlu0 %4307, %v3590
    %v4309 = vpop.permute.xlu0 %4308
    %4312 = vset.pattern.permute.xlu0 0
    %4313 = vperm.xlu0 %4312, %v3605
    %v4314 = vpop.permute.xlu0 %4313
    %4317 = vset.pattern.permute.xlu0 0
    %4318 = vperm.xlu0 %4317, %v3620
    %v4319 = vpop.permute.xlu0 %4318
    %4322 = vset.pattern.permute.xlu0 0
    %4323 = vperm.xlu0 %4322, %v3635
    %v4324 = vpop.permute.xlu0 %4323
    %4327 = vset.pattern.permute.xlu0 0
    %4328 = vperm.xlu0 %4327, %v3650
    %v4329 = vpop.permute.xlu0 %4328
    %4332 = vset.pattern.permute.xlu0 0
    %4333 = vperm.xlu0 %4332, %v3665
    %v4334 = vpop.permute.xlu0 %4333
    %4337 = vset.pattern.permute.xlu0 0
    %4338 = vperm.xlu0 %4337, %v3680
    %v4339 = vpop.permute.xlu0 %4338
    %4342 = vset.pattern.permute.xlu0 0
    %4343 = vperm.xlu0 %4342, %v3695
    %v4344 = vpop.permute.xlu0 %4343
    %4347 = vset.pattern.permute.xlu0 0
    %4348 = vperm.xlu0 %4347, %v3710
    %v4349 = vpop.permute.xlu0 %4348
    %4352 = vset.pattern.permute.xlu0 0
    %4353 = vperm.xlu0 %4352, %v3725
    %v4354 = vpop.permute.xlu0 %4353
    %4357 = vset.pattern.permute.xlu0 0
    %4358 = vperm.xlu0 %4357, %v3740
    %v4359 = vpop.permute.xlu0 %4358
    %4362 = vset.pattern.permute.xlu0 0
    %4363 = vperm.xlu0 %4362, %v3755
    %v4364 = vpop.permute.xlu0 %4363
    %4367 = vset.pattern.permute.xlu0 0
    %4368 = vperm.xlu0 %4367, %v3770
    %v4369 = vpop.permute.xlu0 %4368
    %4372 = vset.pattern.permute.xlu0 0
    %4373 = vperm.xlu0 %4372, %v3785
    %v4374 = vpop.permute.xlu0 %4373
    %4377 = vset.pattern.permute.xlu0 0
    %4378 = vperm.xlu0 %4377, %v3800
    %v4379 = vpop.permute.xlu0 %4378
    %4382 = vset.pattern.permute.xlu0 0
    %4383 = vperm.xlu0 %4382, %v3815
    %v4384 = vpop.permute.xlu0 %4383
    %4387 = vset.pattern.permute.xlu0 0
    %4388 = vperm.xlu0 %4387, %v3830
    %v4389 = vpop.permute.xlu0 %4388
    %4392 = vset.pattern.permute.xlu0 0
    %4393 = vperm.xlu0 %4392, %v3845
    %v4394 = vpop.permute.xlu0 %4393
    %4397 = vset.pattern.permute.xlu0 0
    %4398 = vperm.xlu0 %4397, %v3860
    %v4399 = vpop.permute.xlu0 %4398
    %4402 = vset.pattern.permute.xlu0 0
    %4403 = vperm.xlu0 %4402, %v3875
    %v4404 = vpop.permute.xlu0 %4403
    %4407 = vset.pattern.permute.xlu0 0
    %4408 = vperm.xlu0 %4407, %v3890
    %v4409 = vpop.permute.xlu0 %4408
    %4412 = vset.pattern.permute.xlu0 0
    %4413 = vperm.xlu0 %4412, %v3905
    %v4414 = vpop.permute.xlu0 %4413
    %4417 = vset.pattern.permute.xlu0 0
    %4418 = vperm.xlu0 %4417, %v3920
    %v4419 = vpop.permute.xlu0 %4418
    %4422 = vset.pattern.permute.xlu0 0
    %4423 = vperm.xlu0 %4422, %v3935
    %v4424 = vpop.permute.xlu0 %4423
    %4427 = vset.pattern.permute.xlu0 0
    %4428 = vperm.xlu0 %4427, %v3950
    %v4429 = vpop.permute.xlu0 %4428
    %4432 = vset.pattern.permute.xlu0 0
    %4433 = vperm.xlu0 %4432, %v3965
    %v4434 = vpop.permute.xlu0 %4433
    %4437 = vset.pattern.permute.xlu0 0
    %4438 = vperm.xlu0 %4437, %v3980
    %v4439 = vpop.permute.xlu0 %4438
    %4442 = vset.pattern.permute.xlu0 0
    %4443 = vperm.xlu0 %4442, %v3995
    %v4444 = vpop.permute.xlu0 %4443
    %4447 = vset.pattern.permute.xlu0 0
    %4448 = vperm.xlu0 %4447, %v4010
    %v4449 = vpop.permute.xlu0 %4448
    %4452 = vset.pattern.permute.xlu0 0
    %4453 = vperm.xlu0 %4452, %v4025
    %v4454 = vpop.permute.xlu0 %4453
    %4457 = vset.pattern.permute.xlu0 0
    %4458 = vperm.xlu0 %4457, %v4040
    %v4459 = vpop.permute.xlu0 %4458
    %4462 = vset.pattern.permute.xlu0 0
    %4463 = vperm.xlu0 %4462, %v4055
    %v4464 = vpop.permute.xlu0 %4463
    %4467 = vset.pattern.permute.xlu0 0
    %4468 = vperm.xlu0 %4467, %v4070
    %v4469 = vpop.permute.xlu0 %4468
    %4472 = vset.pattern.permute.xlu0 0
    %4473 = vperm.xlu0 %4472, %v4085
    %v4474 = vpop.permute.xlu0 %4473
    %4477 = vset.pattern.permute.xlu0 0
    %4478 = vperm.xlu0 %4477, %v4100
    %v4479 = vpop.permute.xlu0 %4478
    %4482 = vset.pattern.permute.xlu0 0
    %4483 = vperm.xlu0 %4482, %v4115
    %v4484 = vpop.permute.xlu0 %4483
    %4487 = vset.pattern.permute.xlu0 0
    %4488 = vperm.xlu0 %4487, %v4130
    %v4489 = vpop.permute.xlu0 %4488
    %4492 = vset.pattern.permute.xlu0 0
    %4493 = vperm.xlu0 %4492, %v4145
    %v4494 = vpop.permute.xlu0 %4493
    %4497 = vset.pattern.permute.xlu0 0
    %4498 = vperm.xlu0 %4497, %v4160
    %v4499 = vpop.permute.xlu0 %4498
    %4502 = vset.pattern.permute.xlu0 0
    %4503 = vperm.xlu0 %4502, %v4175
    %v4504 = vpop.permute.xlu0 %4503
    %4507 = vset.pattern.permute.xlu0 0
    %4508 = vperm.xlu0 %4507, %v4190
    %v4509 = vpop.permute.xlu0 %4508
    %v4511 = vmul.f32 %v1761, %v4194
    %v4512 = vmul.f32 %v1762, %v4199
    %v4513 = vmul.f32 %v1763, %v4204
    %v4514 = vmul.f32 %v1764, %v4209
    %v4515 = vmul.f32 %v1765, %v4214
    %v4516 = vmul.f32 %v1766, %v4219
    %v4517 = vmul.f32 %v1767, %v4224
    %v4518 = vmul.f32 %v1768, %v4229
    %v4519 = vmul.f32 %v1769, %v4234
    %v4520 = vmul.f32 %v1770, %v4239
    %v4521 = vmul.f32 %v1771, %v4244
    %v4522 = vmul.f32 %v1772, %v4249
    %v4523 = vmul.f32 %v1773, %v4254
    %v4524 = vmul.f32 %v1774, %v4259
    %v4525 = vmul.f32 %v1775, %v4264
    %v4526 = vmul.f32 %v1776, %v4269
    %v4527 = vmul.f32 %v1777, %v4274
    %v4528 = vmul.f32 %v1778, %v4279
    %v4529 = vmul.f32 %v1779, %v4284
    %v4530 = vmul.f32 %v1780, %v4289
    %v4531 = vmul.f32 %v1781, %v4294
    %v4532 = vmul.f32 %v1782, %v4299
    %v4533 = vmul.f32 %v1783, %v4304
    %v4534 = vmul.f32 %v1784, %v4309
    %v4535 = vmul.f32 %v1785, %v4314
    %v4536 = vmul.f32 %v1786, %v4319
    %v4537 = vmul.f32 %v1787, %v4324
    %v4538 = vmul.f32 %v1788, %v4329
    %v4539 = vmul.f32 %v1789, %v4334
    %v4540 = vmul.f32 %v1790, %v4339
    %v4541 = vmul.f32 %v1791, %v4344
    %v4542 = vmul.f32 %v1792, %v4349
    %v4543 = vmul.f32 %v1793, %v4354
    %v4544 = vmul.f32 %v1794, %v4359
    %v4545 = vmul.f32 %v1795, %v4364
    %v4546 = vmul.f32 %v1796, %v4369
    %v4547 = vmul.f32 %v1797, %v4374
    %v4548 = vmul.f32 %v1798, %v4379
    %v4549 = vmul.f32 %v1799, %v4384
    %v4550 = vmul.f32 %v1800, %v4389
    %v4551 = vmul.f32 %v1801, %v4394
    %v4552 = vmul.f32 %v1802, %v4399
    %v4553 = vmul.f32 %v1803, %v4404
    %v4554 = vmul.f32 %v1804, %v4409
    %v4555 = vmul.f32 %v1805, %v4414
    %v4556 = vmul.f32 %v1806, %v4419
    %v4557 = vmul.f32 %v1807, %v4424
    %v4558 = vmul.f32 %v1808, %v4429
    %v4559 = vmul.f32 %v1809, %v4434
    %v4560 = vmul.f32 %v1810, %v4439
    %v4561 = vmul.f32 %v1811, %v4444
    %v4562 = vmul.f32 %v1812, %v4449
    %v4563 = vmul.f32 %v1813, %v4454
    %v4564 = vmul.f32 %v1814, %v4459
    %v4565 = vmul.f32 %v1815, %v4464
    %v4566 = vmul.f32 %v1816, %v4469
    %v4567 = vmul.f32 %v1817, %v4474
    %v4568 = vmul.f32 %v1818, %v4479
    %v4569 = vmul.f32 %v1819, %v4484
    %v4570 = vmul.f32 %v1820, %v4489
    %v4571 = vmul.f32 %v1821, %v4494
    %v4572 = vmul.f32 %v1822, %v4499
    %v4573 = vmul.f32 %v1823, %v4504
    %v4574 = vmul.f32 %v1824, %v4509
    %v4575 = vpack.c.bf16 %v4511, %v4511
    %v4576 = vpack.c.bf16 %v4512, %v4512
    %v4577 = vpack.c.bf16 %v4513, %v4513
    %v4578 = vpack.c.bf16 %v4514, %v4514
    %v4579 = vpack.c.bf16 %v4515, %v4515
    %v4580 = vpack.c.bf16 %v4516, %v4516
    %v4581 = vpack.c.bf16 %v4517, %v4517
    %v4582 = vpack.c.bf16 %v4518, %v4518
    %v4583 = vpack.c.bf16 %v4519, %v4519
    %v4584 = vpack.c.bf16 %v4520, %v4520
    %v4585 = vpack.c.bf16 %v4521, %v4521
    %v4586 = vpack.c.bf16 %v4522, %v4522
    %v4587 = vpack.c.bf16 %v4523, %v4523
    %v4588 = vpack.c.bf16 %v4524, %v4524
    %v4589 = vpack.c.bf16 %v4525, %v4525
    %v4590 = vpack.c.bf16 %v4526, %v4526
    %v4591 = vpack.c.bf16 %v4527, %v4527
    %v4592 = vpack.c.bf16 %v4528, %v4528
    %v4593 = vpack.c.bf16 %v4529, %v4529
    %v4594 = vpack.c.bf16 %v4530, %v4530
    %v4595 = vpack.c.bf16 %v4531, %v4531
    %v4596 = vpack.c.bf16 %v4532, %v4532
    %v4597 = vpack.c.bf16 %v4533, %v4533
    %v4598 = vpack.c.bf16 %v4534, %v4534
    %v4599 = vpack.c.bf16 %v4535, %v4535
    %v4600 = vpack.c.bf16 %v4536, %v4536
    %v4601 = vpack.c.bf16 %v4537, %v4537
    %v4602 = vpack.c.bf16 %v4538, %v4538
    %v4603 = vpack.c.bf16 %v4539, %v4539
    %v4604 = vpack.c.bf16 %v4540, %v4540
    %v4605 = vpack.c.bf16 %v4541, %v4541
    %v4606 = vpack.c.bf16 %v4542, %v4542
    %v4607 = vpack.c.bf16 %v4543, %v4543
    %v4608 = vpack.c.bf16 %v4544, %v4544
    %v4609 = vpack.c.bf16 %v4545, %v4545
    %v4610 = vpack.c.bf16 %v4546, %v4546
    %v4611 = vpack.c.bf16 %v4547, %v4547
    %v4612 = vpack.c.bf16 %v4548, %v4548
    %v4613 = vpack.c.bf16 %v4549, %v4549
    %v4614 = vpack.c.bf16 %v4550, %v4550
    %v4615 = vpack.c.bf16 %v4551, %v4551
    %v4616 = vpack.c.bf16 %v4552, %v4552
    %v4617 = vpack.c.bf16 %v4553, %v4553
    %v4618 = vpack.c.bf16 %v4554, %v4554
    %v4619 = vpack.c.bf16 %v4555, %v4555
    %v4620 = vpack.c.bf16 %v4556, %v4556
    %v4621 = vpack.c.bf16 %v4557, %v4557
    %v4622 = vpack.c.bf16 %v4558, %v4558
    %v4623 = vpack.c.bf16 %v4559, %v4559
    %v4624 = vpack.c.bf16 %v4560, %v4560
    %v4625 = vpack.c.bf16 %v4561, %v4561
    %v4626 = vpack.c.bf16 %v4562, %v4562
    %v4627 = vpack.c.bf16 %v4563, %v4563
    %v4628 = vpack.c.bf16 %v4564, %v4564
    %v4629 = vpack.c.bf16 %v4565, %v4565
    %v4630 = vpack.c.bf16 %v4566, %v4566
    %v4631 = vpack.c.bf16 %v4567, %v4567
    %v4632 = vpack.c.bf16 %v4568, %v4568
    %v4633 = vpack.c.bf16 %v4569, %v4569
    %v4634 = vpack.c.bf16 %v4570, %v4570
    %v4635 = vpack.c.bf16 %v4571, %v4571
    %v4636 = vpack.c.bf16 %v4572, %v4572
    %v4637 = vpack.c.bf16 %v4573, %v4573
    %v4638 = vpack.c.bf16 %v4574, %v4574
    %4639 = vst [vmem:[#allocation13] sm:$0xf] %v4575
    %4640 = vst [vmem:[#allocation13 + $0x4] sm:$0xf] %v4576
    %4641 = vst [vmem:[#allocation13 + $0x8] sm:$0xf] %v4577
    %4642 = vst [vmem:[#allocation13 + $0xc] sm:$0xf] %v4578
    %4643 = vst [vmem:[#allocation13 + $0x10] sm:$0xf] %v4579
    %4644 = vst [vmem:[#allocation13 + $0x14] sm:$0xf] %v4580
    %4645 = vst [vmem:[#allocation13 + $0x18] sm:$0xf] %v4581
    %4646 = vst [vmem:[#allocation13 + $0x1c] sm:$0xf] %v4582
    %4647 = vst [vmem:[#allocation13 + $0x20] sm:$0xf] %v4583
    %4648 = vst [vmem:[#allocation13 + $0x24] sm:$0xf] %v4584
    %4649 = vst [vmem:[#allocation13 + $0x28] sm:$0xf] %v4585
    %4650 = vst [vmem:[#allocation13 + $0x2c] sm:$0xf] %v4586
    %4651 = vst [vmem:[#allocation13 + $0x30] sm:$0xf] %v4587
    %4652 = vst [vmem:[#allocation13 + $0x34] sm:$0xf] %v4588
    %4653 = vst [vmem:[#allocation13 + $0x38] sm:$0xf] %v4589
    %4654 = vst [vmem:[#allocation13 + $0x3c] sm:$0xf] %v4590
    %4655 = vst [vmem:[#allocation13 + $0x40] sm:$0xf] %v4591
    %4656 = vst [vmem:[#allocation13 + $0x44] sm:$0xf] %v4592
    %4657 = vst [vmem:[#allocation13 + $0x48] sm:$0xf] %v4593
    %4658 = vst [vmem:[#allocation13 + $0x4c] sm:$0xf] %v4594
    %4659 = vst [vmem:[#allocation13 + $0x50] sm:$0xf] %v4595
    %4660 = vst [vmem:[#allocation13 + $0x54] sm:$0xf] %v4596
    %4661 = vst [vmem:[#allocation13 + $0x58] sm:$0xf] %v4597
    %4662 = vst [vmem:[#allocation13 + $0x5c] sm:$0xf] %v4598
    %4663 = vst [vmem:[#allocation13 + $0x60] sm:$0xf] %v4599
    %4664 = vst [vmem:[#allocation13 + $0x64] sm:$0xf] %v4600
    %4665 = vst [vmem:[#allocation13 + $0x68] sm:$0xf] %v4601
    %4666 = vst [vmem:[#allocation13 + $0x6c] sm:$0xf] %v4602
    %4667 = vst [vmem:[#allocation13 + $0x70] sm:$0xf] %v4603
    %4668 = vst [vmem:[#allocation13 + $0x74] sm:$0xf] %v4604
    %4669 = vst [vmem:[#allocation13 + $0x78] sm:$0xf] %v4605
    %4670 = vst [vmem:[#allocation13 + $0x7c] sm:$0xf] %v4606
    %4671 = vst [vmem:[#allocation13 + $0x80] sm:$0xf] %v4607
    %4672 = vst [vmem:[#allocation13 + $0x84] sm:$0xf] %v4608
    %4673 = vst [vmem:[#allocation13 + $0x88] sm:$0xf] %v4609
    %4674 = vst [vmem:[#allocation13 + $0x8c] sm:$0xf] %v4610
    %4675 = vst [vmem:[#allocation13 + $0x90] sm:$0xf] %v4611
    %4676 = vst [vmem:[#allocation13 + $0x94] sm:$0xf] %v4612
    %4677 = vst [vmem:[#allocation13 + $0x98] sm:$0xf] %v4613
    %4678 = vst [vmem:[#allocation13 + $0x9c] sm:$0xf] %v4614
    %4679 = vst [vmem:[#allocation13 + $0xa0] sm:$0xf] %v4615
    %4680 = vst [vmem:[#allocation13 + $0xa4] sm:$0xf] %v4616
    %4681 = vst [vmem:[#allocation13 + $0xa8] sm:$0xf] %v4617
    %4682 = vst [vmem:[#allocation13 + $0xac] sm:$0xf] %v4618
    %4683 = vst [vmem:[#allocation13 + $0xb0] sm:$0xf] %v4619
    %4684 = vst [vmem:[#allocation13 + $0xb4] sm:$0xf] %v4620
    %4685 = vst [vmem:[#allocation13 + $0xb8] sm:$0xf] %v4621
    %4686 = vst [vmem:[#allocation13 + $0xbc] sm:$0xf] %v4622
    %4687 = vst [vmem:[#allocation13 + $0xc0] sm:$0xf] %v4623
    %4688 = vst [vmem:[#allocation13 + $0xc4] sm:$0xf] %v4624
    %4689 = vst [vmem:[#allocation13 + $0xc8] sm:$0xf] %v4625
    %4690 = vst [vmem:[#allocation13 + $0xcc] sm:$0xf] %v4626
    %4691 = vst [vmem:[#allocation13 + $0xd0] sm:$0xf] %v4627
    %4692 = vst [vmem:[#allocation13 + $0xd4] sm:$0xf] %v4628
    %4693 = vst [vmem:[#allocation13 + $0xd8] sm:$0xf] %v4629
    %4694 = vst [vmem:[#allocation13 + $0xdc] sm:$0xf] %v4630
    %4695 = vst [vmem:[#allocation13 + $0xe0] sm:$0xf] %v4631
    %4696 = vst [vmem:[#allocation13 + $0xe4] sm:$0xf] %v4632
    %4697 = vst [vmem:[#allocation13 + $0xe8] sm:$0xf] %v4633
    %4698 = vst [vmem:[#allocation13 + $0xec] sm:$0xf] %v4634
    %4699 = vst [vmem:[#allocation13 + $0xf0] sm:$0xf] %v4635
    %4700 = vst [vmem:[#allocation13 + $0xf4] sm:$0xf] %v4636
    %4701 = vst [vmem:[#allocation13 + $0xf8] sm:$0xf] %v4637
    %4702 = vst [vmem:[#allocation13 + $0xfc] sm:$0xf] %v4638
    // Predicated region
    $region54: #{tpu_custom_call.1} parent=1 // pred_check
      _
    $region55: #{tpu_custom_call.1} parent=1 // pred_check_branch
      %4704 = sbr.rel (0) target = $region57
    $region56: #{tpu_custom_call.1} parent=1 // pred_region
      %4706 = vsyncadd [#allocation4], 0
      %s4707 = sshll.u32 [#allocation13], 4
      %s4708 = int_to_ptr.vmem [resolvable:$true] %s4707
      %s4709 = sshll.u32 %s7, 4
      %s4710 = int_to_ptr.hbm [resolvable:$true] %s4709
      %4715 = dma.vmem_to_hbm [thread:$0]  %s4708, 4096, %s4710, [#allocation4], 64, 64, 4
    $region57: #{tpu_custom_call.1} parent=1 // pred_fallthru
      _
    // Predicated region
    $region58: #{tpu_custom_call.1} parent=1 // pred_check
      _
    $region59: #{tpu_custom_call.1} parent=1 // pred_check_branch
      %4717 = sbr.rel (0) target = $region61
    $region60: #{tpu_custom_call.1} parent=1 // pred_region
      %4719 = dma.done [#allocation4], 4096
    $region61: #{tpu_custom_call.1} parent=1 // pred_fallthru
      _
    %4720 = vsyncpa [#allocation3], 1
    %4721 = vsyncpa [#allocation6], 1
    %4722 = vsyncpa [#allocation9], 1
    %4723 = vsyncpa [#allocation12], 1
    %4724 = vsyncpa [#allocation4], 1

</llo_original>
